<compile_context>
chip_gen: v6e
topology: v6e:2x2x1
jax: 0.10.0
libtpu: 0.0.40
codegen_flags: <defaults>
</compile_context>

<pallas_src>
import numpy as np
import jax
import jax.numpy as jnp
from jax.experimental import pallas as pl
from jax.experimental.pallas import tpu as pltpu

# ----------------------------- model hyper-params (small, consistent) ------------------
B         = 2
SEQ_LEN   = 32          # must satisfy the module's (seq_len - 28)/2 + 1 formula
ENC_IN    = 4           # EEG channels
D_MODEL   = 32
N_HEADS   = 4
HEAD_DIM  = D_MODEL // N_HEADS
D_FF      = 64
E_LAYERS  = 2
NUM_CLASS = 5
CONV_K    = 25          # ShallowNet temporal conv kernel (1, 25)
POOL_K, POOL_S = 4, 2   # AvgPool2d((1,4),(1,2)) over time
BN_EPS    = 1e-5
LN_EPS    = 1e-5

T1 = SEQ_LEN - CONV_K + 1                 # time after temporal conv   = 8
T2 = (T1 - POOL_K) // POOL_S + 1          # time after avg-pool        = 3
R  = B * T2                               # tokens in the whole batch  = 6
assert T2 == int((SEQ_LEN - 28) / 2 + 1), "embedding length must match projection"


# ----------------------------- in-kernel helpers ---------------------------------------
def _layernorm(x, g, b):
    mu = jnp.mean(x, axis=-1, keepdims=True)
    xc = x - mu
    var = jnp.mean(xc * xc, axis=-1, keepdims=True)       # biased var (PyTorch LN)
    return xc * jax.lax.rsqrt(var + LN_EPS) * g + b


def _erf(x):
    # TODO(synk): lax.erf lowering inside Mosaic is not guaranteed on every jax version,
    # so exact-erf GELU uses Abramowitz-Stegun 7.1.26 (max abs err ~1.5e-7), exp-only.
    a1, a2, a3, a4, a5 = 0.254829592, -0.284496736, 1.421413741, -1.453152027, 1.061405429
    p = 0.3275911
    sgn = jnp.where(x >= 0.0, 1.0, -1.0)
    ax = jnp.abs(x)
    t = 1.0 / (1.0 + p * ax)      # exact divide kept here to stay close to exact-erf GELU
    poly = ((((a5 * t + a4) * t + a3) * t + a2) * t + a1) * t
    return sgn * (1.0 - poly * jnp.exp(-ax * ax))


def _gelu(x):                      # F.gelu (exact/erf form, to ~1e-7)
    return 0.5 * x * (1.0 + _erf(x * 0.7071067811865476))


def _elu(x):                       # ELU(alpha=1)
    return jnp.where(x > 0.0, x, jnp.exp(jnp.minimum(x, 0.0)) - 1.0)


# ----------------------------- the single fused kernel ---------------------------------
def _conformer_kernel(
    x_ref,                                        # (B, SEQ*C)         input, lane-flat
    wcomb_ref, shift2_ref,                        # (SEQ*C, T1*D), (1, T1*D)
    srep_ref, poolmask_ref, wptile_ref, bp_ref,   # (R,B), (R,T1*D), (T1*D,D), (1,D)
    wqkvo_ref, wf1_ref, wf2_ref, vecsd_ref, bf1_ref,   # per-layer stacks
    sreph_ref, hm_ref, bmask_ref, collapse_ref,   # head batching constants
    normgb_ref,                                   # (2, 1, D) final LayerNorm [gamma; beta]
    woutwide_ref, selmask_ref, lanesum_ref, rowsum_ref, bout_ref,   # classifier
    o_ref,                                        # (B, NUM_CLASS)
):
    f32 = jnp.float32
    dot = lambda a, b: jnp.dot(a, b, preferred_element_type=f32)

    # -------- ShallowNet embedding -------------------------------------------------
    # Temporal conv (1,25) + spatial conv (enc_in,1) + BN(eval) scale folded into ONE
    # pack-time Toeplitz matrix -> single (B, SEQ*C) @ (SEQ*C, T1*D) matmul.
    y2 = dot(x_ref[...], wcomb_ref[...]) + shift2_ref[...]          # (B, T1*D)
    e = _elu(y2)
    # AvgPool + 1x1 projection: replicate each batch row once per output time step,
    # weight by the pooling coefficients, contract over (t, d) with the tiled wp.
    erep = dot(srep_ref[...], e) * poolmask_ref[...]                # (R, T1*D)
    x = dot(erep, wptile_ref[...]) + bp_ref[...]                    # (R, D) rows=(b,t2)

    hm = hm_ref[...]                                                # (H*R, D) head lane masks
    bmask = bmask_ref[...]                                          # (H*R, R) block-batch mask
    sreph = sreph_ref[...]                                          # (H*R, R) row replication
    collapse = collapse_ref[...]                                    # (R, H*R) head collapse

    # -------- Transformer encoder ---------------------------------------------------
    for l in range(E_LAYERS):
        wbase, vbase = 4 * l, 9 * l
        q = dot(x, wqkvo_ref[wbase + 0]) + vecsd_ref[vbase + 0]     # scale pre-folded
        k = dot(x, wqkvo_ref[wbase + 1]) + vecsd_ref[vbase + 1]
        v = dot(x, wqkvo_ref[wbase + 2]) + vecsd_ref[vbase + 2]

        # All heads batched along sublanes: rows = (h, b, t2).
        qs = dot(sreph, q) * hm                                     # (H*R, D)
        s = jax.lax.dot_general(qs, k, (((1,), (1,)), ((), ())),
                                preferred_element_type=f32) + bmask  # (H*R, R)
        s = s - jnp.max(s, axis=-1, keepdims=True)
        p = jnp.exp(s)
        p = p * pl.reciprocal(jnp.sum(p, axis=-1, keepdims=True), approx=True)
        pv = dot(p, v) * hm                                         # (H*R, D)
        attn = dot(collapse, pv)                                    # (R, D) heads merged
        ao = dot(attn, wqkvo_ref[wbase + 3]) + vecsd_ref[vbase + 3]

        x1 = _layernorm(x + ao, vecsd_ref[vbase + 4], vecsd_ref[vbase + 5])
        ff = _gelu(dot(x1, wf1_ref[l]) + bf1_ref[l])                # (R, D_FF)
        y = dot(ff, wf2_ref[l]) + vecsd_ref[vbase + 6]
        x = _layernorm(x1 + y, vecsd_ref[vbase + 7], vecsd_ref[vbase + 8])

    # -------- head: final norm -> GELU -> flatten -> Linear ---------------------------
    g = _gelu(_layernorm(x, normgb_ref[0], normgb_ref[1]))          # (R, D)
    gw = dot(g, woutwide_ref[...]) * selmask_ref[...]               # (R, T2*NC)
    part = dot(gw, lanesum_ref[...])                                # (R, NC) per-token partials
    o_ref[...] = dot(rowsum_ref[...], part) + bout_ref[...]         # (B, NC)


# ----------------------------- pallas_call wrapper --------------------------------------
_WEIGHT_KEYS = ("wcomb", "shift2", "srep", "poolmask", "wptile", "bp",
                "wqkvo", "wf1", "wf2", "vecsd", "bf1",
                "sreph", "hm", "bmask", "collapse",
                "normgb", "woutwide", "selmask", "lanesum", "rowsum", "bout")


def _const_spec(shape):
    zeros = (0,) * len(shape)
    return pl.BlockSpec(shape, lambda i, _z=zeros: _z)


def conformer_forward(packed, x_enc, x_mark_enc=None, x_dec=None, x_mark_dec=None,
                      mask=None):
    """task_name == 'supervised' path of Model.forward (inference mode)."""
    Bc = x_enc.shape[0]
    # Metadata-only reshape: x_flat[b, s*C + c] = x_enc[b, s, c]. No XLA data movement.
    x_flat = x_enc.astype(jnp.float32).reshape(Bc, SEQ_LEN * ENC_IN)

    weights = tuple(packed[k] for k in _WEIGHT_KEYS)
    in_specs = [_const_spec(x_flat.shape)] + [_const_spec(w.shape) for w in weights]

    out = pl.pallas_call(
        _conformer_kernel,
        out_shape=jax.ShapeDtypeStruct((Bc, NUM_CLASS), jnp.float32),
        grid=(1,),                           # whole batch in one program (v5e/v6e optimal)
        in_specs=in_specs,
        out_specs=_const_spec((Bc, NUM_CLASS)),
        compiler_params=pltpu.CompilerParams(dimension_semantics=("arbitrary",)),
    )(x_flat, *weights)
    return out


# ----------------------------- parameters ------------------------------------------------
def init_params(key):
    ks = jax.random.split(key, 9)

    def nrm(k, shape, s=0.1):
        return s * jax.random.normal(k, shape, dtype=jnp.float32)

    params = {
        # ShallowNet embedding
        "w_conv1": nrm(ks[0], (CONV_K, D_MODEL)),             # Conv2d(1,d,(1,25))
        "b_conv1": nrm(ks[1], (D_MODEL,)),
        "w_conv2": nrm(ks[2], (D_MODEL * ENC_IN, D_MODEL)),   # Conv2d(d,d,(enc_in,1)), rows (ci,c)
        "b_conv2": nrm(ks[3], (D_MODEL,)),
        "bn_g": jnp.ones((D_MODEL,), jnp.float32),            # BatchNorm2d defaults
        "bn_b": jnp.zeros((D_MODEL,), jnp.float32),
        "bn_rm": jnp.zeros((D_MODEL,), jnp.float32),
        "bn_rv": jnp.ones((D_MODEL,), jnp.float32),
        "w_proj": nrm(ks[4], (D_MODEL, D_MODEL)),             # 1x1 projection conv
        "b_proj": nrm(ks[5], (D_MODEL,)),
        # final encoder LayerNorm + classifier head
        "norm_g": jnp.ones((D_MODEL,), jnp.float32),
        "norm_b": jnp.zeros((D_MODEL,), jnp.float32),
        "w_out": nrm(ks[7], (T2 * D_MODEL, NUM_CLASS)),
        "b_out": nrm(ks[8], (NUM_CLASS,)),
    }

    layers = []
    for lk in jax.random.split(ks[6], E_LAYERS):
        sub = jax.random.split(lk, 12)
        layers.append({
            "wq": nrm(sub[0], (D_MODEL, D_MODEL)), "bq": nrm(sub[1], (D_MODEL,)),
            "wk": nrm(sub[2], (D_MODEL, D_MODEL)), "bk": nrm(sub[3], (D_MODEL,)),
            "wv": nrm(sub[4], (D_MODEL, D_MODEL)), "bv": nrm(sub[5], (D_MODEL,)),
            "wo": nrm(sub[6], (D_MODEL, D_MODEL)), "bo": nrm(sub[7], (D_MODEL,)),
            "w_ff1": nrm(sub[8], (D_MODEL, D_FF)), "b_ff1": nrm(sub[9], (D_FF,)),
            "w_ff2": nrm(sub[10], (D_FF, D_MODEL)), "b_ff2": nrm(sub[11], (D_MODEL,)),
            "ln1_g": jnp.ones((D_MODEL,), jnp.float32),
            "ln1_b": jnp.zeros((D_MODEL,), jnp.float32),
            "ln2_g": jnp.ones((D_MODEL,), jnp.float32),
            "ln2_b": jnp.zeros((D_MODEL,), jnp.float32),
        })
    params["layers"] = layers
    return params


def pack_params(p):
    """One-time (outside jit) repack / pre-fold of PyTorch-layout parameters."""
    f32 = np.float32
    scale = float(HEAD_DIM) ** -0.5

    W1 = np.asarray(p["w_conv1"], f32)                                  # (K, D)  [k, ci]
    b1 = np.asarray(p["b_conv1"], f32)
    W2 = np.asarray(p["w_conv2"], f32).reshape(D_MODEL, ENC_IN, D_MODEL)  # (ci, c, co)
    b2 = np.asarray(p["b_conv2"], f32)
    bn_g, bn_b = np.asarray(p["bn_g"], f32), np.asarray(p["bn_b"], f32)
    bn_rm, bn_rv = np.asarray(p["bn_rm"], f32), np.asarray(p["bn_rv"], f32)
    bn_scale = bn_g / np.sqrt(bn_rv + BN_EPS)

    # temporal conv + spatial conv + BN scale -> one Toeplitz matrix over (s, c) lanes.
    A = np.einsum("ki,icd->kcd", W1, W2) * bn_scale[None, None, :]      # (K, C, D)
    wcomb = np.zeros((SEQ_LEN * ENC_IN, T1 * D_MODEL), f32)
    for t in range(T1):
        for k in range(CONV_K):
            s = t + k
            wcomb[s * ENC_IN:(s + 1) * ENC_IN, t * D_MODEL:(t + 1) * D_MODEL] = A[k]
    shift = (np.einsum("i,icd->d", b1, W2) + b2 - bn_rm) * bn_scale + bn_b
    shift2 = np.tile(shift, T1).reshape(1, T1 * D_MODEL)

    # AvgPool2d((1,4),(1,2)) + 1x1 projection conv.
    pool = np.zeros((T2, T1), f32)
    for t2 in range(T2):
        pool[t2, POOL_S * t2: POOL_S * t2 + POOL_K] = 1.0 / POOL_K
    srep = np.zeros((R, B), f32)
    poolmask = np.zeros((R, T1 * D_MODEL), f32)
    for b in range(B):
        for t2 in range(T2):
            srep[b * T2 + t2, b] = 1.0
            for t in range(T1):
                poolmask[b * T2 + t2, t * D_MODEL:(t + 1) * D_MODEL] = pool[t2, t]
    wptile = np.tile(np.asarray(p["w_proj"], f32), (T1, 1))             # (T1*D, D)
    bp = np.asarray(p["b_proj"], f32).reshape(1, D_MODEL)

    # Attention constants: heads stacked along sublanes, batch block mask, head collapse.
    sreph = np.tile(np.eye(R, dtype=f32), (N_HEADS, 1))                 # (H*R, R)
    hm = np.zeros((N_HEADS * R, D_MODEL), f32)
    for h in range(N_HEADS):
        hm[h * R:(h + 1) * R, h * HEAD_DIM:(h + 1) * HEAD_DIM] = 1.0
    bmask = np.full((N_HEADS * R, R), -1e30, f32)
    for h in range(N_HEADS):
        for b in range(B):
            bmask[h * R + b * T2: h * R + (b + 1) * T2, b * T2:(b + 1) * T2] = 0.0
    collapse = np.tile(np.eye(R, dtype=f32), (1, N_HEADS))              # (R, H*R)

    # Per-layer weights stacked on a leading axis; attention scale folded into wq/bq.
    mats, vecs, wf1, wf2, bf1 = [], [], [], [], []
    for lp in p["layers"]:
        mats += [np.asarray(lp["wq"], f32) * scale, np.asarray(lp["wk"], f32),
                 np.asarray(lp["wv"], f32), np.asarray(lp["wo"], f32)]
        vecs += [np.asarray(lp["bq"], f32) * scale, np.asarray(lp["bk"], f32),
                 np.asarray(lp["bv"], f32), np.asarray(lp["bo"], f32),
                 np.asarray(lp["ln1_g"], f32), np.asarray(lp["ln1_b"], f32),
                 np.asarray(lp["b_ff2"], f32),
                 np.asarray(lp["ln2_g"], f32), np.asarray(lp["ln2_b"], f32)]
        wf1.append(np.asarray(lp["w_ff1"], f32))
        wf2.append(np.asarray(lp["w_ff2"], f32))
        bf1.append(np.asarray(lp["b_ff1"], f32).reshape(1, D_FF))
    wqkvo = np.stack(mats)                                              # (L*4, D, D)
    vecsd = np.stack([v.reshape(1, D_MODEL) for v in vecs])             # (L*9, 1, D)

    # Final LayerNorm + flatten + Linear classifier.
    normgb = np.stack([np.asarray(p["norm_g"], f32).reshape(1, D_MODEL),
                       np.asarray(p["norm_b"], f32).reshape(1, D_MODEL)])
    w_out = np.asarray(p["w_out"], f32)                                 # (T2*D, NC)
    woutwide = w_out.reshape(T2, D_MODEL, NUM_CLASS).transpose(1, 0, 2).reshape(
        D_MODEL, T2 * NUM_CLASS)
    selmask = np.zeros((R, T2 * NUM_CLASS), f32)
    rowsum = np.zeros((B, R), f32)
    for b in range(B):
        rowsum[b, b * T2:(b + 1) * T2] = 1.0
        for t2 in range(T2):
            selmask[b * T2 + t2, t2 * NUM_CLASS:(t2 + 1) * NUM_CLASS] = 1.0
    lanesum = np.tile(np.eye(NUM_CLASS, dtype=f32), (T2, 1))            # (T2*NC, NC)
    bout = np.asarray(p["b_out"], f32).reshape(1, NUM_CLASS)

    raw = dict(wcomb=wcomb, shift2=shift2, srep=srep, poolmask=poolmask, wptile=wptile,
               bp=bp, wqkvo=wqkvo, wf1=np.stack(wf1), wf2=np.stack(wf2), vecsd=vecsd,
               bf1=np.stack(bf1), sreph=sreph, hm=hm, bmask=bmask, collapse=collapse,
               normgb=normgb, woutwide=woutwide, selmask=selmask, lanesum=lanesum,
               rowsum=rowsum, bout=bout)
    return {k: jnp.asarray(v, jnp.float32) for k, v in raw.items()}


# ----------------------------- driver -----------------------------------------------------
if __name__ == "__main__":
    key = jax.random.PRNGKey(0)
    pkey, xkey = jax.random.split(key)
    params = init_params(pkey)
    packed = pack_params(params)          # one-time weight packing (outside jit)

    x_enc = jax.random.normal(xkey, (B, SEQ_LEN, ENC_IN), dtype=jnp.float32)
    x_mark_enc = x_dec = x_mark_dec = None   # unused by the 'supervised' path

    fwd = jax.jit(conformer_forward)
    logits = fwd(packed, x_enc, x_mark_enc, x_dec, x_mark_dec)
    jax.block_until_ready(logits)

    assert logits.shape == (B, NUM_CLASS)
    assert bool(jnp.all(jnp.isfinite(logits)))
    print("KERNEL_OK")
</pallas_src>

<mosaic_0001>
module attributes {stable_mosaic.version = 11 : i64} {
  func.func @_conformer_kernel(%arg0: i32, %arg1: memref<2x128xf32, #tpu.memory_space<vmem>>, %arg2: memref<128x256xf32, #tpu.memory_space<vmem>>, %arg3: memref<1x256xf32, #tpu.memory_space<vmem>>, %arg4: memref<6x2xf32, #tpu.memory_space<vmem>>, %arg5: memref<6x256xf32, #tpu.memory_space<vmem>>, %arg6: memref<256x32xf32, #tpu.memory_space<vmem>>, %arg7: memref<1x32xf32, #tpu.memory_space<vmem>>, %arg8: memref<8x32x32xf32, #tpu.memory_space<vmem>>, %arg9: memref<2x32x64xf32, #tpu.memory_space<vmem>>, %arg10: memref<2x64x32xf32, #tpu.memory_space<vmem>>, %arg11: memref<18x1x32xf32, #tpu.memory_space<vmem>>, %arg12: memref<2x1x64xf32, #tpu.memory_space<vmem>>, %arg13: memref<24x6xf32, #tpu.memory_space<vmem>>, %arg14: memref<24x32xf32, #tpu.memory_space<vmem>>, %arg15: memref<24x6xf32, #tpu.memory_space<vmem>>, %arg16: memref<6x24xf32, #tpu.memory_space<vmem>>, %arg17: memref<2x1x32xf32, #tpu.memory_space<vmem>>, %arg18: memref<32x15xf32, #tpu.memory_space<vmem>>, %arg19: memref<6x15xf32, #tpu.memory_space<vmem>>, %arg20: memref<15x5xf32, #tpu.memory_space<vmem>>, %arg21: memref<2x6xf32, #tpu.memory_space<vmem>>, %arg22: memref<1x5xf32, #tpu.memory_space<vmem>>, %arg23: memref<2x5xf32, #tpu.memory_space<vmem>>) attributes {dimension_semantics = [#tpu.dimension_semantics<arbitrary>], iteration_bounds = array<i64: 1>, scalar_prefetch = 0 : i64, scratch_operands = 0 : i64, tpu.core_type = #tpu.core_type<tc>, window_params = [{pipeline_mode = #tpu.pipeline_mode<synchronous>, transform_indices = @transform_0, window_bounds = array<i64: 2, 128>}, {pipeline_mode = #tpu.pipeline_mode<synchronous>, transform_indices = @transform_1, window_bounds = array<i64: 128, 256>}, {pipeline_mode = #tpu.pipeline_mode<synchronous>, transform_indices = @transform_2, window_bounds = array<i64: 1, 256>}, {pipeline_mode = #tpu.pipeline_mode<synchronous>, transform_indices = @transform_3, window_bounds = array<i64: 6, 2>}, {pipeline_mode = #tpu.pipeline_mode<synchronous>, transform_indices = @transform_4, window_bounds = array<i64: 6, 256>}, {pipeline_mode = #tpu.pipeline_mode<synchronous>, transform_indices = @transform_5, window_bounds = array<i64: 256, 32>}, {pipeline_mode = #tpu.pipeline_mode<synchronous>, transform_indices = @transform_6, window_bounds = array<i64: 1, 32>}, {pipeline_mode = #tpu.pipeline_mode<synchronous>, transform_indices = @transform_7, window_bounds = array<i64: 8, 32, 32>}, {pipeline_mode = #tpu.pipeline_mode<synchronous>, transform_indices = @transform_8, window_bounds = array<i64: 2, 32, 64>}, {pipeline_mode = #tpu.pipeline_mode<synchronous>, transform_indices = @transform_9, window_bounds = array<i64: 2, 64, 32>}, {pipeline_mode = #tpu.pipeline_mode<synchronous>, transform_indices = @transform_10, window_bounds = array<i64: 18, 1, 32>}, {pipeline_mode = #tpu.pipeline_mode<synchronous>, transform_indices = @transform_11, window_bounds = array<i64: 2, 1, 64>}, {pipeline_mode = #tpu.pipeline_mode<synchronous>, transform_indices = @transform_12, window_bounds = array<i64: 24, 6>}, {pipeline_mode = #tpu.pipeline_mode<synchronous>, transform_indices = @transform_13, window_bounds = array<i64: 24, 32>}, {pipeline_mode = #tpu.pipeline_mode<synchronous>, transform_indices = @transform_14, window_bounds = array<i64: 24, 6>}, {pipeline_mode = #tpu.pipeline_mode<synchronous>, transform_indices = @transform_15, window_bounds = array<i64: 6, 24>}, {pipeline_mode = #tpu.pipeline_mode<synchronous>, transform_indices = @transform_16, window_bounds = array<i64: 2, 1, 32>}, {pipeline_mode = #tpu.pipeline_mode<synchronous>, transform_indices = @transform_17, window_bounds = array<i64: 32, 15>}, {pipeline_mode = #tpu.pipeline_mode<synchronous>, transform_indices = @transform_18, window_bounds = array<i64: 6, 15>}, {pipeline_mode = #tpu.pipeline_mode<synchronous>, transform_indices = @transform_19, window_bounds = array<i64: 15, 5>}, {pipeline_mode = #tpu.pipeline_mode<synchronous>, transform_indices = @transform_20, window_bounds = array<i64: 2, 6>}, {pipeline_mode = #tpu.pipeline_mode<synchronous>, transform_indices = @transform_21, window_bounds = array<i64: 1, 5>}, {pipeline_mode = #tpu.pipeline_mode<synchronous>, transform_indices = @transform_22, window_bounds = array<i64: 2, 5>}]} {
    %c0 = arith.constant 0 : index
    %c0_0 = arith.constant 0 : index
    %0 = vector.load %arg1[%c0, %c0_0] : memref<2x128xf32, #tpu.memory_space<vmem>>, vector<2x128xf32>
    %c0_1 = arith.constant 0 : index
    %c0_2 = arith.constant 0 : index
    %1 = vector.load %arg2[%c0_1, %c0_2] : memref<128x256xf32, #tpu.memory_space<vmem>>, vector<128x256xf32>
    %cst = arith.constant dense<0.000000e+00> : vector<2x256xf32>
    %2 = tpu.matmul %0, %1, %cst {dimension_numbers = #tpu.dot_dimension_numbers<[1], [0], [0], [1], [0, 0, 1, 1], [], []>} : vector<2x128xf32>, vector<128x256xf32>, vector<2x256xf32> -> vector<2x256xf32>
    %c0_3 = arith.constant 0 : index
    %c0_4 = arith.constant 0 : index
    %3 = vector.load %arg3[%c0_3, %c0_4] : memref<1x256xf32, #tpu.memory_space<vmem>>, vector<1x256xf32>
    %4 = vector.broadcast %3 : vector<1x256xf32> to vector<2x256xf32>
    %5 = arith.addf %2, %4 : vector<2x256xf32>
    %cst_5 = arith.constant 0.000000e+00 : f32
    %6 = vector.broadcast %cst_5 : f32 to vector<2x256xf32>
    %7 = arith.cmpf ogt, %5, %6 : vector<2x256xf32>
    %cst_6 = arith.constant 0.000000e+00 : f32
    %8 = vector.broadcast %cst_6 : f32 to vector<2x256xf32>
    %9 = arith.minimumf %5, %8 : vector<2x256xf32>
    %10 = math.exp %9 : vector<2x256xf32>
    %cst_7 = arith.constant 1.000000e+00 : f32
    %11 = vector.broadcast %cst_7 : f32 to vector<2x256xf32>
    %12 = arith.subf %10, %11 : vector<2x256xf32>
    %13 = arith.select %7, %5, %12 : vector<2x256xi1>, vector<2x256xf32>
    %c0_8 = arith.constant 0 : index
    %c0_9 = arith.constant 0 : index
    %14 = vector.load %arg4[%c0_8, %c0_9] : memref<6x2xf32, #tpu.memory_space<vmem>>, vector<6x2xf32>
    %cst_10 = arith.constant dense<0.000000e+00> : vector<6x256xf32>
    %15 = tpu.matmul %14, %13, %cst_10 {dimension_numbers = #tpu.dot_dimension_numbers<[1], [0], [0], [1], [0, 0, 1, 1], [], []>} : vector<6x2xf32>, vector<2x256xf32>, vector<6x256xf32> -> vector<6x256xf32>
    %c0_11 = arith.constant 0 : index
    %c0_12 = arith.constant 0 : index
    %16 = vector.load %arg5[%c0_11, %c0_12] : memref<6x256xf32, #tpu.memory_space<vmem>>, vector<6x256xf32>
    %17 = arith.mulf %15, %16 : vector<6x256xf32>
    %c0_13 = arith.constant 0 : index
    %c0_14 = arith.constant 0 : index
    %18 = vector.load %arg6[%c0_13, %c0_14] : memref<256x32xf32, #tpu.memory_space<vmem>>, vector<256x32xf32>
    %cst_15 = arith.constant dense<0.000000e+00> : vector<6x32xf32>
    %19 = tpu.matmul %17, %18, %cst_15 {dimension_numbers = #tpu.dot_dimension_numbers<[1], [0], [0], [1], [0, 0, 1, 1], [], []>} : vector<6x256xf32>, vector<256x32xf32>, vector<6x32xf32> -> vector<6x32xf32>
    %c0_16 = arith.constant 0 : index
    %c0_17 = arith.constant 0 : index
    %20 = vector.load %arg7[%c0_16, %c0_17] : memref<1x32xf32, #tpu.memory_space<vmem>>, vector<1x32xf32>
    %21 = vector.broadcast %20 : vector<1x32xf32> to vector<6x32xf32>
    %22 = arith.addf %19, %21 : vector<6x32xf32>
    %c0_18 = arith.constant 0 : index
    %c0_19 = arith.constant 0 : index
    %23 = vector.load %arg14[%c0_18, %c0_19] : memref<24x32xf32, #tpu.memory_space<vmem>>, vector<24x32xf32>
    %c0_20 = arith.constant 0 : index
    %c0_21 = arith.constant 0 : index
    %24 = vector.load %arg15[%c0_20, %c0_21] : memref<24x6xf32, #tpu.memory_space<vmem>>, vector<24x6xf32>
    %c0_22 = arith.constant 0 : index
    %c0_23 = arith.constant 0 : index
    %25 = vector.load %arg13[%c0_22, %c0_23] : memref<24x6xf32, #tpu.memory_space<vmem>>, vector<24x6xf32>
    %c0_24 = arith.constant 0 : index
    %c0_25 = arith.constant 0 : index
    %26 = vector.load %arg16[%c0_24, %c0_25] : memref<6x24xf32, #tpu.memory_space<vmem>>, vector<6x24xf32>
    %c0_26 = arith.constant 0 : index
    %c0_27 = arith.constant 0 : index
    %c0_28 = arith.constant 0 : index
    %27 = vector.load %arg8[%c0_26, %c0_27, %c0_28] : memref<8x32x32xf32, #tpu.memory_space<vmem>>, vector<1x32x32xf32>
    %28 = vector.shape_cast %27 : vector<1x32x32xf32> to vector<32x32xf32>
    %cst_29 = arith.constant dense<0.000000e+00> : vector<6x32xf32>
    %29 = tpu.matmul %22, %28, %cst_29 {dimension_numbers = #tpu.dot_dimension_numbers<[1], [0], [0], [1], [0, 0, 1, 1], [], []>} : vector<6x32xf32>, vector<32x32xf32>, vector<6x32xf32> -> vector<6x32xf32>
    %c0_30 = arith.constant 0 : index
    %c0_31 = arith.constant 0 : index
    %c0_32 = arith.constant 0 : index
    %30 = vector.load %arg11[%c0_30, %c0_31, %c0_32] : memref<18x1x32xf32, #tpu.memory_space<vmem>>, vector<1x1x32xf32>
    %31 = vector.shape_cast %30 : vector<1x1x32xf32> to vector<1x32xf32>
    %32 = vector.broadcast %31 : vector<1x32xf32> to vector<6x32xf32>
    %33 = arith.addf %29, %32 : vector<6x32xf32>
    %c1 = arith.constant 1 : index
    %c0_33 = arith.constant 0 : index
    %c0_34 = arith.constant 0 : index
    %34 = vector.load %arg8[%c1, %c0_33, %c0_34] : memref<8x32x32xf32, #tpu.memory_space<vmem>>, vector<1x32x32xf32>
    %35 = vector.shape_cast %34 : vector<1x32x32xf32> to vector<32x32xf32>
    %cst_35 = arith.constant dense<0.000000e+00> : vector<6x32xf32>
    %36 = tpu.matmul %22, %35, %cst_35 {dimension_numbers = #tpu.dot_dimension_numbers<[1], [0], [0], [1], [0, 0, 1, 1], [], []>} : vector<6x32xf32>, vector<32x32xf32>, vector<6x32xf32> -> vector<6x32xf32>
    %c1_36 = arith.constant 1 : index
    %c0_37 = arith.constant 0 : index
    %c0_38 = arith.constant 0 : index
    %37 = vector.load %arg11[%c1_36, %c0_37, %c0_38] : memref<18x1x32xf32, #tpu.memory_space<vmem>>, vector<1x1x32xf32>
    %38 = vector.shape_cast %37 : vector<1x1x32xf32> to vector<1x32xf32>
    %39 = vector.broadcast %38 : vector<1x32xf32> to vector<6x32xf32>
    %40 = arith.addf %36, %39 : vector<6x32xf32>
    %c2 = arith.constant 2 : index
    %c0_39 = arith.constant 0 : index
    %c0_40 = arith.constant 0 : index
    %41 = vector.load %arg8[%c2, %c0_39, %c0_40] : memref<8x32x32xf32, #tpu.memory_space<vmem>>, vector<1x32x32xf32>
    %42 = vector.shape_cast %41 : vector<1x32x32xf32> to vector<32x32xf32>
    %cst_41 = arith.constant dense<0.000000e+00> : vector<6x32xf32>
    %43 = tpu.matmul %22, %42, %cst_41 {dimension_numbers = #tpu.dot_dimension_numbers<[1], [0], [0], [1], [0, 0, 1, 1], [], []>} : vector<6x32xf32>, vector<32x32xf32>, vector<6x32xf32> -> vector<6x32xf32>
    %c2_42 = arith.constant 2 : index
    %c0_43 = arith.constant 0 : index
    %c0_44 = arith.constant 0 : index
    %44 = vector.load %arg11[%c2_42, %c0_43, %c0_44] : memref<18x1x32xf32, #tpu.memory_space<vmem>>, vector<1x1x32xf32>
    %45 = vector.shape_cast %44 : vector<1x1x32xf32> to vector<1x32xf32>
    %46 = vector.broadcast %45 : vector<1x32xf32> to vector<6x32xf32>
    %47 = arith.addf %43, %46 : vector<6x32xf32>
    %cst_45 = arith.constant dense<0.000000e+00> : vector<24x32xf32>
    %48 = tpu.matmul %25, %33, %cst_45 {dimension_numbers = #tpu.dot_dimension_numbers<[1], [0], [0], [1], [0, 0, 1, 1], [], []>} : vector<24x6xf32>, vector<6x32xf32>, vector<24x32xf32> -> vector<24x32xf32>
    %49 = arith.mulf %48, %23 : vector<24x32xf32>
    %cst_46 = arith.constant dense<0.000000e+00> : vector<24x6xf32>
    %50 = tpu.matmul %49, %40, %cst_46 {dimension_numbers = #tpu.dot_dimension_numbers<[1], [1], [0], [0], [0, 0, 1, 0], [], []>} : vector<24x32xf32>, vector<6x32xf32>, vector<24x6xf32> -> vector<24x6xf32>
    %51 = arith.addf %50, %24 : vector<24x6xf32>
    %cst_47 = arith.constant dense<0xFF800000> : vector<24xf32>
    %52 = vector.multi_reduction <maximumf>, %51, %cst_47 [1] : vector<24x6xf32> to vector<24xf32>
    %53 = vector.shape_cast %52 : vector<24xf32> to vector<24x1xf32>
    %54 = vector.broadcast %53 : vector<24x1xf32> to vector<24x6xf32>
    %55 = arith.subf %51, %54 : vector<24x6xf32>
    %56 = math.exp %55 : vector<24x6xf32>
    %cst_48 = arith.constant dense<0.000000e+00> : vector<24xf32>
    %57 = vector.multi_reduction <add>, %56, %cst_48 [1] : vector<24x6xf32> to vector<24xf32>
    %58 = vector.shape_cast %57 : vector<24xf32> to vector<24x1xf32>
    %59 = tpu.reciprocal %58 {approx = true} : vector<24x1xf32> -> vector<24x1xf32>
    %60 = vector.broadcast %59 : vector<24x1xf32> to vector<24x6xf32>
    %61 = arith.mulf %56, %60 : vector<24x6xf32>
    %cst_49 = arith.constant dense<0.000000e+00> : vector<24x32xf32>
    %62 = tpu.matmul %61, %47, %cst_49 {dimension_numbers = #tpu.dot_dimension_numbers<[1], [0], [0], [1], [0, 0, 1, 1], [], []>} : vector<24x6xf32>, vector<6x32xf32>, vector<24x32xf32> -> vector<24x32xf32>
    %63 = arith.mulf %62, %23 : vector<24x32xf32>
    %cst_50 = arith.constant dense<0.000000e+00> : vector<6x32xf32>
    %64 = tpu.matmul %26, %63, %cst_50 {dimension_numbers = #tpu.dot_dimension_numbers<[1], [0], [0], [1], [0, 0, 1, 1], [], []>} : vector<6x24xf32>, vector<24x32xf32>, vector<6x32xf32> -> vector<6x32xf32>
    %c3 = arith.constant 3 : index
    %c0_51 = arith.constant 0 : index
    %c0_52 = arith.constant 0 : index
    %65 = vector.load %arg8[%c3, %c0_51, %c0_52] : memref<8x32x32xf32, #tpu.memory_space<vmem>>, vector<1x32x32xf32>
    %66 = vector.shape_cast %65 : vector<1x32x32xf32> to vector<32x32xf32>
    %cst_53 = arith.constant dense<0.000000e+00> : vector<6x32xf32>
    %67 = tpu.matmul %64, %66, %cst_53 {dimension_numbers = #tpu.dot_dimension_numbers<[1], [0], [0], [1], [0, 0, 1, 1], [], []>} : vector<6x32xf32>, vector<32x32xf32>, vector<6x32xf32> -> vector<6x32xf32>
    %c3_54 = arith.constant 3 : index
    %c0_55 = arith.constant 0 : index
    %c0_56 = arith.constant 0 : index
    %68 = vector.load %arg11[%c3_54, %c0_55, %c0_56] : memref<18x1x32xf32, #tpu.memory_space<vmem>>, vector<1x1x32xf32>
    %69 = vector.shape_cast %68 : vector<1x1x32xf32> to vector<1x32xf32>
    %70 = vector.broadcast %69 : vector<1x32xf32> to vector<6x32xf32>
    %71 = arith.addf %67, %70 : vector<6x32xf32>
    %72 = arith.addf %22, %71 : vector<6x32xf32>
    %c4 = arith.constant 4 : index
    %c0_57 = arith.constant 0 : index
    %c0_58 = arith.constant 0 : index
    %73 = vector.load %arg11[%c4, %c0_57, %c0_58] : memref<18x1x32xf32, #tpu.memory_space<vmem>>, vector<1x1x32xf32>
    %74 = vector.shape_cast %73 : vector<1x1x32xf32> to vector<1x32xf32>
    %c5 = arith.constant 5 : index
    %c0_59 = arith.constant 0 : index
    %c0_60 = arith.constant 0 : index
    %75 = vector.load %arg11[%c5, %c0_59, %c0_60] : memref<18x1x32xf32, #tpu.memory_space<vmem>>, vector<1x1x32xf32>
    %76 = vector.shape_cast %75 : vector<1x1x32xf32> to vector<1x32xf32>
    %cst_61 = arith.constant dense<0.000000e+00> : vector<6xf32>
    %77 = vector.multi_reduction <add>, %72, %cst_61 [1] : vector<6x32xf32> to vector<6xf32>
    %78 = vector.shape_cast %77 : vector<6xf32> to vector<6x1xf32>
    %cst_62 = arith.constant 3.200000e+01 : f32
    %79 = vector.broadcast %cst_62 : f32 to vector<6x1xf32>
    %80 = arith.divf %78, %79 : vector<6x1xf32>
    %81 = vector.broadcast %80 : vector<6x1xf32> to vector<6x32xf32>
    %82 = arith.subf %72, %81 : vector<6x32xf32>
    %83 = arith.mulf %82, %82 : vector<6x32xf32>
    %cst_63 = arith.constant dense<0.000000e+00> : vector<6xf32>
    %84 = vector.multi_reduction <add>, %83, %cst_63 [1] : vector<6x32xf32> to vector<6xf32>
    %85 = vector.shape_cast %84 : vector<6xf32> to vector<6x1xf32>
    %cst_64 = arith.constant 3.200000e+01 : f32
    %86 = vector.broadcast %cst_64 : f32 to vector<6x1xf32>
    %87 = arith.divf %85, %86 : vector<6x1xf32>
    %cst_65 = arith.constant 9.99999974E-6 : f32
    %88 = vector.broadcast %cst_65 : f32 to vector<6x1xf32>
    %89 = arith.addf %87, %88 : vector<6x1xf32>
    %90 = math.rsqrt %89 : vector<6x1xf32>
    %91 = vector.broadcast %90 : vector<6x1xf32> to vector<6x32xf32>
    %92 = arith.mulf %82, %91 : vector<6x32xf32>
    %93 = vector.broadcast %74 : vector<1x32xf32> to vector<6x32xf32>
    %94 = arith.mulf %92, %93 : vector<6x32xf32>
    %95 = vector.broadcast %76 : vector<1x32xf32> to vector<6x32xf32>
    %96 = arith.addf %94, %95 : vector<6x32xf32>
    %c0_66 = arith.constant 0 : index
    %c0_67 = arith.constant 0 : index
    %c0_68 = arith.constant 0 : index
    %97 = vector.load %arg9[%c0_66, %c0_67, %c0_68] : memref<2x32x64xf32, #tpu.memory_space<vmem>>, vector<1x32x64xf32>
    %98 = vector.shape_cast %97 : vector<1x32x64xf32> to vector<32x64xf32>
    %cst_69 = arith.constant dense<0.000000e+00> : vector<6x64xf32>
    %99 = tpu.matmul %96, %98, %cst_69 {dimension_numbers = #tpu.dot_dimension_numbers<[1], [0], [0], [1], [0, 0, 1, 1], [], []>} : vector<6x32xf32>, vector<32x64xf32>, vector<6x64xf32> -> vector<6x64xf32>
    %c0_70 = arith.constant 0 : index
    %c0_71 = arith.constant 0 : index
    %c0_72 = arith.constant 0 : index
    %100 = vector.load %arg12[%c0_70, %c0_71, %c0_72] : memref<2x1x64xf32, #tpu.memory_space<vmem>>, vector<1x1x64xf32>
    %101 = vector.shape_cast %100 : vector<1x1x64xf32> to vector<1x64xf32>
    %102 = vector.broadcast %101 : vector<1x64xf32> to vector<6x64xf32>
    %103 = arith.addf %99, %102 : vector<6x64xf32>
    %cst_73 = arith.constant 5.000000e-01 : f32
    %104 = vector.broadcast %cst_73 : f32 to vector<6x64xf32>
    %105 = arith.mulf %104, %103 : vector<6x64xf32>
    %cst_74 = arith.constant 0.707106769 : f32
    %106 = vector.broadcast %cst_74 : f32 to vector<6x64xf32>
    %107 = arith.mulf %103, %106 : vector<6x64xf32>
    %cst_75 = arith.constant 0.000000e+00 : f32
    %108 = vector.broadcast %cst_75 : f32 to vector<6x64xf32>
    %109 = arith.cmpf oge, %107, %108 : vector<6x64xf32>
    %cst_76 = arith.constant 1.000000e+00 : f32
    %cst_77 = arith.constant -1.000000e+00 : f32
    %110 = vector.broadcast %cst_76 : f32 to vector<6x64xf32>
    %111 = vector.broadcast %cst_77 : f32 to vector<6x64xf32>
    %112 = arith.select %109, %110, %111 : vector<6x64xi1>, vector<6x64xf32>
    %113 = math.absf %107 : vector<6x64xf32>
    %cst_78 = arith.constant 0.327591091 : f32
    %114 = vector.broadcast %cst_78 : f32 to vector<6x64xf32>
    %115 = arith.mulf %114, %113 : vector<6x64xf32>
    %cst_79 = arith.constant 1.000000e+00 : f32
    %116 = vector.broadcast %cst_79 : f32 to vector<6x64xf32>
    %117 = arith.addf %116, %115 : vector<6x64xf32>
    %cst_80 = arith.constant 1.000000e+00 : f32
    %118 = vector.broadcast %cst_80 : f32 to vector<6x64xf32>
    %119 = arith.divf %118, %117 : vector<6x64xf32>
    %cst_81 = arith.constant 1.06140542 : f32
    %120 = vector.broadcast %cst_81 : f32 to vector<6x64xf32>
    %121 = arith.mulf %120, %119 : vector<6x64xf32>
    %cst_82 = arith.constant -1.45315206 : f32
    %122 = vector.broadcast %cst_82 : f32 to vector<6x64xf32>
    %123 = arith.addf %121, %122 : vector<6x64xf32>
    %124 = arith.mulf %123, %119 : vector<6x64xf32>
    %cst_83 = arith.constant 1.42141378 : f32
    %125 = vector.broadcast %cst_83 : f32 to vector<6x64xf32>
    %126 = arith.addf %124, %125 : vector<6x64xf32>
    %127 = arith.mulf %126, %119 : vector<6x64xf32>
    %cst_84 = arith.constant -0.284496725 : f32
    %128 = vector.broadcast %cst_84 : f32 to vector<6x64xf32>
    %129 = arith.addf %127, %128 : vector<6x64xf32>
    %130 = arith.mulf %129, %119 : vector<6x64xf32>
    %cst_85 = arith.constant 0.254829586 : f32
    %131 = vector.broadcast %cst_85 : f32 to vector<6x64xf32>
    %132 = arith.addf %130, %131 : vector<6x64xf32>
    %133 = arith.mulf %132, %119 : vector<6x64xf32>
    %cst_86 = arith.constant 0.000000e+00 : f32
    %134 = vector.broadcast %cst_86 : f32 to vector<6x64xf32>
    %135 = arith.subf %134, %113 : vector<6x64xf32>
    %136 = arith.mulf %135, %113 : vector<6x64xf32>
    %137 = math.exp %136 : vector<6x64xf32>
    %138 = arith.mulf %133, %137 : vector<6x64xf32>
    %cst_87 = arith.constant 1.000000e+00 : f32
    %139 = vector.broadcast %cst_87 : f32 to vector<6x64xf32>
    %140 = arith.subf %139, %138 : vector<6x64xf32>
    %141 = arith.mulf %112, %140 : vector<6x64xf32>
    %cst_88 = arith.constant 1.000000e+00 : f32
    %142 = vector.broadcast %cst_88 : f32 to vector<6x64xf32>
    %143 = arith.addf %142, %141 : vector<6x64xf32>
    %144 = arith.mulf %105, %143 : vector<6x64xf32>
    %c0_89 = arith.constant 0 : index
    %c0_90 = arith.constant 0 : index
    %c0_91 = arith.constant 0 : index
    %145 = vector.load %arg10[%c0_89, %c0_90, %c0_91] : memref<2x64x32xf32, #tpu.memory_space<vmem>>, vector<1x64x32xf32>
    %146 = vector.shape_cast %145 : vector<1x64x32xf32> to vector<64x32xf32>
    %cst_92 = arith.constant dense<0.000000e+00> : vector<6x32xf32>
    %147 = tpu.matmul %144, %146, %cst_92 {dimension_numbers = #tpu.dot_dimension_numbers<[1], [0], [0], [1], [0, 0, 1, 1], [], []>} : vector<6x64xf32>, vector<64x32xf32>, vector<6x32xf32> -> vector<6x32xf32>
    %c6 = arith.constant 6 : index
    %c0_93 = arith.constant 0 : index
    %c0_94 = arith.constant 0 : index
    %148 = vector.load %arg11[%c6, %c0_93, %c0_94] : memref<18x1x32xf32, #tpu.memory_space<vmem>>, vector<1x1x32xf32>
    %149 = vector.shape_cast %148 : vector<1x1x32xf32> to vector<1x32xf32>
    %150 = vector.broadcast %149 : vector<1x32xf32> to vector<6x32xf32>
    %151 = arith.addf %147, %150 : vector<6x32xf32>
    %152 = arith.addf %96, %151 : vector<6x32xf32>
    %c7 = arith.constant 7 : index
    %c0_95 = arith.constant 0 : index
    %c0_96 = arith.constant 0 : index
    %153 = vector.load %arg11[%c7, %c0_95, %c0_96] : memref<18x1x32xf32, #tpu.memory_space<vmem>>, vector<1x1x32xf32>
    %154 = vector.shape_cast %153 : vector<1x1x32xf32> to vector<1x32xf32>
    %c8 = arith.constant 8 : index
    %c0_97 = arith.constant 0 : index
    %c0_98 = arith.constant 0 : index
    %155 = vector.load %arg11[%c8, %c0_97, %c0_98] : memref<18x1x32xf32, #tpu.memory_space<vmem>>, vector<1x1x32xf32>
    %156 = vector.shape_cast %155 : vector<1x1x32xf32> to vector<1x32xf32>
    %cst_99 = arith.constant dense<0.000000e+00> : vector<6xf32>
    %157 = vector.multi_reduction <add>, %152, %cst_99 [1] : vector<6x32xf32> to vector<6xf32>
    %158 = vector.shape_cast %157 : vector<6xf32> to vector<6x1xf32>
    %cst_100 = arith.constant 3.200000e+01 : f32
    %159 = vector.broadcast %cst_100 : f32 to vector<6x1xf32>
    %160 = arith.divf %158, %159 : vector<6x1xf32>
    %161 = vector.broadcast %160 : vector<6x1xf32> to vector<6x32xf32>
    %162 = arith.subf %152, %161 : vector<6x32xf32>
    %163 = arith.mulf %162, %162 : vector<6x32xf32>
    %cst_101 = arith.constant dense<0.000000e+00> : vector<6xf32>
    %164 = vector.multi_reduction <add>, %163, %cst_101 [1] : vector<6x32xf32> to vector<6xf32>
    %165 = vector.shape_cast %164 : vector<6xf32> to vector<6x1xf32>
    %cst_102 = arith.constant 3.200000e+01 : f32
    %166 = vector.broadcast %cst_102 : f32 to vector<6x1xf32>
    %167 = arith.divf %165, %166 : vector<6x1xf32>
    %cst_103 = arith.constant 9.99999974E-6 : f32
    %168 = vector.broadcast %cst_103 : f32 to vector<6x1xf32>
    %169 = arith.addf %167, %168 : vector<6x1xf32>
    %170 = math.rsqrt %169 : vector<6x1xf32>
    %171 = vector.broadcast %170 : vector<6x1xf32> to vector<6x32xf32>
    %172 = arith.mulf %162, %171 : vector<6x32xf32>
    %173 = vector.broadcast %154 : vector<1x32xf32> to vector<6x32xf32>
    %174 = arith.mulf %172, %173 : vector<6x32xf32>
    %175 = vector.broadcast %156 : vector<1x32xf32> to vector<6x32xf32>
    %176 = arith.addf %174, %175 : vector<6x32xf32>
    %c4_104 = arith.constant 4 : index
    %c0_105 = arith.constant 0 : index
    %c0_106 = arith.constant 0 : index
    %177 = vector.load %arg8[%c4_104, %c0_105, %c0_106] : memref<8x32x32xf32, #tpu.memory_space<vmem>>, vector<1x32x32xf32>
    %178 = vector.shape_cast %177 : vector<1x32x32xf32> to vector<32x32xf32>
    %cst_107 = arith.constant dense<0.000000e+00> : vector<6x32xf32>
    %179 = tpu.matmul %176, %178, %cst_107 {dimension_numbers = #tpu.dot_dimension_numbers<[1], [0], [0], [1], [0, 0, 1, 1], [], []>} : vector<6x32xf32>, vector<32x32xf32>, vector<6x32xf32> -> vector<6x32xf32>
    %c9 = arith.constant 9 : index
    %c0_108 = arith.constant 0 : index
    %c0_109 = arith.constant 0 : index
    %180 = vector.load %arg11[%c9, %c0_108, %c0_109] : memref<18x1x32xf32, #tpu.memory_space<vmem>>, vector<1x1x32xf32>
    %181 = vector.shape_cast %180 : vector<1x1x32xf32> to vector<1x32xf32>
    %182 = vector.broadcast %181 : vector<1x32xf32> to vector<6x32xf32>
    %183 = arith.addf %179, %182 : vector<6x32xf32>
    %c5_110 = arith.constant 5 : index
    %c0_111 = arith.constant 0 : index
    %c0_112 = arith.constant 0 : index
    %184 = vector.load %arg8[%c5_110, %c0_111, %c0_112] : memref<8x32x32xf32, #tpu.memory_space<vmem>>, vector<1x32x32xf32>
    %185 = vector.shape_cast %184 : vector<1x32x32xf32> to vector<32x32xf32>
    %cst_113 = arith.constant dense<0.000000e+00> : vector<6x32xf32>
    %186 = tpu.matmul %176, %185, %cst_113 {dimension_numbers = #tpu.dot_dimension_numbers<[1], [0], [0], [1], [0, 0, 1, 1], [], []>} : vector<6x32xf32>, vector<32x32xf32>, vector<6x32xf32> -> vector<6x32xf32>
    %c10 = arith.constant 10 : index
    %c0_114 = arith.constant 0 : index
    %c0_115 = arith.constant 0 : index
    %187 = vector.load %arg11[%c10, %c0_114, %c0_115] : memref<18x1x32xf32, #tpu.memory_space<vmem>>, vector<1x1x32xf32>
    %188 = vector.shape_cast %187 : vector<1x1x32xf32> to vector<1x32xf32>
    %189 = vector.broadcast %188 : vector<1x32xf32> to vector<6x32xf32>
    %190 = arith.addf %186, %189 : vector<6x32xf32>
    %c6_116 = arith.constant 6 : index
    %c0_117 = arith.constant 0 : index
    %c0_118 = arith.constant 0 : index
    %191 = vector.load %arg8[%c6_116, %c0_117, %c0_118] : memref<8x32x32xf32, #tpu.memory_space<vmem>>, vector<1x32x32xf32>
    %192 = vector.shape_cast %191 : vector<1x32x32xf32> to vector<32x32xf32>
    %cst_119 = arith.constant dense<0.000000e+00> : vector<6x32xf32>
    %193 = tpu.matmul %176, %192, %cst_119 {dimension_numbers = #tpu.dot_dimension_numbers<[1], [0], [0], [1], [0, 0, 1, 1], [], []>} : vector<6x32xf32>, vector<32x32xf32>, vector<6x32xf32> -> vector<6x32xf32>
    %c11 = arith.constant 11 : index
    %c0_120 = arith.constant 0 : index
    %c0_121 = arith.constant 0 : index
    %194 = vector.load %arg11[%c11, %c0_120, %c0_121] : memref<18x1x32xf32, #tpu.memory_space<vmem>>, vector<1x1x32xf32>
    %195 = vector.shape_cast %194 : vector<1x1x32xf32> to vector<1x32xf32>
    %196 = vector.broadcast %195 : vector<1x32xf32> to vector<6x32xf32>
    %197 = arith.addf %193, %196 : vector<6x32xf32>
    %cst_122 = arith.constant dense<0.000000e+00> : vector<24x32xf32>
    %198 = tpu.matmul %25, %183, %cst_122 {dimension_numbers = #tpu.dot_dimension_numbers<[1], [0], [0], [1], [0, 0, 1, 1], [], []>} : vector<24x6xf32>, vector<6x32xf32>, vector<24x32xf32> -> vector<24x32xf32>
    %199 = arith.mulf %198, %23 : vector<24x32xf32>
    %cst_123 = arith.constant dense<0.000000e+00> : vector<24x6xf32>
    %200 = tpu.matmul %199, %190, %cst_123 {dimension_numbers = #tpu.dot_dimension_numbers<[1], [1], [0], [0], [0, 0, 1, 0], [], []>} : vector<24x32xf32>, vector<6x32xf32>, vector<24x6xf32> -> vector<24x6xf32>
    %201 = arith.addf %200, %24 : vector<24x6xf32>
    %cst_124 = arith.constant dense<0xFF800000> : vector<24xf32>
    %202 = vector.multi_reduction <maximumf>, %201, %cst_124 [1] : vector<24x6xf32> to vector<24xf32>
    %203 = vector.shape_cast %202 : vector<24xf32> to vector<24x1xf32>
    %204 = vector.broadcast %203 : vector<24x1xf32> to vector<24x6xf32>
    %205 = arith.subf %201, %204 : vector<24x6xf32>
    %206 = math.exp %205 : vector<24x6xf32>
    %cst_125 = arith.constant dense<0.000000e+00> : vector<24xf32>
    %207 = vector.multi_reduction <add>, %206, %cst_125 [1] : vector<24x6xf32> to vector<24xf32>
    %208 = vector.shape_cast %207 : vector<24xf32> to vector<24x1xf32>
    %209 = tpu.reciprocal %208 {approx = true} : vector<24x1xf32> -> vector<24x1xf32>
    %210 = vector.broadcast %209 : vector<24x1xf32> to vector<24x6xf32>
    %211 = arith.mulf %206, %210 : vector<24x6xf32>
    %cst_126 = arith.constant dense<0.000000e+00> : vector<24x32xf32>
    %212 = tpu.matmul %211, %197, %cst_126 {dimension_numbers = #tpu.dot_dimension_numbers<[1], [0], [0], [1], [0, 0, 1, 1], [], []>} : vector<24x6xf32>, vector<6x32xf32>, vector<24x32xf32> -> vector<24x32xf32>
    %213 = arith.mulf %212, %23 : vector<24x32xf32>
    %cst_127 = arith.constant dense<0.000000e+00> : vector<6x32xf32>
    %214 = tpu.matmul %26, %213, %cst_127 {dimension_numbers = #tpu.dot_dimension_numbers<[1], [0], [0], [1], [0, 0, 1, 1], [], []>} : vector<6x24xf32>, vector<24x32xf32>, vector<6x32xf32> -> vector<6x32xf32>
    %c7_128 = arith.constant 7 : index
    %c0_129 = arith.constant 0 : index
    %c0_130 = arith.constant 0 : index
    %215 = vector.load %arg8[%c7_128, %c0_129, %c0_130] : memref<8x32x32xf32, #tpu.memory_space<vmem>>, vector<1x32x32xf32>
    %216 = vector.shape_cast %215 : vector<1x32x32xf32> to vector<32x32xf32>
    %cst_131 = arith.constant dense<0.000000e+00> : vector<6x32xf32>
    %217 = tpu.matmul %214, %216, %cst_131 {dimension_numbers = #tpu.dot_dimension_numbers<[1], [0], [0], [1], [0, 0, 1, 1], [], []>} : vector<6x32xf32>, vector<32x32xf32>, vector<6x32xf32> -> vector<6x32xf32>
    %c12 = arith.constant 12 : index
    %c0_132 = arith.constant 0 : index
    %c0_133 = arith.constant 0 : index
    %218 = vector.load %arg11[%c12, %c0_132, %c0_133] : memref<18x1x32xf32, #tpu.memory_space<vmem>>, vector<1x1x32xf32>
    %219 = vector.shape_cast %218 : vector<1x1x32xf32> to vector<1x32xf32>
    %220 = vector.broadcast %219 : vector<1x32xf32> to vector<6x32xf32>
    %221 = arith.addf %217, %220 : vector<6x32xf32>
    %222 = arith.addf %176, %221 : vector<6x32xf32>
    %c13 = arith.constant 13 : index
    %c0_134 = arith.constant 0 : index
    %c0_135 = arith.constant 0 : index
    %223 = vector.load %arg11[%c13, %c0_134, %c0_135] : memref<18x1x32xf32, #tpu.memory_space<vmem>>, vector<1x1x32xf32>
    %224 = vector.shape_cast %223 : vector<1x1x32xf32> to vector<1x32xf32>
    %c14 = arith.constant 14 : index
    %c0_136 = arith.constant 0 : index
    %c0_137 = arith.constant 0 : index
    %225 = vector.load %arg11[%c14, %c0_136, %c0_137] : memref<18x1x32xf32, #tpu.memory_space<vmem>>, vector<1x1x32xf32>
    %226 = vector.shape_cast %225 : vector<1x1x32xf32> to vector<1x32xf32>
    %cst_138 = arith.constant dense<0.000000e+00> : vector<6xf32>
    %227 = vector.multi_reduction <add>, %222, %cst_138 [1] : vector<6x32xf32> to vector<6xf32>
    %228 = vector.shape_cast %227 : vector<6xf32> to vector<6x1xf32>
    %cst_139 = arith.constant 3.200000e+01 : f32
    %229 = vector.broadcast %cst_139 : f32 to vector<6x1xf32>
    %230 = arith.divf %228, %229 : vector<6x1xf32>
    %231 = vector.broadcast %230 : vector<6x1xf32> to vector<6x32xf32>
    %232 = arith.subf %222, %231 : vector<6x32xf32>
    %233 = arith.mulf %232, %232 : vector<6x32xf32>
    %cst_140 = arith.constant dense<0.000000e+00> : vector<6xf32>
    %234 = vector.multi_reduction <add>, %233, %cst_140 [1] : vector<6x32xf32> to vector<6xf32>
    %235 = vector.shape_cast %234 : vector<6xf32> to vector<6x1xf32>
    %cst_141 = arith.constant 3.200000e+01 : f32
    %236 = vector.broadcast %cst_141 : f32 to vector<6x1xf32>
    %237 = arith.divf %235, %236 : vector<6x1xf32>
    %cst_142 = arith.constant 9.99999974E-6 : f32
    %238 = vector.broadcast %cst_142 : f32 to vector<6x1xf32>
    %239 = arith.addf %237, %238 : vector<6x1xf32>
    %240 = math.rsqrt %239 : vector<6x1xf32>
    %241 = vector.broadcast %240 : vector<6x1xf32> to vector<6x32xf32>
    %242 = arith.mulf %232, %241 : vector<6x32xf32>
    %243 = vector.broadcast %224 : vector<1x32xf32> to vector<6x32xf32>
    %244 = arith.mulf %242, %243 : vector<6x32xf32>
    %245 = vector.broadcast %226 : vector<1x32xf32> to vector<6x32xf32>
    %246 = arith.addf %244, %245 : vector<6x32xf32>
    %c1_143 = arith.constant 1 : index
    %c0_144 = arith.constant 0 : index
    %c0_145 = arith.constant 0 : index
    %247 = vector.load %arg9[%c1_143, %c0_144, %c0_145] : memref<2x32x64xf32, #tpu.memory_space<vmem>>, vector<1x32x64xf32>
    %248 = vector.shape_cast %247 : vector<1x32x64xf32> to vector<32x64xf32>
    %cst_146 = arith.constant dense<0.000000e+00> : vector<6x64xf32>
    %249 = tpu.matmul %246, %248, %cst_146 {dimension_numbers = #tpu.dot_dimension_numbers<[1], [0], [0], [1], [0, 0, 1, 1], [], []>} : vector<6x32xf32>, vector<32x64xf32>, vector<6x64xf32> -> vector<6x64xf32>
    %c1_147 = arith.constant 1 : index
    %c0_148 = arith.constant 0 : index
    %c0_149 = arith.constant 0 : index
    %250 = vector.load %arg12[%c1_147, %c0_148, %c0_149] : memref<2x1x64xf32, #tpu.memory_space<vmem>>, vector<1x1x64xf32>
    %251 = vector.shape_cast %250 : vector<1x1x64xf32> to vector<1x64xf32>
    %252 = vector.broadcast %251 : vector<1x64xf32> to vector<6x64xf32>
    %253 = arith.addf %249, %252 : vector<6x64xf32>
    %cst_150 = arith.constant 5.000000e-01 : f32
    %254 = vector.broadcast %cst_150 : f32 to vector<6x64xf32>
    %255 = arith.mulf %254, %253 : vector<6x64xf32>
    %cst_151 = arith.constant 0.707106769 : f32
    %256 = vector.broadcast %cst_151 : f32 to vector<6x64xf32>
    %257 = arith.mulf %253, %256 : vector<6x64xf32>
    %cst_152 = arith.constant 0.000000e+00 : f32
    %258 = vector.broadcast %cst_152 : f32 to vector<6x64xf32>
    %259 = arith.cmpf oge, %257, %258 : vector<6x64xf32>
    %cst_153 = arith.constant 1.000000e+00 : f32
    %cst_154 = arith.constant -1.000000e+00 : f32
    %260 = vector.broadcast %cst_153 : f32 to vector<6x64xf32>
    %261 = vector.broadcast %cst_154 : f32 to vector<6x64xf32>
    %262 = arith.select %259, %260, %261 : vector<6x64xi1>, vector<6x64xf32>
    %263 = math.absf %257 : vector<6x64xf32>
    %cst_155 = arith.constant 0.327591091 : f32
    %264 = vector.broadcast %cst_155 : f32 to vector<6x64xf32>
    %265 = arith.mulf %264, %263 : vector<6x64xf32>
    %cst_156 = arith.constant 1.000000e+00 : f32
    %266 = vector.broadcast %cst_156 : f32 to vector<6x64xf32>
    %267 = arith.addf %266, %265 : vector<6x64xf32>
    %cst_157 = arith.constant 1.000000e+00 : f32
    %268 = vector.broadcast %cst_157 : f32 to vector<6x64xf32>
    %269 = arith.divf %268, %267 : vector<6x64xf32>
    %cst_158 = arith.constant 1.06140542 : f32
    %270 = vector.broadcast %cst_158 : f32 to vector<6x64xf32>
    %271 = arith.mulf %270, %269 : vector<6x64xf32>
    %cst_159 = arith.constant -1.45315206 : f32
    %272 = vector.broadcast %cst_159 : f32 to vector<6x64xf32>
    %273 = arith.addf %271, %272 : vector<6x64xf32>
    %274 = arith.mulf %273, %269 : vector<6x64xf32>
    %cst_160 = arith.constant 1.42141378 : f32
    %275 = vector.broadcast %cst_160 : f32 to vector<6x64xf32>
    %276 = arith.addf %274, %275 : vector<6x64xf32>
    %277 = arith.mulf %276, %269 : vector<6x64xf32>
    %cst_161 = arith.constant -0.284496725 : f32
    %278 = vector.broadcast %cst_161 : f32 to vector<6x64xf32>
    %279 = arith.addf %277, %278 : vector<6x64xf32>
    %280 = arith.mulf %279, %269 : vector<6x64xf32>
    %cst_162 = arith.constant 0.254829586 : f32
    %281 = vector.broadcast %cst_162 : f32 to vector<6x64xf32>
    %282 = arith.addf %280, %281 : vector<6x64xf32>
    %283 = arith.mulf %282, %269 : vector<6x64xf32>
    %cst_163 = arith.constant 0.000000e+00 : f32
    %284 = vector.broadcast %cst_163 : f32 to vector<6x64xf32>
    %285 = arith.subf %284, %263 : vector<6x64xf32>
    %286 = arith.mulf %285, %263 : vector<6x64xf32>
    %287 = math.exp %286 : vector<6x64xf32>
    %288 = arith.mulf %283, %287 : vector<6x64xf32>
    %cst_164 = arith.constant 1.000000e+00 : f32
    %289 = vector.broadcast %cst_164 : f32 to vector<6x64xf32>
    %290 = arith.subf %289, %288 : vector<6x64xf32>
    %291 = arith.mulf %262, %290 : vector<6x64xf32>
    %cst_165 = arith.constant 1.000000e+00 : f32
    %292 = vector.broadcast %cst_165 : f32 to vector<6x64xf32>
    %293 = arith.addf %292, %291 : vector<6x64xf32>
    %294 = arith.mulf %255, %293 : vector<6x64xf32>
    %c1_166 = arith.constant 1 : index
    %c0_167 = arith.constant 0 : index
    %c0_168 = arith.constant 0 : index
    %295 = vector.load %arg10[%c1_166, %c0_167, %c0_168] : memref<2x64x32xf32, #tpu.memory_space<vmem>>, vector<1x64x32xf32>
    %296 = vector.shape_cast %295 : vector<1x64x32xf32> to vector<64x32xf32>
    %cst_169 = arith.constant dense<0.000000e+00> : vector<6x32xf32>
    %297 = tpu.matmul %294, %296, %cst_169 {dimension_numbers = #tpu.dot_dimension_numbers<[1], [0], [0], [1], [0, 0, 1, 1], [], []>} : vector<6x64xf32>, vector<64x32xf32>, vector<6x32xf32> -> vector<6x32xf32>
    %c15 = arith.constant 15 : index
    %c0_170 = arith.constant 0 : index
    %c0_171 = arith.constant 0 : index
    %298 = vector.load %arg11[%c15, %c0_170, %c0_171] : memref<18x1x32xf32, #tpu.memory_space<vmem>>, vector<1x1x32xf32>
    %299 = vector.shape_cast %298 : vector<1x1x32xf32> to vector<1x32xf32>
    %300 = vector.broadcast %299 : vector<1x32xf32> to vector<6x32xf32>
    %301 = arith.addf %297, %300 : vector<6x32xf32>
    %302 = arith.addf %246, %301 : vector<6x32xf32>
    %c16 = arith.constant 16 : index
    %c0_172 = arith.constant 0 : index
    %c0_173 = arith.constant 0 : index
    %303 = vector.load %arg11[%c16, %c0_172, %c0_173] : memref<18x1x32xf32, #tpu.memory_space<vmem>>, vector<1x1x32xf32>
    %304 = vector.shape_cast %303 : vector<1x1x32xf32> to vector<1x32xf32>
    %c17 = arith.constant 17 : index
    %c0_174 = arith.constant 0 : index
    %c0_175 = arith.constant 0 : index
    %305 = vector.load %arg11[%c17, %c0_174, %c0_175] : memref<18x1x32xf32, #tpu.memory_space<vmem>>, vector<1x1x32xf32>
    %306 = vector.shape_cast %305 : vector<1x1x32xf32> to vector<1x32xf32>
    %cst_176 = arith.constant dense<0.000000e+00> : vector<6xf32>
    %307 = vector.multi_reduction <add>, %302, %cst_176 [1] : vector<6x32xf32> to vector<6xf32>
    %308 = vector.shape_cast %307 : vector<6xf32> to vector<6x1xf32>
    %cst_177 = arith.constant 3.200000e+01 : f32
    %309 = vector.broadcast %cst_177 : f32 to vector<6x1xf32>
    %310 = arith.divf %308, %309 : vector<6x1xf32>
    %311 = vector.broadcast %310 : vector<6x1xf32> to vector<6x32xf32>
    %312 = arith.subf %302, %311 : vector<6x32xf32>
    %313 = arith.mulf %312, %312 : vector<6x32xf32>
    %cst_178 = arith.constant dense<0.000000e+00> : vector<6xf32>
    %314 = vector.multi_reduction <add>, %313, %cst_178 [1] : vector<6x32xf32> to vector<6xf32>
    %315 = vector.shape_cast %314 : vector<6xf32> to vector<6x1xf32>
    %cst_179 = arith.constant 3.200000e+01 : f32
    %316 = vector.broadcast %cst_179 : f32 to vector<6x1xf32>
    %317 = arith.divf %315, %316 : vector<6x1xf32>
    %cst_180 = arith.constant 9.99999974E-6 : f32
    %318 = vector.broadcast %cst_180 : f32 to vector<6x1xf32>
    %319 = arith.addf %317, %318 : vector<6x1xf32>
    %320 = math.rsqrt %319 : vector<6x1xf32>
    %321 = vector.broadcast %320 : vector<6x1xf32> to vector<6x32xf32>
    %322 = arith.mulf %312, %321 : vector<6x32xf32>
    %323 = vector.broadcast %304 : vector<1x32xf32> to vector<6x32xf32>
    %324 = arith.mulf %322, %323 : vector<6x32xf32>
    %325 = vector.broadcast %306 : vector<1x32xf32> to vector<6x32xf32>
    %326 = arith.addf %324, %325 : vector<6x32xf32>
    %c0_181 = arith.constant 0 : index
    %c0_182 = arith.constant 0 : index
    %c0_183 = arith.constant 0 : index
    %327 = vector.load %arg17[%c0_181, %c0_182, %c0_183] : memref<2x1x32xf32, #tpu.memory_space<vmem>>, vector<1x1x32xf32>
    %328 = vector.shape_cast %327 : vector<1x1x32xf32> to vector<1x32xf32>
    %c1_184 = arith.constant 1 : index
    %c0_185 = arith.constant 0 : index
    %c0_186 = arith.constant 0 : index
    %329 = vector.load %arg17[%c1_184, %c0_185, %c0_186] : memref<2x1x32xf32, #tpu.memory_space<vmem>>, vector<1x1x32xf32>
    %330 = vector.shape_cast %329 : vector<1x1x32xf32> to vector<1x32xf32>
    %cst_187 = arith.constant dense<0.000000e+00> : vector<6xf32>
    %331 = vector.multi_reduction <add>, %326, %cst_187 [1] : vector<6x32xf32> to vector<6xf32>
    %332 = vector.shape_cast %331 : vector<6xf32> to vector<6x1xf32>
    %cst_188 = arith.constant 3.200000e+01 : f32
    %333 = vector.broadcast %cst_188 : f32 to vector<6x1xf32>
    %334 = arith.divf %332, %333 : vector<6x1xf32>
    %335 = vector.broadcast %334 : vector<6x1xf32> to vector<6x32xf32>
    %336 = arith.subf %326, %335 : vector<6x32xf32>
    %337 = arith.mulf %336, %336 : vector<6x32xf32>
    %cst_189 = arith.constant dense<0.000000e+00> : vector<6xf32>
    %338 = vector.multi_reduction <add>, %337, %cst_189 [1] : vector<6x32xf32> to vector<6xf32>
    %339 = vector.shape_cast %338 : vector<6xf32> to vector<6x1xf32>
    %cst_190 = arith.constant 3.200000e+01 : f32
    %340 = vector.broadcast %cst_190 : f32 to vector<6x1xf32>
    %341 = arith.divf %339, %340 : vector<6x1xf32>
    %cst_191 = arith.constant 9.99999974E-6 : f32
    %342 = vector.broadcast %cst_191 : f32 to vector<6x1xf32>
    %343 = arith.addf %341, %342 : vector<6x1xf32>
    %344 = math.rsqrt %343 : vector<6x1xf32>
    %345 = vector.broadcast %344 : vector<6x1xf32> to vector<6x32xf32>
    %346 = arith.mulf %336, %345 : vector<6x32xf32>
    %347 = vector.broadcast %328 : vector<1x32xf32> to vector<6x32xf32>
    %348 = arith.mulf %346, %347 : vector<6x32xf32>
    %349 = vector.broadcast %330 : vector<1x32xf32> to vector<6x32xf32>
    %350 = arith.addf %348, %349 : vector<6x32xf32>
    %cst_192 = arith.constant 5.000000e-01 : f32
    %351 = vector.broadcast %cst_192 : f32 to vector<6x32xf32>
    %352 = arith.mulf %351, %350 : vector<6x32xf32>
    %cst_193 = arith.constant 0.707106769 : f32
    %353 = vector.broadcast %cst_193 : f32 to vector<6x32xf32>
    %354 = arith.mulf %350, %353 : vector<6x32xf32>
    %cst_194 = arith.constant 0.000000e+00 : f32
    %355 = vector.broadcast %cst_194 : f32 to vector<6x32xf32>
    %356 = arith.cmpf oge, %354, %355 : vector<6x32xf32>
    %cst_195 = arith.constant 1.000000e+00 : f32
    %cst_196 = arith.constant -1.000000e+00 : f32
    %357 = vector.broadcast %cst_195 : f32 to vector<6x32xf32>
    %358 = vector.broadcast %cst_196 : f32 to vector<6x32xf32>
    %359 = arith.select %356, %357, %358 : vector<6x32xi1>, vector<6x32xf32>
    %360 = math.absf %354 : vector<6x32xf32>
    %cst_197 = arith.constant 0.327591091 : f32
    %361 = vector.broadcast %cst_197 : f32 to vector<6x32xf32>
    %362 = arith.mulf %361, %360 : vector<6x32xf32>
    %cst_198 = arith.constant 1.000000e+00 : f32
    %363 = vector.broadcast %cst_198 : f32 to vector<6x32xf32>
    %364 = arith.addf %363, %362 : vector<6x32xf32>
    %cst_199 = arith.constant 1.000000e+00 : f32
    %365 = vector.broadcast %cst_199 : f32 to vector<6x32xf32>
    %366 = arith.divf %365, %364 : vector<6x32xf32>
    %cst_200 = arith.constant 1.06140542 : f32
    %367 = vector.broadcast %cst_200 : f32 to vector<6x32xf32>
    %368 = arith.mulf %367, %366 : vector<6x32xf32>
    %cst_201 = arith.constant -1.45315206 : f32
    %369 = vector.broadcast %cst_201 : f32 to vector<6x32xf32>
    %370 = arith.addf %368, %369 : vector<6x32xf32>
    %371 = arith.mulf %370, %366 : vector<6x32xf32>
    %cst_202 = arith.constant 1.42141378 : f32
    %372 = vector.broadcast %cst_202 : f32 to vector<6x32xf32>
    %373 = arith.addf %371, %372 : vector<6x32xf32>
    %374 = arith.mulf %373, %366 : vector<6x32xf32>
    %cst_203 = arith.constant -0.284496725 : f32
    %375 = vector.broadcast %cst_203 : f32 to vector<6x32xf32>
    %376 = arith.addf %374, %375 : vector<6x32xf32>
    %377 = arith.mulf %376, %366 : vector<6x32xf32>
    %cst_204 = arith.constant 0.254829586 : f32
    %378 = vector.broadcast %cst_204 : f32 to vector<6x32xf32>
    %379 = arith.addf %377, %378 : vector<6x32xf32>
    %380 = arith.mulf %379, %366 : vector<6x32xf32>
    %cst_205 = arith.constant 0.000000e+00 : f32
    %381 = vector.broadcast %cst_205 : f32 to vector<6x32xf32>
    %382 = arith.subf %381, %360 : vector<6x32xf32>
    %383 = arith.mulf %382, %360 : vector<6x32xf32>
    %384 = math.exp %383 : vector<6x32xf32>
    %385 = arith.mulf %380, %384 : vector<6x32xf32>
    %cst_206 = arith.constant 1.000000e+00 : f32
    %386 = vector.broadcast %cst_206 : f32 to vector<6x32xf32>
    %387 = arith.subf %386, %385 : vector<6x32xf32>
    %388 = arith.mulf %359, %387 : vector<6x32xf32>
    %cst_207 = arith.constant 1.000000e+00 : f32
    %389 = vector.broadcast %cst_207 : f32 to vector<6x32xf32>
    %390 = arith.addf %389, %388 : vector<6x32xf32>
    %391 = arith.mulf %352, %390 : vector<6x32xf32>
    %c0_208 = arith.constant 0 : index
    %c0_209 = arith.constant 0 : index
    %392 = vector.load %arg18[%c0_208, %c0_209] : memref<32x15xf32, #tpu.memory_space<vmem>>, vector<32x15xf32>
    %cst_210 = arith.constant dense<0.000000e+00> : vector<6x15xf32>
    %393 = tpu.matmul %391, %392, %cst_210 {dimension_numbers = #tpu.dot_dimension_numbers<[1], [0], [0], [1], [0, 0, 1, 1], [], []>} : vector<6x32xf32>, vector<32x15xf32>, vector<6x15xf32> -> vector<6x15xf32>
    %c0_211 = arith.constant 0 : index
    %c0_212 = arith.constant 0 : index
    %394 = vector.load %arg19[%c0_211, %c0_212] : memref<6x15xf32, #tpu.memory_space<vmem>>, vector<6x15xf32>
    %395 = arith.mulf %393, %394 : vector<6x15xf32>
    %c0_213 = arith.constant 0 : index
    %c0_214 = arith.constant 0 : index
    %396 = vector.load %arg20[%c0_213, %c0_214] : memref<15x5xf32, #tpu.memory_space<vmem>>, vector<15x5xf32>
    %cst_215 = arith.constant dense<0.000000e+00> : vector<6x5xf32>
    %397 = tpu.matmul %395, %396, %cst_215 {dimension_numbers = #tpu.dot_dimension_numbers<[1], [0], [0], [1], [0, 0, 1, 1], [], []>} : vector<6x15xf32>, vector<15x5xf32>, vector<6x5xf32> -> vector<6x5xf32>
    %c0_216 = arith.constant 0 : index
    %c0_217 = arith.constant 0 : index
    %398 = vector.load %arg21[%c0_216, %c0_217] : memref<2x6xf32, #tpu.memory_space<vmem>>, vector<2x6xf32>
    %cst_218 = arith.constant dense<0.000000e+00> : vector<2x5xf32>
    %399 = tpu.matmul %398, %397, %cst_218 {dimension_numbers = #tpu.dot_dimension_numbers<[1], [0], [0], [1], [0, 0, 1, 1], [], []>} : vector<2x6xf32>, vector<6x5xf32>, vector<2x5xf32> -> vector<2x5xf32>
    %c0_219 = arith.constant 0 : index
    %c0_220 = arith.constant 0 : index
    %400 = vector.load %arg22[%c0_219, %c0_220] : memref<1x5xf32, #tpu.memory_space<vmem>>, vector<1x5xf32>
    %401 = vector.broadcast %400 : vector<1x5xf32> to vector<2x5xf32>
    %402 = arith.addf %399, %401 : vector<2x5xf32>
    %c0_221 = arith.constant 0 : index
    %c0_222 = arith.constant 0 : index
    %403 = vector.load %arg23[%c0_221, %c0_222] : memref<2x5xf32, #tpu.memory_space<vmem>>, vector<2x5xf32>
    tpu.vector_store %arg23[%c0_221, %c0_222], %402 {strides = array<i32>} : memref<2x5xf32, #tpu.memory_space<vmem>>, vector<2x5xf32>,
    return
  }
  func.func @transform_0(%arg0: i32) -> (i32, i32) {
    %c0_i32 = arith.constant 0 : i32
    %c0_i32_0 = arith.constant 0 : i32
    %c0_i32_1 = arith.constant 0 : i32
    return %c0_i32, %c0_i32_0 : i32, i32
  }
  func.func @transform_1(%arg0: i32) -> (i32, i32) {
    %c0_i32 = arith.constant 0 : i32
    %c0_i32_0 = arith.constant 0 : i32
    %c0_i32_1 = arith.constant 0 : i32
    return %c0_i32, %c0_i32_0 : i32, i32
  }
  func.func @transform_2(%arg0: i32) -> (i32, i32) {
    %c0_i32 = arith.constant 0 : i32
    %c0_i32_0 = arith.constant 0 : i32
    %c0_i32_1 = arith.constant 0 : i32
    return %c0_i32, %c0_i32_0 : i32, i32
  }
  func.func @transform_3(%arg0: i32) -> (i32, i32) {
    %c0_i32 = arith.constant 0 : i32
    %c0_i32_0 = arith.constant 0 : i32
    %c0_i32_1 = arith.constant 0 : i32
    return %c0_i32, %c0_i32_0 : i32, i32
  }
  func.func @transform_4(%arg0: i32) -> (i32, i32) {
    %c0_i32 = arith.constant 0 : i32
    %c0_i32_0 = arith.constant 0 : i32
    %c0_i32_1 = arith.constant 0 : i32
    return %c0_i32, %c0_i32_0 : i32, i32
  }
  func.func @transform_5(%arg0: i32) -> (i32, i32) {
    %c0_i32 = arith.constant 0 : i32
    %c0_i32_0 = arith.constant 0 : i32
    %c0_i32_1 = arith.constant 0 : i32
    return %c0_i32, %c0_i32_0 : i32, i32
  }
  func.func @transform_6(%arg0: i32) -> (i32, i32) {
    %c0_i32 = arith.constant 0 : i32
    %c0_i32_0 = arith.constant 0 : i32
    %c0_i32_1 = arith.constant 0 : i32
    return %c0_i32, %c0_i32_0 : i32, i32
  }
  func.func @transform_7(%arg0: i32) -> (i32, i32, i32) {
    %c0_i32 = arith.constant 0 : i32
    %c0_i32_0 = arith.constant 0 : i32
    %c0_i32_1 = arith.constant 0 : i32
    %c0_i32_2 = arith.constant 0 : i32
    return %c0_i32, %c0_i32_0, %c0_i32_1 : i32, i32, i32
  }
  func.func @transform_8(%arg0: i32) -> (i32, i32, i32) {
    %c0_i32 = arith.constant 0 : i32
    %c0_i32_0 = arith.constant 0 : i32
    %c0_i32_1 = arith.constant 0 : i32
    %c0_i32_2 = arith.constant 0 : i32
    return %c0_i32, %c0_i32_0, %c0_i32_1 : i32, i32, i32
  }
  func.func @transform_9(%arg0: i32) -> (i32, i32, i32) {
    %c0_i32 = arith.constant 0 : i32
    %c0_i32_0 = arith.constant 0 : i32
    %c0_i32_1 = arith.constant 0 : i32
    %c0_i32_2 = arith.constant 0 : i32
    return %c0_i32, %c0_i32_0, %c0_i32_1 : i32, i32, i32
  }
  func.func @transform_10(%arg0: i32) -> (i32, i32, i32) {
    %c0_i32 = arith.constant 0 : i32
    %c0_i32_0 = arith.constant 0 : i32
    %c0_i32_1 = arith.constant 0 : i32
    %c0_i32_2 = arith.constant 0 : i32
    return %c0_i32, %c0_i32_0, %c0_i32_1 : i32, i32, i32
  }
  func.func @transform_11(%arg0: i32) -> (i32, i32, i32) {
    %c0_i32 = arith.constant 0 : i32
    %c0_i32_0 = arith.constant 0 : i32
    %c0_i32_1 = arith.constant 0 : i32
    %c0_i32_2 = arith.constant 0 : i32
    return %c0_i32, %c0_i32_0, %c0_i32_1 : i32, i32, i32
  }
  func.func @transform_12(%arg0: i32) -> (i32, i32) {
    %c0_i32 = arith.constant 0 : i32
    %c0_i32_0 = arith.constant 0 : i32
    %c0_i32_1 = arith.constant 0 : i32
    return %c0_i32, %c0_i32_0 : i32, i32
  }
  func.func @transform_13(%arg0: i32) -> (i32, i32) {
    %c0_i32 = arith.constant 0 : i32
    %c0_i32_0 = arith.constant 0 : i32
    %c0_i32_1 = arith.constant 0 : i32
    return %c0_i32, %c0_i32_0 : i32, i32
  }
  func.func @transform_14(%arg0: i32) -> (i32, i32) {
    %c0_i32 = arith.constant 0 : i32
    %c0_i32_0 = arith.constant 0 : i32
    %c0_i32_1 = arith.constant 0 : i32
    return %c0_i32, %c0_i32_0 : i32, i32
  }
  func.func @transform_15(%arg0: i32) -> (i32, i32) {
    %c0_i32 = arith.constant 0 : i32
    %c0_i32_0 = arith.constant 0 : i32
    %c0_i32_1 = arith.constant 0 : i32
    return %c0_i32, %c0_i32_0 : i32, i32
  }
  func.func @transform_16(%arg0: i32) -> (i32, i32, i32) {
    %c0_i32 = arith.constant 0 : i32
    %c0_i32_0 = arith.constant 0 : i32
    %c0_i32_1 = arith.constant 0 : i32
    %c0_i32_2 = arith.constant 0 : i32
    return %c0_i32, %c0_i32_0, %c0_i32_1 : i32, i32, i32
  }
  func.func @transform_17(%arg0: i32) -> (i32, i32) {
    %c0_i32 = arith.constant 0 : i32
    %c0_i32_0 = arith.constant 0 : i32
    %c0_i32_1 = arith.constant 0 : i32
    return %c0_i32, %c0_i32_0 : i32, i32
  }
  func.func @transform_18(%arg0: i32) -> (i32, i32) {
    %c0_i32 = arith.constant 0 : i32
    %c0_i32_0 = arith.constant 0 : i32
    %c0_i32_1 = arith.constant 0 : i32
    return %c0_i32, %c0_i32_0 : i32, i32
  }
  func.func @transform_19(%arg0: i32) -> (i32, i32) {
    %c0_i32 = arith.constant 0 : i32
    %c0_i32_0 = arith.constant 0 : i32
    %c0_i32_1 = arith.constant 0 : i32
    return %c0_i32, %c0_i32_0 : i32, i32
  }
  func.func @transform_20(%arg0: i32) -> (i32, i32) {
    %c0_i32 = arith.constant 0 : i32
    %c0_i32_0 = arith.constant 0 : i32
    %c0_i32_1 = arith.constant 0 : i32
    return %c0_i32, %c0_i32_0 : i32, i32
  }
  func.func @transform_21(%arg0: i32) -> (i32, i32) {
    %c0_i32 = arith.constant 0 : i32
    %c0_i32_0 = arith.constant 0 : i32
    %c0_i32_1 = arith.constant 0 : i32
    return %c0_i32, %c0_i32_0 : i32, i32
  }
  func.func @transform_22(%arg0: i32) -> (i32, i32) {
    %c0_i32 = arith.constant 0 : i32
    %c0_i32_0 = arith.constant 0 : i32
    %c0_i32_1 = arith.constant 0 : i32
    return %c0_i32, %c0_i32_0 : i32, i32
  }
}

</mosaic_0001>

<llo_original>
// kernel: conformer_forward.1
$region0: #{conformer_forward.1}
  #allocation0 [shape = 'u32[]', space=smem, size = 0x4, offset = 0x4, fixed_abs, tag = 'smem constant byte address 0x4 - core index']
  #allocation1 [shape = 'u32[144,128]{1,0:T(1,128)}', space=vmem, size = 0x12000, scoped, tag = 'internal scratch']
  %s0 = inlined_call_operand.vmem [shape: f32[2,128], index: 0, kind: input, shape index: {}]
  %s1 = inlined_call_operand.vmem [shape: f32[128,256], index: 1, kind: input, shape index: {}]
  %s2 = inlined_call_operand.vmem [shape: f32[1,256], index: 2, kind: input, shape index: {}]
  %s3 = inlined_call_operand.vmem [shape: f32[6,2], index: 3, kind: input, shape index: {}]
  %s4 = inlined_call_operand.vmem [shape: f32[6,256], index: 4, kind: input, shape index: {}]
  %s5 = inlined_call_operand.vmem [shape: f32[256,32], index: 5, kind: input, shape index: {}]
  %s6 = inlined_call_operand.hbm [shape: f32[1,32], index: 6, kind: input, shape index: {}]
  %s7 = inlined_call_operand.vmem [shape: f32[8,32,32], index: 7, kind: input, shape index: {}]
  %s8 = inlined_call_operand.vmem [shape: f32[2,32,64], index: 8, kind: input, shape index: {}]
  %s9 = inlined_call_operand.vmem [shape: f32[2,64,32], index: 9, kind: input, shape index: {}]
  %s10 = inlined_call_operand.vmem [shape: f32[18,1,32], index: 10, kind: input, shape index: {}]
  %s11 = inlined_call_operand.hbm [shape: f32[2,1,64], index: 11, kind: input, shape index: {}]
  %s12 = inlined_call_operand.vmem [shape: f32[24,6], index: 12, kind: input, shape index: {}]
  %s13 = inlined_call_operand.vmem [shape: f32[24,32], index: 13, kind: input, shape index: {}]
  %s14 = inlined_call_operand.vmem [shape: f32[24,6], index: 14, kind: input, shape index: {}]
  %s15 = inlined_call_operand.hbm [shape: f32[6,24], index: 15, kind: input, shape index: {}]
  %s16 = inlined_call_operand.hbm [shape: f32[2,1,32], index: 16, kind: input, shape index: {}]
  %s17 = inlined_call_operand.vmem [shape: f32[32,15], index: 17, kind: input, shape index: {}]
  %s18 = inlined_call_operand.hbm [shape: f32[6,15], index: 18, kind: input, shape index: {}]
  %s19 = inlined_call_operand.vmem [shape: f32[15,5], index: 19, kind: input, shape index: {}]
  %s20 = inlined_call_operand.hbm [shape: f32[2,6], index: 20, kind: input, shape index: {}]
  %s21 = inlined_call_operand.hbm [shape: f32[1,5], index: 21, kind: input, shape index: {}]
  %s22 = inlined_call_operand.hbm [shape: f32[2,5], index: 22, kind: output, shape index: {}]
  %s23 = sld [smem:[#allocation0]]
  $region126: #{conformer_forward.1} parent=0
    _
  %s25 = ssub.s32 1, %s23
  %s26 = scalar_select 0, %s25, %s23
  $region1: #{conformer_forward.1} parent=0
    #allocation2 [shape = 'u8[512]{0}', space=vmem, size = 0x400, scoped, tag = 'input window, operand 6, single buffered']
    #allocation3 [shape = 's32[1]{0}', space=sflag, size = 0x4, scoped, tag = 'scoped memory for conformer_forward.1']
    #allocation4 [shape = 's32[1]{0}', space=sflag, size = 0x4, scoped, tag = 'scoped memory for conformer_forward.1']
    #allocation5 [shape = 'u8[1024]{0}', space=vmem, size = 0x400, scoped, tag = 'input window, operand 11, single buffered']
    #allocation6 [shape = 's32[1]{0}', space=sflag, size = 0x4, scoped, tag = 'scoped memory for conformer_forward.1']
    #allocation7 [shape = 'u8[4096]{0}', space=vmem, size = 0x1000, scoped, tag = 'input window, operand 15, single buffered']
    #allocation8 [shape = 'u8[1024]{0}', space=vmem, size = 0x400, scoped, tag = 'input window, operand 16, single buffered']
    #allocation9 [shape = 's32[1]{0}', space=sflag, size = 0x4, scoped, tag = 'scoped memory for conformer_forward.1']
    #allocation10 [shape = 'u8[4096]{0}', space=vmem, size = 0x1000, scoped, tag = 'input window, operand 18, single buffered']
    #allocation11 [shape = 'u8[1024]{0}', space=vmem, size = 0x400, scoped, tag = 'input window, operand 20, single buffered']
    #allocation12 [shape = 's32[1]{0}', space=sflag, size = 0x4, scoped, tag = 'scoped memory for conformer_forward.1']
    #allocation13 [shape = 'u8[512]{0}', space=vmem, size = 0x400, scoped, tag = 'input window, operand 21, single buffered']
    #allocation14 [shape = 'u8[1024]{0}', space=vmem, size = 0x400, scoped, tag = 'output window, operand 0, single buffered']
    %27 = vsyncpa [#allocation3], 0
    %28 = vsyncpa [#allocation6], 0
    %29 = vsyncpa [#allocation9], 0
    %30 = vsyncpa [#allocation12], 0
    %31 = vsyncpa [#allocation4], 0
    // Predicated region
    $region2: #{conformer_forward.1} parent=1 // pred_check
      _
    $region3: #{conformer_forward.1} parent=1 // pred_check_branch
      %33 = sbr.rel (0) target = $region5
    $region4: #{conformer_forward.1} parent=1 // pred_region
      _
    $region5: #{conformer_forward.1} parent=1 // pred_fallthru
      _
    // Predicated region
    $region6: #{conformer_forward.1} parent=1 // pred_check
      _
    $region7: #{conformer_forward.1} parent=1 // pred_check_branch
      %35 = sbr.rel (0) target = $region9
    $region8: #{conformer_forward.1} parent=1 // pred_region
      _
    $region9: #{conformer_forward.1} parent=1 // pred_fallthru
      _
    // Predicated region
    $region10: #{conformer_forward.1} parent=1 // pred_check
      _
    $region11: #{conformer_forward.1} parent=1 // pred_check_branch
      %37 = sbr.rel (0) target = $region13
    $region12: #{conformer_forward.1} parent=1 // pred_region
      _
    $region13: #{conformer_forward.1} parent=1 // pred_fallthru
      _
    // Predicated region
    $region14: #{conformer_forward.1} parent=1 // pred_check
      _
    $region15: #{conformer_forward.1} parent=1 // pred_check_branch
      %39 = sbr.rel (0) target = $region17
    $region16: #{conformer_forward.1} parent=1 // pred_region
      _
    $region17: #{conformer_forward.1} parent=1 // pred_fallthru
      _
    // Predicated region
    $region18: #{conformer_forward.1} parent=1 // pred_check
      _
    $region19: #{conformer_forward.1} parent=1 // pred_check_branch
      %41 = sbr.rel (0) target = $region21
    $region20: #{conformer_forward.1} parent=1 // pred_region
      _
    $region21: #{conformer_forward.1} parent=1 // pred_fallthru
      _
    // Predicated region
    $region22: #{conformer_forward.1} parent=1 // pred_check
      _
    $region23: #{conformer_forward.1} parent=1 // pred_check_branch
      %43 = sbr.rel (0) target = $region25
    $region24: #{conformer_forward.1} parent=1 // pred_region
      _
    $region25: #{conformer_forward.1} parent=1 // pred_fallthru
      _
    // Predicated region
    $region26: #{conformer_forward.1} parent=1 // pred_check
      _
    $region27: #{conformer_forward.1} parent=1 // pred_check_branch
      %45 = sbr.rel (0) target = $region29
    $region28: #{conformer_forward.1} parent=1 // pred_region
      %s47 = ssub.s32 16, 16
      %48 = vsyncadd [#allocation3], %s47
      %s50 = sshll.u32 [#allocation2], 4
      %s51 = int_to_ptr.vmem [resolvable:$true] %s50
      %53 = dma.hbm_to_vmem [thread:$0]  %s6, 16, %s51, [#allocation3]
    $region29: #{conformer_forward.1} parent=1 // pred_fallthru
      _
    // Predicated region
    $region30: #{conformer_forward.1} parent=1 // pred_check
      _
    $region31: #{conformer_forward.1} parent=1 // pred_check_branch
      %55 = sbr.rel (0) target = $region33
    $region32: #{conformer_forward.1} parent=1 // pred_region
      _
    $region33: #{conformer_forward.1} parent=1 // pred_fallthru
      _
    // Predicated region
    $region34: #{conformer_forward.1} parent=1 // pred_check
      _
    $region35: #{conformer_forward.1} parent=1 // pred_check_branch
      %57 = sbr.rel (0) target = $region37
    $region36: #{conformer_forward.1} parent=1 // pred_region
      _
    $region37: #{conformer_forward.1} parent=1 // pred_fallthru
      _
    // Predicated region
    $region38: #{conformer_forward.1} parent=1 // pred_check
      _
    $region39: #{conformer_forward.1} parent=1 // pred_check_branch
      %59 = sbr.rel (0) target = $region41
    $region40: #{conformer_forward.1} parent=1 // pred_region
      _
    $region41: #{conformer_forward.1} parent=1 // pred_fallthru
      _
    // Predicated region
    $region42: #{conformer_forward.1} parent=1 // pred_check
      _
    $region43: #{conformer_forward.1} parent=1 // pred_check_branch
      %61 = sbr.rel (0) target = $region45
    $region44: #{conformer_forward.1} parent=1 // pred_region
      _
    $region45: #{conformer_forward.1} parent=1 // pred_fallthru
      _
    // Predicated region
    $region46: #{conformer_forward.1} parent=1 // pred_check
      _
    $region47: #{conformer_forward.1} parent=1 // pred_check_branch
      %63 = sbr.rel (0) target = $region49
    $region48: #{conformer_forward.1} parent=1 // pred_region
      %s65 = ssub.s32 32, 32
      %66 = vsyncadd [#allocation6], %s65
      %s67 = sshll.u32 [#allocation5], 4
      %s68 = int_to_ptr.vmem [resolvable:$true] %s67
      %73 = dma.hbm_to_vmem [thread:$0]  %s11, 32, %s68, [#allocation6], 16, 16, 1
    $region49: #{conformer_forward.1} parent=1 // pred_fallthru
      _
    // Predicated region
    $region50: #{conformer_forward.1} parent=1 // pred_check
      _
    $region51: #{conformer_forward.1} parent=1 // pred_check_branch
      %75 = sbr.rel (0) target = $region53
    $region52: #{conformer_forward.1} parent=1 // pred_region
      _
    $region53: #{conformer_forward.1} parent=1 // pred_fallthru
      _
    // Predicated region
    $region54: #{conformer_forward.1} parent=1 // pred_check
      _
    $region55: #{conformer_forward.1} parent=1 // pred_check_branch
      %77 = sbr.rel (0) target = $region57
    $region56: #{conformer_forward.1} parent=1 // pred_region
      _
    $region57: #{conformer_forward.1} parent=1 // pred_fallthru
      _
    // Predicated region
    $region58: #{conformer_forward.1} parent=1 // pred_check
      _
    $region59: #{conformer_forward.1} parent=1 // pred_check_branch
      %79 = sbr.rel (0) target = $region61
    $region60: #{conformer_forward.1} parent=1 // pred_region
      _
    $region61: #{conformer_forward.1} parent=1 // pred_fallthru
      _
    // Predicated region
    $region62: #{conformer_forward.1} parent=1 // pred_check
      _
    $region63: #{conformer_forward.1} parent=1 // pred_check_branch
      %81 = sbr.rel (0) target = $region65
    $region64: #{conformer_forward.1} parent=1 // pred_region
      %s83 = ssub.s32 128, 128
      %84 = vsyncadd [#allocation6], %s83
      %s86 = sshll.u32 [#allocation7], 4
      %s87 = int_to_ptr.vmem [resolvable:$true] %s86
      %89 = dma.hbm_to_vmem [thread:$0]  %s15, 128, %s87, [#allocation6]
    $region65: #{conformer_forward.1} parent=1 // pred_fallthru
      _
    // Predicated region
    $region66: #{conformer_forward.1} parent=1 // pred_check
      _
    $region67: #{conformer_forward.1} parent=1 // pred_check_branch
      %91 = sbr.rel (0) target = $region69
    $region68: #{conformer_forward.1} parent=1 // pred_region
      %s93 = ssub.s32 32, 32
      %94 = vsyncadd [#allocation9], %s93
      %s95 = sshll.u32 [#allocation8], 4
      %s96 = int_to_ptr.vmem [resolvable:$true] %s95
      %101 = dma.hbm_to_vmem [thread:$0]  %s16, 32, %s96, [#allocation9], 16, 16, 1
    $region69: #{conformer_forward.1} parent=1 // pred_fallthru
      _
    // Predicated region
    $region70: #{conformer_forward.1} parent=1 // pred_check
      _
    $region71: #{conformer_forward.1} parent=1 // pred_check_branch
      %103 = sbr.rel (0) target = $region73
    $region72: #{conformer_forward.1} parent=1 // pred_region
      _
    $region73: #{conformer_forward.1} parent=1 // pred_fallthru
      _
    // Predicated region
    $region74: #{conformer_forward.1} parent=1 // pred_check
      _
    $region75: #{conformer_forward.1} parent=1 // pred_check_branch
      %105 = sbr.rel (0) target = $region77
    $region76: #{conformer_forward.1} parent=1 // pred_region
      %s107 = ssub.s32 128, 128
      %108 = vsyncadd [#allocation9], %s107
      %s110 = sshll.u32 [#allocation10], 4
      %s111 = int_to_ptr.vmem [resolvable:$true] %s110
      %113 = dma.hbm_to_vmem [thread:$0]  %s18, 128, %s111, [#allocation9]
    $region77: #{conformer_forward.1} parent=1 // pred_fallthru
      _
    // Predicated region
    $region78: #{conformer_forward.1} parent=1 // pred_check
      _
    $region79: #{conformer_forward.1} parent=1 // pred_check_branch
      %115 = sbr.rel (0) target = $region81
    $region80: #{conformer_forward.1} parent=1 // pred_region
      _
    $region81: #{conformer_forward.1} parent=1 // pred_fallthru
      _
    // Predicated region
    $region82: #{conformer_forward.1} parent=1 // pred_check
      _
    $region83: #{conformer_forward.1} parent=1 // pred_check_branch
      %117 = sbr.rel (0) target = $region85
    $region84: #{conformer_forward.1} parent=1 // pred_region
      %s119 = ssub.s32 32, 32
      %120 = vsyncadd [#allocation12], %s119
      %s122 = sshll.u32 [#allocation11], 4
      %s123 = int_to_ptr.vmem [resolvable:$true] %s122
      %125 = dma.hbm_to_vmem [thread:$0]  %s20, 32, %s123, [#allocation12]
    $region85: #{conformer_forward.1} parent=1 // pred_fallthru
      _
    // Predicated region
    $region86: #{conformer_forward.1} parent=1 // pred_check
      _
    $region87: #{conformer_forward.1} parent=1 // pred_check_branch
      %127 = sbr.rel (0) target = $region89
    $region88: #{conformer_forward.1} parent=1 // pred_region
      %s129 = ssub.s32 16, 16
      %130 = vsyncadd [#allocation12], %s129
      %s132 = sshll.u32 [#allocation13], 4
      %s133 = int_to_ptr.vmem [resolvable:$true] %s132
      %135 = dma.hbm_to_vmem [thread:$0]  %s21, 16, %s133, [#allocation12]
    $region89: #{conformer_forward.1} parent=1 // pred_fallthru
      _
    // Predicated region
    $region90: #{conformer_forward.1} parent=1 // pred_check
      _
    $region91: #{conformer_forward.1} parent=1 // pred_check_branch
      %137 = sbr.rel (0) target = $region93
    $region92: #{conformer_forward.1} parent=1 // pred_region
      %138 = dma.done [#allocation3], 16
    $region93: #{conformer_forward.1} parent=1 // pred_fallthru
      _
    // Predicated region
    $region94: #{conformer_forward.1} parent=1 // pred_check
      _
    $region95: #{conformer_forward.1} parent=1 // pred_check_branch
      %140 = sbr.rel (0) target = $region97
    $region96: #{conformer_forward.1} parent=1 // pred_region
      %141 = dma.done [#allocation6], 32
    $region97: #{conformer_forward.1} parent=1 // pred_fallthru
      _
    // Predicated region
    $region98: #{conformer_forward.1} parent=1 // pred_check
      _
    $region99: #{conformer_forward.1} parent=1 // pred_check_branch
      %143 = sbr.rel (0) target = $region101
    $region100: #{conformer_forward.1} parent=1 // pred_region
      %144 = dma.done [#allocation6], 128
    $region101: #{conformer_forward.1} parent=1 // pred_fallthru
      _
    // Predicated region
    $region102: #{conformer_forward.1} parent=1 // pred_check
      _
    $region103: #{conformer_forward.1} parent=1 // pred_check_branch
      %146 = sbr.rel (0) target = $region105
    $region104: #{conformer_forward.1} parent=1 // pred_region
      %147 = dma.done [#allocation9], 32
    $region105: #{conformer_forward.1} parent=1 // pred_fallthru
      _
    // Predicated region
    $region106: #{conformer_forward.1} parent=1 // pred_check
      _
    $region107: #{conformer_forward.1} parent=1 // pred_check_branch
      %149 = sbr.rel (0) target = $region109
    $region108: #{conformer_forward.1} parent=1 // pred_region
      %150 = dma.done [#allocation9], 128
    $region109: #{conformer_forward.1} parent=1 // pred_fallthru
      _
    // Predicated region
    $region110: #{conformer_forward.1} parent=1 // pred_check
      _
    $region111: #{conformer_forward.1} parent=1 // pred_check_branch
      %152 = sbr.rel (0) target = $region113
    $region112: #{conformer_forward.1} parent=1 // pred_region
      %153 = dma.done [#allocation12], 32
    $region113: #{conformer_forward.1} parent=1 // pred_fallthru
      _
    // Predicated region
    $region114: #{conformer_forward.1} parent=1 // pred_check
      _
    $region115: #{conformer_forward.1} parent=1 // pred_check_branch
      %155 = sbr.rel (0) target = $region117
    $region116: #{conformer_forward.1} parent=1 // pred_region
      %156 = dma.done [#allocation12], 16
    $region117: #{conformer_forward.1} parent=1 // pred_fallthru
      _
    %v157 = vld [vmem:[%s0] sm:$0x3]
    %v158 = vld [vmem:[%s1] sm:$0xff]
    %v159 = vld [vmem:[%s1 + $0x8] sm:$0xff]
    %v160 = vld [vmem:[%s1 + $0x10] sm:$0xff]
    %v161 = vld [vmem:[%s1 + $0x18] sm:$0xff]
    %v162 = vld [vmem:[%s1 + $0x20] sm:$0xff]
    %v163 = vld [vmem:[%s1 + $0x28] sm:$0xff]
    %v164 = vld [vmem:[%s1 + $0x30] sm:$0xff]
    %v165 = vld [vmem:[%s1 + $0x38] sm:$0xff]
    %v166 = vld [vmem:[%s1 + $0x40] sm:$0xff]
    %v167 = vld [vmem:[%s1 + $0x48] sm:$0xff]
    %v168 = vld [vmem:[%s1 + $0x50] sm:$0xff]
    %v169 = vld [vmem:[%s1 + $0x58] sm:$0xff]
    %v170 = vld [vmem:[%s1 + $0x60] sm:$0xff]
    %v171 = vld [vmem:[%s1 + $0x68] sm:$0xff]
    %v172 = vld [vmem:[%s1 + $0x70] sm:$0xff]
    %v173 = vld [vmem:[%s1 + $0x78] sm:$0xff]
    %v174 = vld [vmem:[%s1 + $0x80] sm:$0xff]
    %v175 = vld [vmem:[%s1 + $0x88] sm:$0xff]
    %v176 = vld [vmem:[%s1 + $0x90] sm:$0xff]
    %v177 = vld [vmem:[%s1 + $0x98] sm:$0xff]
    %v178 = vld [vmem:[%s1 + $0xa0] sm:$0xff]
    %v179 = vld [vmem:[%s1 + $0xa8] sm:$0xff]
    %v180 = vld [vmem:[%s1 + $0xb0] sm:$0xff]
    %v181 = vld [vmem:[%s1 + $0xb8] sm:$0xff]
    %v182 = vld [vmem:[%s1 + $0xc0] sm:$0xff]
    %v183 = vld [vmem:[%s1 + $0xc8] sm:$0xff]
    %v184 = vld [vmem:[%s1 + $0xd0] sm:$0xff]
    %v185 = vld [vmem:[%s1 + $0xd8] sm:$0xff]
    %v186 = vld [vmem:[%s1 + $0xe0] sm:$0xff]
    %v187 = vld [vmem:[%s1 + $0xe8] sm:$0xff]
    %v188 = vld [vmem:[%s1 + $0xf0] sm:$0xff]
    %v189 = vld [vmem:[%s1 + $0xf8] sm:$0xff]
    %v190 = vld [vmem:[%s2] sm:$0x3]
    %v192 = vlaneseq
    %v193 = vshrl.u32 %v192, 7
    %v194 = vsub.s32 0, %v193
    %v195 = vrot.slane %v190, %v194
    %v196 = vlaneseq
    %v197 = vshrl.u32 %v196, 7
    %v198 = vsub.s32 1, %v197
    %v199 = vrot.slane %v190, %v198
    %202 = vmatprep.subr.mxu0 %v189
    %203 = vmatpush1.msra.mxu0 %v188
    %204 = vmatprep.subr.mxu0 %v187
    %205 = vmatpush1.msra.mxu0 %v186
    %206 = vmatprep.subr.mxu0 %v185
    %207 = vmatpush1.msra.mxu0 %v184
    %208 = vmatprep.subr.mxu0 %v183
    %209 = vmatpush1.msra.mxu0 %v182
    %210 = vmatprep.subr.mxu0 %v181
    %211 = vmatpush1.msra.mxu0 %v180
    %212 = vmatprep.subr.mxu0 %v179
    %213 = vmatpush1.msra.mxu0 %v178
    %214 = vmatprep.subr.mxu0 %v177
    %215 = vmatpush1.msra.mxu0 %v176
    %216 = vmatprep.subr.mxu0 %v175
    %217 = vmatpush1.msra.mxu0 %v174
    %218 = vmatprep.subr.mxu0 %v173
    %219 = vmatpush1.msra.mxu0 %v172
    %220 = vmatprep.subr.mxu0 %v171
    %221 = vmatpush1.msra.mxu0 %v170
    %222 = vmatprep.subr.mxu0 %v169
    %223 = vmatpush1.msra.mxu0 %v168
    %224 = vmatprep.subr.mxu0 %v167
    %225 = vmatpush1.msra.mxu0 %v166
    %226 = vmatprep.subr.mxu0 %v165
    %227 = vmatpush1.msra.mxu0 %v164
    %228 = vmatprep.subr.mxu0 %v163
    %229 = vmatpush1.msra.mxu0 %v162
    %230 = vmatprep.subr.mxu0 %v161
    %231 = vmatpush1.msra.mxu0 %v160
    %232 = vmatprep.subr.mxu0 %v159
    %233 = vmatpush1.msra.mxu0 %v158
    %234 = vmatprep.subr.mxu0 0.0
    %235 = vmatpush2.msra.mxu0 0.0
    %236 = vmatprep.subr.mxu0 0.0
    %237 = vmatpush2.msra.mxu0 0.0
    %238 = vmatprep.subr.mxu0 0.0
    %239 = vmatpush2.msra.mxu0 0.0
    %240 = vmatprep.subr.mxu0 0.0
    %241 = vmatpush2.msra.mxu0 0.0
    %242 = vmatprep.subr.mxu0 0.0
    %243 = vmatpush2.msra.mxu0 0.0
    %244 = vmatprep.subr.mxu0 0.0
    %245 = vmatpush2.msra.mxu0 0.0
    %246 = vmatprep.subr.mxu0 0.0
    %247 = vmatpush2.msra.mxu0 0.0
    %248 = vmatprep.subr.mxu0 0.0
    %249 = vmatpush2.msra.mxu0 0.0
    %250 = vmatprep.subr.mxu0 0.0
    %251 = vmatpush2.msra.mxu0 0.0
    %252 = vmatprep.subr.mxu0 0.0
    %253 = vmatpush2.msra.mxu0 0.0
    %254 = vmatprep.subr.mxu0 0.0
    %255 = vmatpush2.msra.mxu0 0.0
    %256 = vmatprep.subr.mxu0 0.0
    %257 = vmatpush2.msra.mxu0 0.0
    %258 = vmatprep.subr.mxu0 0.0
    %259 = vmatpush2.msra.mxu0 0.0
    %260 = vmatprep.subr.mxu0 0.0
    %261 = vmatpush2.msra.mxu0 0.0
    %262 = vmatprep.subr.mxu0 0.0
    %263 = vmatpush2.msra.mxu0 0.0
    %264 = vmatprep.subr.mxu0 0.0
    %265 = vmatpush2.msra.mxu0 0.0
    %266 = vmatprep.mubr.f32.mxu0 0.0
    %267 = vmatmul.mubr.f32.gmra.mxu0 %v157
    %v268 = vpop.f32.mrf.mxu0
    %v269 = vadd.f32 %v195, %v268
    %v270 = vpop.f32.mrf.mxu0
    %v271 = vadd.f32 %v199, %v270
    %272 = vdwg.mxu0
    %vm273 = vcmp.gt.f32.partialorder %v269, 0.0
    %vm274 = vcmp.gt.f32.partialorder %v271, 0.0
    %v275 = vmin.f32 %v269, 0.0
    %v276 = vmin.f32 %v271, 0.0
    %v277 = vmul.f32 %v275, 1.442695
    %v278 = vpow.pop %v277
    %v279 = vmul.f32 %v276, 1.442695
    %v280 = vpow.pop %v279
    %v281 = vsub.f32 %v278, 1.0
    %v282 = vsub.f32 %v280, 1.0
    %v283 = vsel %vm273, %v269, %v281
    %v284 = vsel %vm274, %v271, %v282
    %v285 = vld [vmem:[%s3] sm:$0x3f]
    %vm286 = vcmask 15360
    %v288 = vsel %vm286, %v285, 0
    %vm290 = vcmask 1041408
    %v292 = vsel %vm290, %v283, 0
    %v295 = vsel %vm290, %v284, 0
    %297 = vmatprep.subr.mxu0 0.0
    %298 = vmatpush1.msra.mxu0 0.0
    %299 = vmatprep.subr.mxu0 0.0
    %300 = vmatpush1.msra.mxu0 0.0
    %301 = vmatprep.subr.mxu0 0.0
    %302 = vmatpush1.msra.mxu0 0.0
    %303 = vmatprep.subr.mxu0 0.0
    %304 = vmatpush1.msra.mxu0 0.0
    %305 = vmatprep.subr.mxu0 0.0
    %306 = vmatpush1.msra.mxu0 0.0
    %307 = vmatprep.subr.mxu0 0.0
    %308 = vmatpush1.msra.mxu0 0.0
    %309 = vmatprep.subr.mxu0 0.0
    %310 = vmatpush1.msra.mxu0 0.0
    %311 = vmatprep.subr.mxu0 0.0
    %312 = vmatpush1.msra.mxu0 0.0
    %313 = vmatprep.subr.mxu0 0.0
    %314 = vmatpush1.msra.mxu0 0.0
    %315 = vmatprep.subr.mxu0 0.0
    %316 = vmatpush1.msra.mxu0 0.0
    %317 = vmatprep.subr.mxu0 0.0
    %318 = vmatpush1.msra.mxu0 0.0
    %319 = vmatprep.subr.mxu0 0.0
    %320 = vmatpush1.msra.mxu0 0.0
    %321 = vmatprep.subr.mxu0 0.0
    %322 = vmatpush1.msra.mxu0 0.0
    %323 = vmatprep.subr.mxu0 0.0
    %324 = vmatpush1.msra.mxu0 0.0
    %325 = vmatprep.subr.mxu0 0.0
    %326 = vmatpush1.msra.mxu0 0.0
    %327 = vmatprep.subr.mxu0 %v295
    %328 = vmatpush1.msra.mxu0 %v292
    %329 = vmatprep.subr.mxu0 0.0
    %330 = vmatpush2.msra.mxu0 0.0
    %331 = vmatprep.subr.mxu0 0.0
    %332 = vmatpush2.msra.mxu0 0.0
    %333 = vmatprep.subr.mxu0 0.0
    %334 = vmatpush2.msra.mxu0 0.0
    %335 = vmatprep.subr.mxu0 0.0
    %336 = vmatpush2.msra.mxu0 0.0
    %337 = vmatprep.subr.mxu0 0.0
    %338 = vmatpush2.msra.mxu0 0.0
    %339 = vmatprep.subr.mxu0 0.0
    %340 = vmatpush2.msra.mxu0 0.0
    %341 = vmatprep.subr.mxu0 0.0
    %342 = vmatpush2.msra.mxu0 0.0
    %343 = vmatprep.subr.mxu0 0.0
    %344 = vmatpush2.msra.mxu0 0.0
    %345 = vmatprep.subr.mxu0 0.0
    %346 = vmatpush2.msra.mxu0 0.0
    %347 = vmatprep.subr.mxu0 0.0
    %348 = vmatpush2.msra.mxu0 0.0
    %349 = vmatprep.subr.mxu0 0.0
    %350 = vmatpush2.msra.mxu0 0.0
    %351 = vmatprep.subr.mxu0 0.0
    %352 = vmatpush2.msra.mxu0 0.0
    %353 = vmatprep.subr.mxu0 0.0
    %354 = vmatpush2.msra.mxu0 0.0
    %355 = vmatprep.subr.mxu0 0.0
    %356 = vmatpush2.msra.mxu0 0.0
    %357 = vmatprep.subr.mxu0 0.0
    %358 = vmatpush2.msra.mxu0 0.0
    %359 = vmatprep.subr.mxu0 0.0
    %360 = vmatpush2.msra.mxu0 0.0
    %361 = vmatprep.mubr.f32.mxu0 0.0
    %362 = vmatmul.mubr.f32.gmra.mxu0 %v288
    %v363 = vpop.f32.mrf.mxu0
    %v364 = vadd.f32 0.0, %v363
    %v365 = vpop.f32.mrf.mxu0
    %v366 = vadd.f32 0.0, %v365
    %367 = vdwg.mxu0
    %v368 = vld [vmem:[%s4] sm:$0x3f]
    %v369 = vld [vmem:[%s4 + $0x8] sm:$0x3f]
    %v370 = vmul.f32 %v364, %v368
    %v371 = vmul.f32 %v366, %v369
    %v372 = vld [vmem:[%s5] sm:$0xff]
    %v373 = vld [vmem:[%s5 + $0x8] sm:$0xff]
    %v374 = vld [vmem:[%s5 + $0x10] sm:$0xff]
    %v375 = vld [vmem:[%s5 + $0x18] sm:$0xff]
    %v376 = vld [vmem:[%s5 + $0x20] sm:$0xff]
    %v377 = vld [vmem:[%s5 + $0x28] sm:$0xff]
    %v378 = vld [vmem:[%s5 + $0x30] sm:$0xff]
    %v379 = vld [vmem:[%s5 + $0x38] sm:$0xff]
    %v380 = vld [vmem:[%s5 + $0x40] sm:$0xff]
    %v381 = vld [vmem:[%s5 + $0x48] sm:$0xff]
    %v382 = vld [vmem:[%s5 + $0x50] sm:$0xff]
    %v383 = vld [vmem:[%s5 + $0x58] sm:$0xff]
    %v384 = vld [vmem:[%s5 + $0x60] sm:$0xff]
    %v385 = vld [vmem:[%s5 + $0x68] sm:$0xff]
    %v386 = vld [vmem:[%s5 + $0x70] sm:$0xff]
    %v387 = vld [vmem:[%s5 + $0x78] sm:$0xff]
    %v388 = vld [vmem:[%s5 + $0x80] sm:$0xff]
    %v389 = vld [vmem:[%s5 + $0x88] sm:$0xff]
    %v390 = vld [vmem:[%s5 + $0x90] sm:$0xff]
    %v391 = vld [vmem:[%s5 + $0x98] sm:$0xff]
    %v392 = vld [vmem:[%s5 + $0xa0] sm:$0xff]
    %v393 = vld [vmem:[%s5 + $0xa8] sm:$0xff]
    %v394 = vld [vmem:[%s5 + $0xb0] sm:$0xff]
    %v395 = vld [vmem:[%s5 + $0xb8] sm:$0xff]
    %v396 = vld [vmem:[%s5 + $0xc0] sm:$0xff]
    %v397 = vld [vmem:[%s5 + $0xc8] sm:$0xff]
    %v398 = vld [vmem:[%s5 + $0xd0] sm:$0xff]
    %v399 = vld [vmem:[%s5 + $0xd8] sm:$0xff]
    %v400 = vld [vmem:[%s5 + $0xe0] sm:$0xff]
    %v401 = vld [vmem:[%s5 + $0xe8] sm:$0xff]
    %v402 = vld [vmem:[%s5 + $0xf0] sm:$0xff]
    %v403 = vld [vmem:[%s5 + $0xf8] sm:$0xff]
    %v404 = vld [vmem:[#allocation2] sm:$0x1]
    %v406 = vlaneseq
    %v407 = vshrl.u32 %v406, 7
    %v408 = vsub.s32 0, %v407
    %v409 = vrot.slane %v404, %v408
    %411 = vmatprep.subr.mxu0 0.0
    %412 = vmatpush1.msra.mxu0 %v387
    %413 = vmatprep.subr.mxu0 0.0
    %414 = vmatpush1.msra.mxu0 %v386
    %415 = vmatprep.subr.mxu0 0.0
    %416 = vmatpush1.msra.mxu0 %v385
    %417 = vmatprep.subr.mxu0 0.0
    %418 = vmatpush1.msra.mxu0 %v384
    %419 = vmatprep.subr.mxu0 0.0
    %420 = vmatpush1.msra.mxu0 %v383
    %421 = vmatprep.subr.mxu0 0.0
    %422 = vmatpush1.msra.mxu0 %v382
    %423 = vmatprep.subr.mxu0 0.0
    %424 = vmatpush1.msra.mxu0 %v381
    %425 = vmatprep.subr.mxu0 0.0
    %426 = vmatpush1.msra.mxu0 %v380
    %427 = vmatprep.subr.mxu0 0.0
    %428 = vmatpush1.msra.mxu0 %v379
    %429 = vmatprep.subr.mxu0 0.0
    %430 = vmatpush1.msra.mxu0 %v378
    %431 = vmatprep.subr.mxu0 0.0
    %432 = vmatpush1.msra.mxu0 %v377
    %433 = vmatprep.subr.mxu0 0.0
    %434 = vmatpush1.msra.mxu0 %v376
    %435 = vmatprep.subr.mxu0 0.0
    %436 = vmatpush1.msra.mxu0 %v375
    %437 = vmatprep.subr.mxu0 0.0
    %438 = vmatpush1.msra.mxu0 %v374
    %439 = vmatprep.subr.mxu0 0.0
    %440 = vmatpush1.msra.mxu0 %v373
    %441 = vmatprep.subr.mxu0 0.0
    %442 = vmatpush1.msra.mxu0 %v372
    %443 = vmatprep.subr.mxu0 0.0
    %444 = vmatpush2.msra.mxu0 %v403
    %445 = vmatprep.subr.mxu0 0.0
    %446 = vmatpush2.msra.mxu0 %v402
    %447 = vmatprep.subr.mxu0 0.0
    %448 = vmatpush2.msra.mxu0 %v401
    %449 = vmatprep.subr.mxu0 0.0
    %450 = vmatpush2.msra.mxu0 %v400
    %451 = vmatprep.subr.mxu0 0.0
    %452 = vmatpush2.msra.mxu0 %v399
    %453 = vmatprep.subr.mxu0 0.0
    %454 = vmatpush2.msra.mxu0 %v398
    %455 = vmatprep.subr.mxu0 0.0
    %456 = vmatpush2.msra.mxu0 %v397
    %457 = vmatprep.subr.mxu0 0.0
    %458 = vmatpush2.msra.mxu0 %v396
    %459 = vmatprep.subr.mxu0 0.0
    %460 = vmatpush2.msra.mxu0 %v395
    %461 = vmatprep.subr.mxu0 0.0
    %462 = vmatpush2.msra.mxu0 %v394
    %463 = vmatprep.subr.mxu0 0.0
    %464 = vmatpush2.msra.mxu0 %v393
    %465 = vmatprep.subr.mxu0 0.0
    %466 = vmatpush2.msra.mxu0 %v392
    %467 = vmatprep.subr.mxu0 0.0
    %468 = vmatpush2.msra.mxu0 %v391
    %469 = vmatprep.subr.mxu0 0.0
    %470 = vmatpush2.msra.mxu0 %v390
    %471 = vmatprep.subr.mxu0 0.0
    %472 = vmatpush2.msra.mxu0 %v389
    %473 = vmatprep.subr.mxu0 0.0
    %474 = vmatpush2.msra.mxu0 %v388
    %475 = vmatprep.mubr.f32.mxu0 %v371
    %476 = vmatmul.mubr.f32.gmra.mxu0 %v370
    %v477 = vpop.f32.mrf.mxu0
    %v478 = vadd.f32 %v409, %v477
    %v479 = vpop.f32.mrf.mxu0
    %480 = vdwg.mxu0
    %v481 = vld [vmem:[%s13] sm:$0xff]
    %v482 = vld [vmem:[%s13 + $0x8] sm:$0xff]
    %v483 = vld [vmem:[%s13 + $0x10] sm:$0xff]
    %v484 = vld [vmem:[%s14] sm:$0xff]
    %v485 = vld [vmem:[%s14 + $0x8] sm:$0xff]
    %v486 = vld [vmem:[%s14 + $0x10] sm:$0xff]
    %v487 = vld [vmem:[%s12] sm:$0xff]
    %v488 = vld [vmem:[%s12 + $0x8] sm:$0xff]
    %v489 = vld [vmem:[%s12 + $0x10] sm:$0xff]
    %v490 = vld [vmem:[#allocation7] sm:$0x3f]
    %v491 = vld [vmem:[%s7] sm:$0xff]
    %v492 = vld [vmem:[%s7 + $0x8] sm:$0xff]
    %v493 = vld [vmem:[%s7 + $0x10] sm:$0xff]
    %v494 = vld [vmem:[%s7 + $0x18] sm:$0xff]
    %v495 = vld [vmem:[%s10] sm:$0x1]
    %v497 = vlaneseq
    %v498 = vshrl.u32 %v497, 7
    %v499 = vsub.s32 0, %v498
    %v500 = vrot.slane %v495, %v499
    %vm502 = vcmask 261120
    %v504 = vsel %vm502, %v478, 0
    %506 = vmatprep.subr.mxu0 0.0
    %507 = vmatpush1.msra.mxu0 0.0
    %508 = vmatprep.subr.mxu0 0.0
    %509 = vmatpush1.msra.mxu0 0.0
    %510 = vmatprep.subr.mxu0 0.0
    %511 = vmatpush1.msra.mxu0 0.0
    %512 = vmatprep.subr.mxu0 0.0
    %513 = vmatpush1.msra.mxu0 0.0
    %514 = vmatprep.subr.mxu0 0.0
    %515 = vmatpush1.msra.mxu0 0.0
    %516 = vmatprep.subr.mxu0 0.0
    %517 = vmatpush1.msra.mxu0 0.0
    %518 = vmatprep.subr.mxu0 0.0
    %519 = vmatpush1.msra.mxu0 0.0
    %520 = vmatprep.subr.mxu0 0.0
    %521 = vmatpush1.msra.mxu0 0.0
    %522 = vmatprep.subr.mxu0 0.0
    %523 = vmatpush1.msra.mxu0 0.0
    %524 = vmatprep.subr.mxu0 0.0
    %525 = vmatpush1.msra.mxu0 0.0
    %526 = vmatprep.subr.mxu0 0.0
    %527 = vmatpush1.msra.mxu0 0.0
    %528 = vmatprep.subr.mxu0 0.0
    %529 = vmatpush1.msra.mxu0 0.0
    %530 = vmatprep.subr.mxu0 0.0
    %531 = vmatpush1.msra.mxu0 %v494
    %532 = vmatprep.subr.mxu0 0.0
    %533 = vmatpush1.msra.mxu0 %v493
    %534 = vmatprep.subr.mxu0 0.0
    %535 = vmatpush1.msra.mxu0 %v492
    %536 = vmatprep.subr.mxu0 0.0
    %537 = vmatpush1.msra.mxu0 %v491
    %538 = vmatprep.subr.mxu0 0.0
    %539 = vmatpush2.msra.mxu0 0.0
    %540 = vmatprep.subr.mxu0 0.0
    %541 = vmatpush2.msra.mxu0 0.0
    %542 = vmatprep.subr.mxu0 0.0
    %543 = vmatpush2.msra.mxu0 0.0
    %544 = vmatprep.subr.mxu0 0.0
    %545 = vmatpush2.msra.mxu0 0.0
    %546 = vmatprep.subr.mxu0 0.0
    %547 = vmatpush2.msra.mxu0 0.0
    %548 = vmatprep.subr.mxu0 0.0
    %549 = vmatpush2.msra.mxu0 0.0
    %550 = vmatprep.subr.mxu0 0.0
    %551 = vmatpush2.msra.mxu0 0.0
    %552 = vmatprep.subr.mxu0 0.0
    %553 = vmatpush2.msra.mxu0 0.0
    %554 = vmatprep.subr.mxu0 0.0
    %555 = vmatpush2.msra.mxu0 0.0
    %556 = vmatprep.subr.mxu0 0.0
    %557 = vmatpush2.msra.mxu0 0.0
    %558 = vmatprep.subr.mxu0 0.0
    %559 = vmatpush2.msra.mxu0 0.0
    %560 = vmatprep.subr.mxu0 0.0
    %561 = vmatpush2.msra.mxu0 0.0
    %562 = vmatprep.subr.mxu0 0.0
    %563 = vmatpush2.msra.mxu0 0.0
    %564 = vmatprep.subr.mxu0 0.0
    %565 = vmatpush2.msra.mxu0 0.0
    %566 = vmatprep.subr.mxu0 0.0
    %567 = vmatpush2.msra.mxu0 0.0
    %568 = vmatprep.subr.mxu0 0.0
    %569 = vmatpush2.msra.mxu0 0.0
    %570 = vmatprep.mubr.f32.mxu0 0.0
    %571 = vmatmul.mubr.f32.gmra.mxu0 %v504
    %v572 = vpop.f32.mrf.mxu0
    %v573 = vadd.f32 %v500, %v572
    %v574 = vpop.f32.mrf.mxu0
    %575 = vdwg.mxu0
    %s576 = scalar_lea.vmem %s7, 32
    %v577 = vld [vmem:[%s576] sm:$0xff]
    %v578 = vld [vmem:[%s576 + $0x8] sm:$0xff]
    %v579 = vld [vmem:[%s576 + $0x10] sm:$0xff]
    %v580 = vld [vmem:[%s576 + $0x18] sm:$0xff]
    %s581 = scalar_lea.vmem %s10, 1
    %v582 = vld [vmem:[%s581] sm:$0x1]
    %v584 = vlaneseq
    %v585 = vshrl.u32 %v584, 7
    %v586 = vsub.s32 0, %v585
    %v587 = vrot.slane %v582, %v586
    %589 = vmatprep.subr.mxu0 0.0
    %590 = vmatpush1.msra.mxu0 0.0
    %591 = vmatprep.subr.mxu0 0.0
    %592 = vmatpush1.msra.mxu0 0.0
    %593 = vmatprep.subr.mxu0 0.0
    %594 = vmatpush1.msra.mxu0 0.0
    %595 = vmatprep.subr.mxu0 0.0
    %596 = vmatpush1.msra.mxu0 0.0
    %597 = vmatprep.subr.mxu0 0.0
    %598 = vmatpush1.msra.mxu0 0.0
    %599 = vmatprep.subr.mxu0 0.0
    %600 = vmatpush1.msra.mxu0 0.0
    %601 = vmatprep.subr.mxu0 0.0
    %602 = vmatpush1.msra.mxu0 0.0
    %603 = vmatprep.subr.mxu0 0.0
    %604 = vmatpush1.msra.mxu0 0.0
    %605 = vmatprep.subr.mxu0 0.0
    %606 = vmatpush1.msra.mxu0 0.0
    %607 = vmatprep.subr.mxu0 0.0
    %608 = vmatpush1.msra.mxu0 0.0
    %609 = vmatprep.subr.mxu0 0.0
    %610 = vmatpush1.msra.mxu0 0.0
    %611 = vmatprep.subr.mxu0 0.0
    %612 = vmatpush1.msra.mxu0 0.0
    %613 = vmatprep.subr.mxu0 0.0
    %614 = vmatpush1.msra.mxu0 %v580
    %615 = vmatprep.subr.mxu0 0.0
    %616 = vmatpush1.msra.mxu0 %v579
    %617 = vmatprep.subr.mxu0 0.0
    %618 = vmatpush1.msra.mxu0 %v578
    %619 = vmatprep.subr.mxu0 0.0
    %620 = vmatpush1.msra.mxu0 %v577
    %621 = vmatprep.subr.mxu0 0.0
    %622 = vmatpush2.msra.mxu0 0.0
    %623 = vmatprep.subr.mxu0 0.0
    %624 = vmatpush2.msra.mxu0 0.0
    %625 = vmatprep.subr.mxu0 0.0
    %626 = vmatpush2.msra.mxu0 0.0
    %627 = vmatprep.subr.mxu0 0.0
    %628 = vmatpush2.msra.mxu0 0.0
    %629 = vmatprep.subr.mxu0 0.0
    %630 = vmatpush2.msra.mxu0 0.0
    %631 = vmatprep.subr.mxu0 0.0
    %632 = vmatpush2.msra.mxu0 0.0
    %633 = vmatprep.subr.mxu0 0.0
    %634 = vmatpush2.msra.mxu0 0.0
    %635 = vmatprep.subr.mxu0 0.0
    %636 = vmatpush2.msra.mxu0 0.0
    %637 = vmatprep.subr.mxu0 0.0
    %638 = vmatpush2.msra.mxu0 0.0
    %639 = vmatprep.subr.mxu0 0.0
    %640 = vmatpush2.msra.mxu0 0.0
    %641 = vmatprep.subr.mxu0 0.0
    %642 = vmatpush2.msra.mxu0 0.0
    %643 = vmatprep.subr.mxu0 0.0
    %644 = vmatpush2.msra.mxu0 0.0
    %645 = vmatprep.subr.mxu0 0.0
    %646 = vmatpush2.msra.mxu0 0.0
    %647 = vmatprep.subr.mxu0 0.0
    %648 = vmatpush2.msra.mxu0 0.0
    %649 = vmatprep.subr.mxu0 0.0
    %650 = vmatpush2.msra.mxu0 0.0
    %651 = vmatprep.subr.mxu0 0.0
    %652 = vmatpush2.msra.mxu0 0.0
    %653 = vmatprep.mubr.f32.mxu0 0.0
    %654 = vmatmul.mubr.f32.gmra.mxu0 %v504
    %v655 = vpop.f32.mrf.mxu0
    %v656 = vadd.f32 %v587, %v655
    %v657 = vpop.f32.mrf.mxu0
    %658 = vdwg.mxu0
    %s659 = scalar_lea.vmem %s7, 64
    %v660 = vld [vmem:[%s659] sm:$0xff]
    %v661 = vld [vmem:[%s659 + $0x8] sm:$0xff]
    %v662 = vld [vmem:[%s659 + $0x10] sm:$0xff]
    %v663 = vld [vmem:[%s659 + $0x18] sm:$0xff]
    %s664 = scalar_lea.vmem %s10, 2
    %v665 = vld [vmem:[%s664] sm:$0x1]
    %v667 = vlaneseq
    %v668 = vshrl.u32 %v667, 7
    %v669 = vsub.s32 0, %v668
    %v670 = vrot.slane %v665, %v669
    %672 = vmatprep.subr.mxu0 0.0
    %673 = vmatpush1.msra.mxu0 0.0
    %674 = vmatprep.subr.mxu0 0.0
    %675 = vmatpush1.msra.mxu0 0.0
    %676 = vmatprep.subr.mxu0 0.0
    %677 = vmatpush1.msra.mxu0 0.0
    %678 = vmatprep.subr.mxu0 0.0
    %679 = vmatpush1.msra.mxu0 0.0
    %680 = vmatprep.subr.mxu0 0.0
    %681 = vmatpush1.msra.mxu0 0.0
    %682 = vmatprep.subr.mxu0 0.0
    %683 = vmatpush1.msra.mxu0 0.0
    %684 = vmatprep.subr.mxu0 0.0
    %685 = vmatpush1.msra.mxu0 0.0
    %686 = vmatprep.subr.mxu0 0.0
    %687 = vmatpush1.msra.mxu0 0.0
    %688 = vmatprep.subr.mxu0 0.0
    %689 = vmatpush1.msra.mxu0 0.0
    %690 = vmatprep.subr.mxu0 0.0
    %691 = vmatpush1.msra.mxu0 0.0
    %692 = vmatprep.subr.mxu0 0.0
    %693 = vmatpush1.msra.mxu0 0.0
    %694 = vmatprep.subr.mxu0 0.0
    %695 = vmatpush1.msra.mxu0 0.0
    %696 = vmatprep.subr.mxu0 0.0
    %697 = vmatpush1.msra.mxu0 %v663
    %698 = vmatprep.subr.mxu0 0.0
    %699 = vmatpush1.msra.mxu0 %v662
    %700 = vmatprep.subr.mxu0 0.0
    %701 = vmatpush1.msra.mxu0 %v661
    %702 = vmatprep.subr.mxu0 0.0
    %703 = vmatpush1.msra.mxu0 %v660
    %704 = vmatprep.subr.mxu0 0.0
    %705 = vmatpush2.msra.mxu0 0.0
    %706 = vmatprep.subr.mxu0 0.0
    %707 = vmatpush2.msra.mxu0 0.0
    %708 = vmatprep.subr.mxu0 0.0
    %709 = vmatpush2.msra.mxu0 0.0
    %710 = vmatprep.subr.mxu0 0.0
    %711 = vmatpush2.msra.mxu0 0.0
    %712 = vmatprep.subr.mxu0 0.0
    %713 = vmatpush2.msra.mxu0 0.0
    %714 = vmatprep.subr.mxu0 0.0
    %715 = vmatpush2.msra.mxu0 0.0
    %716 = vmatprep.subr.mxu0 0.0
    %717 = vmatpush2.msra.mxu0 0.0
    %718 = vmatprep.subr.mxu0 0.0
    %719 = vmatpush2.msra.mxu0 0.0
    %720 = vmatprep.subr.mxu0 0.0
    %721 = vmatpush2.msra.mxu0 0.0
    %722 = vmatprep.subr.mxu0 0.0
    %723 = vmatpush2.msra.mxu0 0.0
    %724 = vmatprep.subr.mxu0 0.0
    %725 = vmatpush2.msra.mxu0 0.0
    %726 = vmatprep.subr.mxu0 0.0
    %727 = vmatpush2.msra.mxu0 0.0
    %728 = vmatprep.subr.mxu0 0.0
    %729 = vmatpush2.msra.mxu0 0.0
    %730 = vmatprep.subr.mxu0 0.0
    %731 = vmatpush2.msra.mxu0 0.0
    %732 = vmatprep.subr.mxu0 0.0
    %733 = vmatpush2.msra.mxu0 0.0
    %734 = vmatprep.subr.mxu0 0.0
    %735 = vmatpush2.msra.mxu0 0.0
    %736 = vmatprep.mubr.f32.mxu0 0.0
    %737 = vmatmul.mubr.f32.gmra.mxu0 %v504
    %v738 = vpop.f32.mrf.mxu0
    %v739 = vadd.f32 %v670, %v738
    %v740 = vpop.f32.mrf.mxu0
    %741 = vdwg.mxu0
    %vm742 = vcmask 48128
    %v744 = vsel %vm742, %v487, 0
    %v747 = vsel %vm742, %v488, 0
    %v750 = vsel %vm742, %v489, 0
    %vm752 = vcmask 1045504
    %v754 = vsel %vm752, %v573, 0
    %756 = vmatprep.subr.mxu0 0.0
    %757 = vmatpush1.msra.mxu0 0.0
    %758 = vmatprep.subr.mxu0 0.0
    %759 = vmatpush1.msra.mxu0 0.0
    %760 = vmatprep.subr.mxu0 0.0
    %761 = vmatpush1.msra.mxu0 0.0
    %762 = vmatprep.subr.mxu0 0.0
    %763 = vmatpush1.msra.mxu0 0.0
    %764 = vmatprep.subr.mxu0 0.0
    %765 = vmatpush1.msra.mxu0 0.0
    %766 = vmatprep.subr.mxu0 0.0
    %767 = vmatpush1.msra.mxu0 0.0
    %768 = vmatprep.subr.mxu0 0.0
    %769 = vmatpush1.msra.mxu0 0.0
    %770 = vmatprep.subr.mxu0 0.0
    %771 = vmatpush1.msra.mxu0 0.0
    %772 = vmatprep.subr.mxu0 0.0
    %773 = vmatpush1.msra.mxu0 0.0
    %774 = vmatprep.subr.mxu0 0.0
    %775 = vmatpush1.msra.mxu0 0.0
    %776 = vmatprep.subr.mxu0 0.0
    %777 = vmatpush1.msra.mxu0 0.0
    %778 = vmatprep.subr.mxu0 0.0
    %779 = vmatpush1.msra.mxu0 0.0
    %780 = vmatprep.subr.mxu0 0.0
    %781 = vmatpush1.msra.mxu0 0.0
    %782 = vmatprep.subr.mxu0 0.0
    %783 = vmatpush1.msra.mxu0 0.0
    %784 = vmatprep.subr.mxu0 0.0
    %785 = vmatpush1.msra.mxu0 0.0
    %786 = vmatprep.subr.mxu0 0.0
    %787 = vmatpush1.msra.mxu0 %v754
    %788 = vmatprep.subr.mxu0 0.0
    %789 = vmatpush2.msra.mxu0 0.0
    %790 = vmatprep.subr.mxu0 0.0
    %791 = vmatpush2.msra.mxu0 0.0
    %792 = vmatprep.subr.mxu0 0.0
    %793 = vmatpush2.msra.mxu0 0.0
    %794 = vmatprep.subr.mxu0 0.0
    %795 = vmatpush2.msra.mxu0 0.0
    %796 = vmatprep.subr.mxu0 0.0
    %797 = vmatpush2.msra.mxu0 0.0
    %798 = vmatprep.subr.mxu0 0.0
    %799 = vmatpush2.msra.mxu0 0.0
    %800 = vmatprep.subr.mxu0 0.0
    %801 = vmatpush2.msra.mxu0 0.0
    %802 = vmatprep.subr.mxu0 0.0
    %803 = vmatpush2.msra.mxu0 0.0
    %804 = vmatprep.subr.mxu0 0.0
    %805 = vmatpush2.msra.mxu0 0.0
    %806 = vmatprep.subr.mxu0 0.0
    %807 = vmatpush2.msra.mxu0 0.0
    %808 = vmatprep.subr.mxu0 0.0
    %809 = vmatpush2.msra.mxu0 0.0
    %810 = vmatprep.subr.mxu0 0.0
    %811 = vmatpush2.msra.mxu0 0.0
    %812 = vmatprep.subr.mxu0 0.0
    %813 = vmatpush2.msra.mxu0 0.0
    %814 = vmatprep.subr.mxu0 0.0
    %815 = vmatpush2.msra.mxu0 0.0
    %816 = vmatprep.subr.mxu0 0.0
    %817 = vmatpush2.msra.mxu0 0.0
    %818 = vmatprep.subr.mxu0 0.0
    %819 = vmatpush2.msra.mxu0 0.0
    %820 = vmatprep.mubr.f32.mxu0 0.0
    %821 = vmatmul.mubr.f32.gmra.mxu0 %v744
    %v822 = vpop.f32.mrf.mxu0
    %v823 = vadd.f32 0.0, %v822
    %v824 = vpop.f32.mrf.mxu0
    %825 = vmatprep.mubr.f32.mxu0 0.0
    %826 = vmatmul.mubr.f32.gmra.mxu0 %v747
    %v827 = vpop.f32.mrf.mxu0
    %v828 = vadd.f32 0.0, %v827
    %v829 = vpop.f32.mrf.mxu0
    %830 = vmatprep.mubr.f32.mxu0 0.0
    %831 = vmatmul.mubr.f32.gmra.mxu0 %v750
    %v832 = vpop.f32.mrf.mxu0
    %v833 = vadd.f32 0.0, %v832
    %v834 = vpop.f32.mrf.mxu0
    %835 = vdwg.mxu0
    %v836 = vmul.f32 %v823, %v481
    %v837 = vmul.f32 %v828, %v482
    %v838 = vmul.f32 %v833, %v483
    %v840 = vsel %vm502, %v836, 0
    %v843 = vsel %vm502, %v837, 0
    %v846 = vsel %vm502, %v838, 0
    %v849 = vsel %vm502, %v656, 0
    %851 = vmatprep.subr.mxu0 0.0
    %852 = vmatpush1.xpose.msra.mxu0 0.0
    %853 = vmatprep.subr.mxu0 0.0
    %854 = vmatpush1.xpose.msra.mxu0 0.0
    %855 = vmatprep.subr.mxu0 0.0
    %856 = vmatpush1.xpose.msra.mxu0 0.0
    %857 = vmatprep.subr.mxu0 0.0
    %858 = vmatpush1.xpose.msra.mxu0 0.0
    %859 = vmatprep.subr.mxu0 0.0
    %860 = vmatpush1.xpose.msra.mxu0 0.0
    %861 = vmatprep.subr.mxu0 0.0
    %862 = vmatpush1.xpose.msra.mxu0 0.0
    %863 = vmatprep.subr.mxu0 0.0
    %864 = vmatpush1.xpose.msra.mxu0 0.0
    %865 = vmatprep.subr.mxu0 0.0
    %866 = vmatpush1.xpose.msra.mxu0 0.0
    %867 = vmatprep.subr.mxu0 0.0
    %868 = vmatpush1.xpose.msra.mxu0 0.0
    %869 = vmatprep.subr.mxu0 0.0
    %870 = vmatpush1.xpose.msra.mxu0 0.0
    %871 = vmatprep.subr.mxu0 0.0
    %872 = vmatpush1.xpose.msra.mxu0 0.0
    %873 = vmatprep.subr.mxu0 0.0
    %874 = vmatpush1.xpose.msra.mxu0 0.0
    %875 = vmatprep.subr.mxu0 0.0
    %876 = vmatpush1.xpose.msra.mxu0 0.0
    %877 = vmatprep.subr.mxu0 0.0
    %878 = vmatpush1.xpose.msra.mxu0 0.0
    %879 = vmatprep.subr.mxu0 0.0
    %880 = vmatpush1.xpose.msra.mxu0 0.0
    %881 = vmatprep.subr.mxu0 0.0
    %882 = vmatpush1.xpose.msra.mxu0 %v849
    %883 = vmatprep.subr.mxu0 0.0
    %884 = vmatpush2.xpose.msra.mxu0 0.0
    %885 = vmatprep.subr.mxu0 0.0
    %886 = vmatpush2.xpose.msra.mxu0 0.0
    %887 = vmatprep.subr.mxu0 0.0
    %888 = vmatpush2.xpose.msra.mxu0 0.0
    %889 = vmatprep.subr.mxu0 0.0
    %890 = vmatpush2.xpose.msra.mxu0 0.0
    %891 = vmatprep.subr.mxu0 0.0
    %892 = vmatpush2.xpose.msra.mxu0 0.0
    %893 = vmatprep.subr.mxu0 0.0
    %894 = vmatpush2.xpose.msra.mxu0 0.0
    %895 = vmatprep.subr.mxu0 0.0
    %896 = vmatpush2.xpose.msra.mxu0 0.0
    %897 = vmatprep.subr.mxu0 0.0
    %898 = vmatpush2.xpose.msra.mxu0 0.0
    %899 = vmatprep.subr.mxu0 0.0
    %900 = vmatpush2.xpose.msra.mxu0 0.0
    %901 = vmatprep.subr.mxu0 0.0
    %902 = vmatpush2.xpose.msra.mxu0 0.0
    %903 = vmatprep.subr.mxu0 0.0
    %904 = vmatpush2.xpose.msra.mxu0 0.0
    %905 = vmatprep.subr.mxu0 0.0
    %906 = vmatpush2.xpose.msra.mxu0 0.0
    %907 = vmatprep.subr.mxu0 0.0
    %908 = vmatpush2.xpose.msra.mxu0 0.0
    %909 = vmatprep.subr.mxu0 0.0
    %910 = vmatpush2.xpose.msra.mxu0 0.0
    %911 = vmatprep.subr.mxu0 0.0
    %912 = vmatpush2.xpose.msra.mxu0 0.0
    %913 = vmatprep.subr.mxu0 0.0
    %914 = vmatpush2.xpose.msra.mxu0 0.0
    %915 = vmatprep.mubr.f32.mxu0 0.0
    %916 = vmatmul.mubr.f32.gmra.mxu0 %v840
    %v917 = vpop.f32.mrf.mxu0
    %v918 = vadd.f32 %v484, %v917
    %v919 = vpop.f32.mrf.mxu0
    %920 = vmatprep.mubr.f32.mxu0 0.0
    %921 = vmatmul.mubr.f32.gmra.mxu0 %v843
    %v922 = vpop.f32.mrf.mxu0
    %v923 = vadd.f32 %v485, %v922
    %v924 = vpop.f32.mrf.mxu0
    %925 = vmatprep.mubr.f32.mxu0 0.0
    %926 = vmatmul.mubr.f32.gmra.mxu0 %v846
    %v927 = vpop.f32.mrf.mxu0
    %v928 = vadd.f32 %v486, %v927
    %v929 = vpop.f32.mrf.mxu0
    %930 = vdwg.mxu0
    %v931 = vsel %vm742, %v918, -inf
    %932 = vmax.xlane.f32.xlu0 %v931
    %v933 = vpop.xlane.xlu0 %932
    %v934 = vsel %vm742, %v923, -inf
    %935 = vmax.xlane.f32.xlu0 %v934
    %v936 = vpop.xlane.xlu0 %935
    %v937 = vsel %vm742, %v928, -inf
    %938 = vmax.xlane.f32.xlu0 %v937
    %v939 = vpop.xlane.xlu0 %938
    %v940 = vsub.f32 %v918, %v933
    %v941 = vsub.f32 %v923, %v936
    %v942 = vsub.f32 %v928, %v939
    %v943 = vmul.f32 %v940, 1.442695
    %v944 = vpow.pop %v943
    %v945 = vmul.f32 %v941, 1.442695
    %v946 = vpow.pop %v945
    %v947 = vmul.f32 %v942, 1.442695
    %v948 = vpow.pop %v947
    %v949 = vsel %vm742, %v944, 0.0
    %950 = vadd.xlane.f32.xlu0 %v949
    %v951 = vpop.xlane.xlu0 %950
    %v952 = vsel %vm742, %v946, 0.0
    %953 = vadd.xlane.f32.xlu0 %v952
    %v954 = vpop.xlane.xlu0 %953
    %v955 = vsel %vm742, %v948, 0.0
    %956 = vadd.xlane.f32.xlu0 %v955
    %v957 = vpop.xlane.xlu0 %956
    %v958 = vrcp.pop %v951
    %v959 = vrcp.pop %v954
    %v960 = vrcp.pop %v957
    %v961 = vmul.f32 %v944, %v958
    %v962 = vmul.f32 %v946, %v959
    %v963 = vmul.f32 %v948, %v960
    %v965 = vsel %vm742, %v961, 0
    %v968 = vsel %vm742, %v962, 0
    %v971 = vsel %vm742, %v963, 0
    %v974 = vsel %vm752, %v739, 0
    %976 = vmatprep.subr.mxu0 0.0
    %977 = vmatpush1.msra.mxu0 0.0
    %978 = vmatprep.subr.mxu0 0.0
    %979 = vmatpush1.msra.mxu0 0.0
    %980 = vmatprep.subr.mxu0 0.0
    %981 = vmatpush1.msra.mxu0 0.0
    %982 = vmatprep.subr.mxu0 0.0
    %983 = vmatpush1.msra.mxu0 0.0
    %984 = vmatprep.subr.mxu0 0.0
    %985 = vmatpush1.msra.mxu0 0.0
    %986 = vmatprep.subr.mxu0 0.0
    %987 = vmatpush1.msra.mxu0 0.0
    %988 = vmatprep.subr.mxu0 0.0
    %989 = vmatpush1.msra.mxu0 0.0
    %990 = vmatprep.subr.mxu0 0.0
    %991 = vmatpush1.msra.mxu0 0.0
    %992 = vmatprep.subr.mxu0 0.0
    %993 = vmatpush1.msra.mxu0 0.0
    %994 = vmatprep.subr.mxu0 0.0
    %995 = vmatpush1.msra.mxu0 0.0
    %996 = vmatprep.subr.mxu0 0.0
    %997 = vmatpush1.msra.mxu0 0.0
    %998 = vmatprep.subr.mxu0 0.0
    %999 = vmatpush1.msra.mxu0 0.0
    %1000 = vmatprep.subr.mxu0 0.0
    %1001 = vmatpush1.msra.mxu0 0.0
    %1002 = vmatprep.subr.mxu0 0.0
    %1003 = vmatpush1.msra.mxu0 0.0
    %1004 = vmatprep.subr.mxu0 0.0
    %1005 = vmatpush1.msra.mxu0 0.0
    %1006 = vmatprep.subr.mxu0 0.0
    %1007 = vmatpush1.msra.mxu0 %v974
    %1008 = vmatprep.subr.mxu0 0.0
    %1009 = vmatpush2.msra.mxu0 0.0
    %1010 = vmatprep.subr.mxu0 0.0
    %1011 = vmatpush2.msra.mxu0 0.0
    %1012 = vmatprep.subr.mxu0 0.0
    %1013 = vmatpush2.msra.mxu0 0.0
    %1014 = vmatprep.subr.mxu0 0.0
    %1015 = vmatpush2.msra.mxu0 0.0
    %1016 = vmatprep.subr.mxu0 0.0
    %1017 = vmatpush2.msra.mxu0 0.0
    %1018 = vmatprep.subr.mxu0 0.0
    %1019 = vmatpush2.msra.mxu0 0.0
    %1020 = vmatprep.subr.mxu0 0.0
    %1021 = vmatpush2.msra.mxu0 0.0
    %1022 = vmatprep.subr.mxu0 0.0
    %1023 = vmatpush2.msra.mxu0 0.0
    %1024 = vmatprep.subr.mxu0 0.0
    %1025 = vmatpush2.msra.mxu0 0.0
    %1026 = vmatprep.subr.mxu0 0.0
    %1027 = vmatpush2.msra.mxu0 0.0
    %1028 = vmatprep.subr.mxu0 0.0
    %1029 = vmatpush2.msra.mxu0 0.0
    %1030 = vmatprep.subr.mxu0 0.0
    %1031 = vmatpush2.msra.mxu0 0.0
    %1032 = vmatprep.subr.mxu0 0.0
    %1033 = vmatpush2.msra.mxu0 0.0
    %1034 = vmatprep.subr.mxu0 0.0
    %1035 = vmatpush2.msra.mxu0 0.0
    %1036 = vmatprep.subr.mxu0 0.0
    %1037 = vmatpush2.msra.mxu0 0.0
    %1038 = vmatprep.subr.mxu0 0.0
    %1039 = vmatpush2.msra.mxu0 0.0
    %1040 = vmatprep.mubr.f32.mxu0 0.0
    %1041 = vmatmul.mubr.f32.gmra.mxu0 %v965
    %v1042 = vpop.f32.mrf.mxu0
    %v1043 = vadd.f32 0.0, %v1042
    %v1044 = vpop.f32.mrf.mxu0
    %1045 = vmatprep.mubr.f32.mxu0 0.0
    %1046 = vmatmul.mubr.f32.gmra.mxu0 %v968
    %v1047 = vpop.f32.mrf.mxu0
    %v1048 = vadd.f32 0.0, %v1047
    %v1049 = vpop.f32.mrf.mxu0
    %1050 = vmatprep.mubr.f32.mxu0 0.0
    %1051 = vmatmul.mubr.f32.gmra.mxu0 %v971
    %v1052 = vpop.f32.mrf.mxu0
    %v1053 = vadd.f32 0.0, %v1052
    %v1054 = vpop.f32.mrf.mxu0
    %1055 = vdwg.mxu0
    %v1056 = vmul.f32 %v1043, %v481
    %v1057 = vmul.f32 %v1048, %v482
    %v1058 = vmul.f32 %v1053, %v483
    %vm1059 = vcmask 195584
    %v1061 = vsel %vm1059, %v490, 0
    %1063 = vmatprep.subr.mxu0 0.0
    %1064 = vmatpush1.msra.mxu0 0.0
    %1065 = vmatprep.subr.mxu0 0.0
    %1066 = vmatpush1.msra.mxu0 0.0
    %1067 = vmatprep.subr.mxu0 0.0
    %1068 = vmatpush1.msra.mxu0 0.0
    %1069 = vmatprep.subr.mxu0 0.0
    %1070 = vmatpush1.msra.mxu0 0.0
    %1071 = vmatprep.subr.mxu0 0.0
    %1072 = vmatpush1.msra.mxu0 0.0
    %1073 = vmatprep.subr.mxu0 0.0
    %1074 = vmatpush1.msra.mxu0 0.0
    %1075 = vmatprep.subr.mxu0 0.0
    %1076 = vmatpush1.msra.mxu0 0.0
    %1077 = vmatprep.subr.mxu0 0.0
    %1078 = vmatpush1.msra.mxu0 0.0
    %1079 = vmatprep.subr.mxu0 0.0
    %1080 = vmatpush1.msra.mxu0 0.0
    %1081 = vmatprep.subr.mxu0 0.0
    %1082 = vmatpush1.msra.mxu0 0.0
    %1083 = vmatprep.subr.mxu0 0.0
    %1084 = vmatpush1.msra.mxu0 0.0
    %1085 = vmatprep.subr.mxu0 0.0
    %1086 = vmatpush1.msra.mxu0 0.0
    %1087 = vmatprep.subr.mxu0 0.0
    %1088 = vmatpush1.msra.mxu0 0.0
    %1089 = vmatprep.subr.mxu0 0.0
    %1090 = vmatpush1.msra.mxu0 %v1058
    %1091 = vmatprep.subr.mxu0 0.0
    %1092 = vmatpush1.msra.mxu0 %v1057
    %1093 = vmatprep.subr.mxu0 0.0
    %1094 = vmatpush1.msra.mxu0 %v1056
    %1095 = vmatprep.subr.mxu0 0.0
    %1096 = vmatpush2.msra.mxu0 0.0
    %1097 = vmatprep.subr.mxu0 0.0
    %1098 = vmatpush2.msra.mxu0 0.0
    %1099 = vmatprep.subr.mxu0 0.0
    %1100 = vmatpush2.msra.mxu0 0.0
    %1101 = vmatprep.subr.mxu0 0.0
    %1102 = vmatpush2.msra.mxu0 0.0
    %1103 = vmatprep.subr.mxu0 0.0
    %1104 = vmatpush2.msra.mxu0 0.0
    %1105 = vmatprep.subr.mxu0 0.0
    %1106 = vmatpush2.msra.mxu0 0.0
    %1107 = vmatprep.subr.mxu0 0.0
    %1108 = vmatpush2.msra.mxu0 0.0
    %1109 = vmatprep.subr.mxu0 0.0
    %1110 = vmatpush2.msra.mxu0 0.0
    %1111 = vmatprep.subr.mxu0 0.0
    %1112 = vmatpush2.msra.mxu0 0.0
    %1113 = vmatprep.subr.mxu0 0.0
    %1114 = vmatpush2.msra.mxu0 0.0
    %1115 = vmatprep.subr.mxu0 0.0
    %1116 = vmatpush2.msra.mxu0 0.0
    %1117 = vmatprep.subr.mxu0 0.0
    %1118 = vmatpush2.msra.mxu0 0.0
    %1119 = vmatprep.subr.mxu0 0.0
    %1120 = vmatpush2.msra.mxu0 0.0
    %1121 = vmatprep.subr.mxu0 0.0
    %1122 = vmatpush2.msra.mxu0 0.0
    %1123 = vmatprep.subr.mxu0 0.0
    %1124 = vmatpush2.msra.mxu0 0.0
    %1125 = vmatprep.subr.mxu0 0.0
    %1126 = vmatpush2.msra.mxu0 0.0
    %1127 = vmatprep.mubr.f32.mxu0 0.0
    %1128 = vmatmul.mubr.f32.gmra.mxu0 %v1061
    %v1129 = vpop.f32.mrf.mxu0
    %v1130 = vadd.f32 0.0, %v1129
    %v1131 = vpop.f32.mrf.mxu0
    %1132 = vdwg.mxu0
    %s1133 = scalar_lea.vmem %s7, 96
    %v1134 = vld [vmem:[%s1133] sm:$0xff]
    %v1135 = vld [vmem:[%s1133 + $0x8] sm:$0xff]
    %v1136 = vld [vmem:[%s1133 + $0x10] sm:$0xff]
    %v1137 = vld [vmem:[%s1133 + $0x18] sm:$0xff]
    %s1138 = scalar_lea.vmem %s10, 3
    %v1139 = vld [vmem:[%s1138] sm:$0x1]
    %v1141 = vlaneseq
    %v1142 = vshrl.u32 %v1141, 7
    %v1143 = vsub.s32 0, %v1142
    %v1144 = vrot.slane %v1139, %v1143
    %v1147 = vsel %vm502, %v1130, 0
    %1149 = vmatprep.subr.mxu0 0.0
    %1150 = vmatpush1.msra.mxu0 0.0
    %1151 = vmatprep.subr.mxu0 0.0
    %1152 = vmatpush1.msra.mxu0 0.0
    %1153 = vmatprep.subr.mxu0 0.0
    %1154 = vmatpush1.msra.mxu0 0.0
    %1155 = vmatprep.subr.mxu0 0.0
    %1156 = vmatpush1.msra.mxu0 0.0
    %1157 = vmatprep.subr.mxu0 0.0
    %1158 = vmatpush1.msra.mxu0 0.0
    %1159 = vmatprep.subr.mxu0 0.0
    %1160 = vmatpush1.msra.mxu0 0.0
    %1161 = vmatprep.subr.mxu0 0.0
    %1162 = vmatpush1.msra.mxu0 0.0
    %1163 = vmatprep.subr.mxu0 0.0
    %1164 = vmatpush1.msra.mxu0 0.0
    %1165 = vmatprep.subr.mxu0 0.0
    %1166 = vmatpush1.msra.mxu0 0.0
    %1167 = vmatprep.subr.mxu0 0.0
    %1168 = vmatpush1.msra.mxu0 0.0
    %1169 = vmatprep.subr.mxu0 0.0
    %1170 = vmatpush1.msra.mxu0 0.0
    %1171 = vmatprep.subr.mxu0 0.0
    %1172 = vmatpush1.msra.mxu0 0.0
    %1173 = vmatprep.subr.mxu0 0.0
    %1174 = vmatpush1.msra.mxu0 %v1137
    %1175 = vmatprep.subr.mxu0 0.0
    %1176 = vmatpush1.msra.mxu0 %v1136
    %1177 = vmatprep.subr.mxu0 0.0
    %1178 = vmatpush1.msra.mxu0 %v1135
    %1179 = vmatprep.subr.mxu0 0.0
    %1180 = vmatpush1.msra.mxu0 %v1134
    %1181 = vmatprep.subr.mxu0 0.0
    %1182 = vmatpush2.msra.mxu0 0.0
    %1183 = vmatprep.subr.mxu0 0.0
    %1184 = vmatpush2.msra.mxu0 0.0
    %1185 = vmatprep.subr.mxu0 0.0
    %1186 = vmatpush2.msra.mxu0 0.0
    %1187 = vmatprep.subr.mxu0 0.0
    %1188 = vmatpush2.msra.mxu0 0.0
    %1189 = vmatprep.subr.mxu0 0.0
    %1190 = vmatpush2.msra.mxu0 0.0
    %1191 = vmatprep.subr.mxu0 0.0
    %1192 = vmatpush2.msra.mxu0 0.0
    %1193 = vmatprep.subr.mxu0 0.0
    %1194 = vmatpush2.msra.mxu0 0.0
    %1195 = vmatprep.subr.mxu0 0.0
    %1196 = vmatpush2.msra.mxu0 0.0
    %1197 = vmatprep.subr.mxu0 0.0
    %1198 = vmatpush2.msra.mxu0 0.0
    %1199 = vmatprep.subr.mxu0 0.0
    %1200 = vmatpush2.msra.mxu0 0.0
    %1201 = vmatprep.subr.mxu0 0.0
    %1202 = vmatpush2.msra.mxu0 0.0
    %1203 = vmatprep.subr.mxu0 0.0
    %1204 = vmatpush2.msra.mxu0 0.0
    %1205 = vmatprep.subr.mxu0 0.0
    %1206 = vmatpush2.msra.mxu0 0.0
    %1207 = vmatprep.subr.mxu0 0.0
    %1208 = vmatpush2.msra.mxu0 0.0
    %1209 = vmatprep.subr.mxu0 0.0
    %1210 = vmatpush2.msra.mxu0 0.0
    %1211 = vmatprep.subr.mxu0 0.0
    %1212 = vmatpush2.msra.mxu0 0.0
    %1213 = vmatprep.mubr.f32.mxu0 0.0
    %1214 = vmatmul.mubr.f32.gmra.mxu0 %v1147
    %v1215 = vpop.f32.mrf.mxu0
    %v1216 = vadd.f32 %v1144, %v1215
    %v1217 = vpop.f32.mrf.mxu0
    %1218 = vdwg.mxu0
    %v1219 = vadd.f32 %v478, %v1216
    %s1220 = scalar_lea.vmem %s10, 4
    %v1221 = vld [vmem:[%s1220] sm:$0x1]
    %s1222 = scalar_lea.vmem %s10, 5
    %v1223 = vld [vmem:[%s1222] sm:$0x1]
    %vm1224 = vcmask 259072
    %v1225 = vsel %vm1224, %v1219, 0.0
    %1226 = vadd.xlane.f32.xlu0 %v1225
    %v1227 = vpop.xlane.xlu0 %1226
    %v1228 = vrcp.pop 32.0
    %v1229 = vmul.f32 %v1227, %v1228
    %v1230 = vsub.f32 %v1219, %v1229
    %v1231 = vmul.f32 %v1230, %v1230
    %v1232 = vsel %vm1224, %v1231, 0.0
    %1233 = vadd.xlane.f32.xlu0 %v1232
    %v1234 = vpop.xlane.xlu0 %1233
    %v1235 = vmul.f32 %v1234, %v1228
    %v1236 = vadd.f32 %v1235, 1e-05
    %v1237 = vrsqrt.pop %v1236
    %v1238 = vmul.f32 %v1230, %v1237
    %v1240 = vlaneseq
    %v1241 = vshrl.u32 %v1240, 7
    %v1242 = vsub.s32 0, %v1241
    %v1243 = vrot.slane %v1221, %v1242
    %v1245 = vmul.f32 %v1238, %v1243
    %v1247 = vlaneseq
    %v1248 = vshrl.u32 %v1247, 7
    %v1249 = vsub.s32 0, %v1248
    %v1250 = vrot.slane %v1223, %v1249
    %v1252 = vadd.f32 %v1245, %v1250
    %v1253 = vld [vmem:[%s8] sm:$0xff]
    %v1254 = vld [vmem:[%s8 + $0x8] sm:$0xff]
    %v1255 = vld [vmem:[%s8 + $0x10] sm:$0xff]
    %v1256 = vld [vmem:[%s8 + $0x18] sm:$0xff]
    %v1257 = vld [vmem:[#allocation5] sm:$0x1]
    %v1259 = vlaneseq
    %v1260 = vshrl.u32 %v1259, 7
    %v1261 = vsub.s32 0, %v1260
    %v1262 = vrot.slane %v1257, %v1261
    %v1265 = vsel %vm502, %v1252, 0
    %1267 = vmatprep.subr.mxu0 0.0
    %1268 = vmatpush1.msra.mxu0 0.0
    %1269 = vmatprep.subr.mxu0 0.0
    %1270 = vmatpush1.msra.mxu0 0.0
    %1271 = vmatprep.subr.mxu0 0.0
    %1272 = vmatpush1.msra.mxu0 0.0
    %1273 = vmatprep.subr.mxu0 0.0
    %1274 = vmatpush1.msra.mxu0 0.0
    %1275 = vmatprep.subr.mxu0 0.0
    %1276 = vmatpush1.msra.mxu0 0.0
    %1277 = vmatprep.subr.mxu0 0.0
    %1278 = vmatpush1.msra.mxu0 0.0
    %1279 = vmatprep.subr.mxu0 0.0
    %1280 = vmatpush1.msra.mxu0 0.0
    %1281 = vmatprep.subr.mxu0 0.0
    %1282 = vmatpush1.msra.mxu0 0.0
    %1283 = vmatprep.subr.mxu0 0.0
    %1284 = vmatpush1.msra.mxu0 0.0
    %1285 = vmatprep.subr.mxu0 0.0
    %1286 = vmatpush1.msra.mxu0 0.0
    %1287 = vmatprep.subr.mxu0 0.0
    %1288 = vmatpush1.msra.mxu0 0.0
    %1289 = vmatprep.subr.mxu0 0.0
    %1290 = vmatpush1.msra.mxu0 0.0
    %1291 = vmatprep.subr.mxu0 0.0
    %1292 = vmatpush1.msra.mxu0 %v1256
    %1293 = vmatprep.subr.mxu0 0.0
    %1294 = vmatpush1.msra.mxu0 %v1255
    %1295 = vmatprep.subr.mxu0 0.0
    %1296 = vmatpush1.msra.mxu0 %v1254
    %1297 = vmatprep.subr.mxu0 0.0
    %1298 = vmatpush1.msra.mxu0 %v1253
    %1299 = vmatprep.subr.mxu0 0.0
    %1300 = vmatpush2.msra.mxu0 0.0
    %1301 = vmatprep.subr.mxu0 0.0
    %1302 = vmatpush2.msra.mxu0 0.0
    %1303 = vmatprep.subr.mxu0 0.0
    %1304 = vmatpush2.msra.mxu0 0.0
    %1305 = vmatprep.subr.mxu0 0.0
    %1306 = vmatpush2.msra.mxu0 0.0
    %1307 = vmatprep.subr.mxu0 0.0
    %1308 = vmatpush2.msra.mxu0 0.0
    %1309 = vmatprep.subr.mxu0 0.0
    %1310 = vmatpush2.msra.mxu0 0.0
    %1311 = vmatprep.subr.mxu0 0.0
    %1312 = vmatpush2.msra.mxu0 0.0
    %1313 = vmatprep.subr.mxu0 0.0
    %1314 = vmatpush2.msra.mxu0 0.0
    %1315 = vmatprep.subr.mxu0 0.0
    %1316 = vmatpush2.msra.mxu0 0.0
    %1317 = vmatprep.subr.mxu0 0.0
    %1318 = vmatpush2.msra.mxu0 0.0
    %1319 = vmatprep.subr.mxu0 0.0
    %1320 = vmatpush2.msra.mxu0 0.0
    %1321 = vmatprep.subr.mxu0 0.0
    %1322 = vmatpush2.msra.mxu0 0.0
    %1323 = vmatprep.subr.mxu0 0.0
    %1324 = vmatpush2.msra.mxu0 0.0
    %1325 = vmatprep.subr.mxu0 0.0
    %1326 = vmatpush2.msra.mxu0 0.0
    %1327 = vmatprep.subr.mxu0 0.0
    %1328 = vmatpush2.msra.mxu0 0.0
    %1329 = vmatprep.subr.mxu0 0.0
    %1330 = vmatpush2.msra.mxu0 0.0
    %1331 = vmatprep.mubr.f32.mxu0 0.0
    %1332 = vmatmul.mubr.f32.gmra.mxu0 %v1265
    %v1333 = vpop.f32.mrf.mxu0
    %v1334 = vadd.f32 %v1262, %v1333
    %v1335 = vpop.f32.mrf.mxu0
    %1336 = vdwg.mxu0
    %v1337 = vmul.f32 %v1334, 0.5
    %v1338 = vmul.f32 %v1334, 0.70710677
    %vm1339 = vcmp.ge.f32.partialorder %v1338, 0.0
    %v1340 = vsel %vm1339, 1.0, -1.0
    %v1341 = vand.u32 2147483647, %v1338
    %v1342 = vmul.f32 %v1341, 0.3275911
    %v1343 = vadd.f32 %v1342, 1.0
    %v1344 = vrcp.pop %v1343
    %v1345 = vmul.f32 1.0, %v1344
    %v1346 = vmul.f32 %v1345, 1.0614054
    %v1347 = vadd.f32 %v1346, -1.4531521
    %v1348 = vmul.f32 %v1347, %v1345
    %v1349 = vadd.f32 %v1348, 1.4214138
    %v1350 = vmul.f32 %v1349, %v1345
    %v1351 = vadd.f32 %v1350, -0.28449672
    %v1352 = vmul.f32 %v1351, %v1345
    %v1353 = vadd.f32 %v1352, 0.2548296
    %v1354 = vmul.f32 %v1353, %v1345
    %v1355 = vsub.f32 0.0, %v1341
    %v1356 = vmul.f32 %v1355, %v1341
    %v1357 = vmul.f32 %v1356, 1.442695
    %v1358 = vpow.pop %v1357
    %v1359 = vmul.f32 %v1354, %v1358
    %v1360 = vsub.f32 1.0, %v1359
    %v1361 = vmul.f32 %v1340, %v1360
    %v1362 = vadd.f32 %v1361, 1.0
    %v1363 = vmul.f32 %v1337, %v1362
    %v1364 = vld [vmem:[%s9] sm:$0xff]
    %v1365 = vld [vmem:[%s9 + $0x8] sm:$0xff]
    %v1366 = vld [vmem:[%s9 + $0x10] sm:$0xff]
    %v1367 = vld [vmem:[%s9 + $0x18] sm:$0xff]
    %v1368 = vld [vmem:[%s9 + $0x20] sm:$0xff]
    %v1369 = vld [vmem:[%s9 + $0x28] sm:$0xff]
    %v1370 = vld [vmem:[%s9 + $0x30] sm:$0xff]
    %v1371 = vld [vmem:[%s9 + $0x38] sm:$0xff]
    %s1372 = scalar_lea.vmem %s10, 6
    %v1373 = vld [vmem:[%s1372] sm:$0x1]
    %v1375 = vlaneseq
    %v1376 = vshrl.u32 %v1375, 7
    %v1377 = vsub.s32 0, %v1376
    %v1378 = vrot.slane %v1373, %v1377
    %vm1380 = vcmask 523264
    %v1382 = vsel %vm1380, %v1363, 0
    %1384 = vmatprep.subr.mxu0 0.0
    %1385 = vmatpush1.msra.mxu0 0.0
    %1386 = vmatprep.subr.mxu0 0.0
    %1387 = vmatpush1.msra.mxu0 0.0
    %1388 = vmatprep.subr.mxu0 0.0
    %1389 = vmatpush1.msra.mxu0 0.0
    %1390 = vmatprep.subr.mxu0 0.0
    %1391 = vmatpush1.msra.mxu0 0.0
    %1392 = vmatprep.subr.mxu0 0.0
    %1393 = vmatpush1.msra.mxu0 0.0
    %1394 = vmatprep.subr.mxu0 0.0
    %1395 = vmatpush1.msra.mxu0 0.0
    %1396 = vmatprep.subr.mxu0 0.0
    %1397 = vmatpush1.msra.mxu0 0.0
    %1398 = vmatprep.subr.mxu0 0.0
    %1399 = vmatpush1.msra.mxu0 0.0
    %1400 = vmatprep.subr.mxu0 0.0
    %1401 = vmatpush1.msra.mxu0 %v1371
    %1402 = vmatprep.subr.mxu0 0.0
    %1403 = vmatpush1.msra.mxu0 %v1370
    %1404 = vmatprep.subr.mxu0 0.0
    %1405 = vmatpush1.msra.mxu0 %v1369
    %1406 = vmatprep.subr.mxu0 0.0
    %1407 = vmatpush1.msra.mxu0 %v1368
    %1408 = vmatprep.subr.mxu0 0.0
    %1409 = vmatpush1.msra.mxu0 %v1367
    %1410 = vmatprep.subr.mxu0 0.0
    %1411 = vmatpush1.msra.mxu0 %v1366
    %1412 = vmatprep.subr.mxu0 0.0
    %1413 = vmatpush1.msra.mxu0 %v1365
    %1414 = vmatprep.subr.mxu0 0.0
    %1415 = vmatpush1.msra.mxu0 %v1364
    %1416 = vmatprep.subr.mxu0 0.0
    %1417 = vmatpush2.msra.mxu0 0.0
    %1418 = vmatprep.subr.mxu0 0.0
    %1419 = vmatpush2.msra.mxu0 0.0
    %1420 = vmatprep.subr.mxu0 0.0
    %1421 = vmatpush2.msra.mxu0 0.0
    %1422 = vmatprep.subr.mxu0 0.0
    %1423 = vmatpush2.msra.mxu0 0.0
    %1424 = vmatprep.subr.mxu0 0.0
    %1425 = vmatpush2.msra.mxu0 0.0
    %1426 = vmatprep.subr.mxu0 0.0
    %1427 = vmatpush2.msra.mxu0 0.0
    %1428 = vmatprep.subr.mxu0 0.0
    %1429 = vmatpush2.msra.mxu0 0.0
    %1430 = vmatprep.subr.mxu0 0.0
    %1431 = vmatpush2.msra.mxu0 0.0
    %1432 = vmatprep.subr.mxu0 0.0
    %1433 = vmatpush2.msra.mxu0 0.0
    %1434 = vmatprep.subr.mxu0 0.0
    %1435 = vmatpush2.msra.mxu0 0.0
    %1436 = vmatprep.subr.mxu0 0.0
    %1437 = vmatpush2.msra.mxu0 0.0
    %1438 = vmatprep.subr.mxu0 0.0
    %1439 = vmatpush2.msra.mxu0 0.0
    %1440 = vmatprep.subr.mxu0 0.0
    %1441 = vmatpush2.msra.mxu0 0.0
    %1442 = vmatprep.subr.mxu0 0.0
    %1443 = vmatpush2.msra.mxu0 0.0
    %1444 = vmatprep.subr.mxu0 0.0
    %1445 = vmatpush2.msra.mxu0 0.0
    %1446 = vmatprep.subr.mxu0 0.0
    %1447 = vmatpush2.msra.mxu0 0.0
    %1448 = vmatprep.mubr.f32.mxu0 0.0
    %1449 = vmatmul.mubr.f32.gmra.mxu0 %v1382
    %v1450 = vpop.f32.mrf.mxu0
    %v1451 = vadd.f32 %v1378, %v1450
    %v1452 = vpop.f32.mrf.mxu0
    %1453 = vdwg.mxu0
    %v1454 = vadd.f32 %v1252, %v1451
    %s1455 = scalar_lea.vmem %s10, 7
    %v1456 = vld [vmem:[%s1455] sm:$0x1]
    %s1457 = scalar_lea.vmem %s10, 8
    %v1458 = vld [vmem:[%s1457] sm:$0x1]
    %v1459 = vsel %vm1224, %v1454, 0.0
    %1460 = vadd.xlane.f32.xlu0 %v1459
    %v1461 = vpop.xlane.xlu0 %1460
    %v1462 = vmul.f32 %v1461, %v1228
    %v1463 = vsub.f32 %v1454, %v1462
    %v1464 = vmul.f32 %v1463, %v1463
    %v1465 = vsel %vm1224, %v1464, 0.0
    %1466 = vadd.xlane.f32.xlu0 %v1465
    %v1467 = vpop.xlane.xlu0 %1466
    %v1468 = vmul.f32 %v1467, %v1228
    %v1469 = vadd.f32 %v1468, 1e-05
    %v1470 = vrsqrt.pop %v1469
    %v1471 = vmul.f32 %v1463, %v1470
    %v1473 = vlaneseq
    %v1474 = vshrl.u32 %v1473, 7
    %v1475 = vsub.s32 0, %v1474
    %v1476 = vrot.slane %v1456, %v1475
    %v1478 = vmul.f32 %v1471, %v1476
    %v1480 = vlaneseq
    %v1481 = vshrl.u32 %v1480, 7
    %v1482 = vsub.s32 0, %v1481
    %v1483 = vrot.slane %v1458, %v1482
    %v1485 = vadd.f32 %v1478, %v1483
    %s1486 = scalar_lea.vmem %s7, 128
    %v1487 = vld [vmem:[%s1486] sm:$0xff]
    %v1488 = vld [vmem:[%s1486 + $0x8] sm:$0xff]
    %v1489 = vld [vmem:[%s1486 + $0x10] sm:$0xff]
    %v1490 = vld [vmem:[%s1486 + $0x18] sm:$0xff]
    %s1491 = scalar_lea.vmem %s10, 9
    %v1492 = vld [vmem:[%s1491] sm:$0x1]
    %v1494 = vlaneseq
    %v1495 = vshrl.u32 %v1494, 7
    %v1496 = vsub.s32 0, %v1495
    %v1497 = vrot.slane %v1492, %v1496
    %v1500 = vsel %vm502, %v1485, 0
    %1502 = vmatprep.subr.mxu0 0.0
    %1503 = vmatpush1.msra.mxu0 0.0
    %1504 = vmatprep.subr.mxu0 0.0
    %1505 = vmatpush1.msra.mxu0 0.0
    %1506 = vmatprep.subr.mxu0 0.0
    %1507 = vmatpush1.msra.mxu0 0.0
    %1508 = vmatprep.subr.mxu0 0.0
    %1509 = vmatpush1.msra.mxu0 0.0
    %1510 = vmatprep.subr.mxu0 0.0
    %1511 = vmatpush1.msra.mxu0 0.0
    %1512 = vmatprep.subr.mxu0 0.0
    %1513 = vmatpush1.msra.mxu0 0.0
    %1514 = vmatprep.subr.mxu0 0.0
    %1515 = vmatpush1.msra.mxu0 0.0
    %1516 = vmatprep.subr.mxu0 0.0
    %1517 = vmatpush1.msra.mxu0 0.0
    %1518 = vmatprep.subr.mxu0 0.0
    %1519 = vmatpush1.msra.mxu0 0.0
    %1520 = vmatprep.subr.mxu0 0.0
    %1521 = vmatpush1.msra.mxu0 0.0
    %1522 = vmatprep.subr.mxu0 0.0
    %1523 = vmatpush1.msra.mxu0 0.0
    %1524 = vmatprep.subr.mxu0 0.0
    %1525 = vmatpush1.msra.mxu0 0.0
    %1526 = vmatprep.subr.mxu0 0.0
    %1527 = vmatpush1.msra.mxu0 %v1490
    %1528 = vmatprep.subr.mxu0 0.0
    %1529 = vmatpush1.msra.mxu0 %v1489
    %1530 = vmatprep.subr.mxu0 0.0
    %1531 = vmatpush1.msra.mxu0 %v1488
    %1532 = vmatprep.subr.mxu0 0.0
    %1533 = vmatpush1.msra.mxu0 %v1487
    %1534 = vmatprep.subr.mxu0 0.0
    %1535 = vmatpush2.msra.mxu0 0.0
    %1536 = vmatprep.subr.mxu0 0.0
    %1537 = vmatpush2.msra.mxu0 0.0
    %1538 = vmatprep.subr.mxu0 0.0
    %1539 = vmatpush2.msra.mxu0 0.0
    %1540 = vmatprep.subr.mxu0 0.0
    %1541 = vmatpush2.msra.mxu0 0.0
    %1542 = vmatprep.subr.mxu0 0.0
    %1543 = vmatpush2.msra.mxu0 0.0
    %1544 = vmatprep.subr.mxu0 0.0
    %1545 = vmatpush2.msra.mxu0 0.0
    %1546 = vmatprep.subr.mxu0 0.0
    %1547 = vmatpush2.msra.mxu0 0.0
    %1548 = vmatprep.subr.mxu0 0.0
    %1549 = vmatpush2.msra.mxu0 0.0
    %1550 = vmatprep.subr.mxu0 0.0
    %1551 = vmatpush2.msra.mxu0 0.0
    %1552 = vmatprep.subr.mxu0 0.0
    %1553 = vmatpush2.msra.mxu0 0.0
    %1554 = vmatprep.subr.mxu0 0.0
    %1555 = vmatpush2.msra.mxu0 0.0
    %1556 = vmatprep.subr.mxu0 0.0
    %1557 = vmatpush2.msra.mxu0 0.0
    %1558 = vmatprep.subr.mxu0 0.0
    %1559 = vmatpush2.msra.mxu0 0.0
    %1560 = vmatprep.subr.mxu0 0.0
    %1561 = vmatpush2.msra.mxu0 0.0
    %1562 = vmatprep.subr.mxu0 0.0
    %1563 = vmatpush2.msra.mxu0 0.0
    %1564 = vmatprep.subr.mxu0 0.0
    %1565 = vmatpush2.msra.mxu0 0.0
    %1566 = vmatprep.mubr.f32.mxu0 0.0
    %1567 = vmatmul.mubr.f32.gmra.mxu0 %v1500
    %v1568 = vpop.f32.mrf.mxu0
    %v1569 = vadd.f32 %v1497, %v1568
    %v1570 = vpop.f32.mrf.mxu0
    %1571 = vdwg.mxu0
    %s1572 = scalar_lea.vmem %s7, 160
    %v1573 = vld [vmem:[%s1572] sm:$0xff]
    %v1574 = vld [vmem:[%s1572 + $0x8] sm:$0xff]
    %v1575 = vld [vmem:[%s1572 + $0x10] sm:$0xff]
    %v1576 = vld [vmem:[%s1572 + $0x18] sm:$0xff]
    %s1577 = scalar_lea.vmem %s10, 10
    %v1578 = vld [vmem:[%s1577] sm:$0x1]
    %v1580 = vlaneseq
    %v1581 = vshrl.u32 %v1580, 7
    %v1582 = vsub.s32 0, %v1581
    %v1583 = vrot.slane %v1578, %v1582
    %1585 = vmatprep.subr.mxu0 0.0
    %1586 = vmatpush1.msra.mxu0 0.0
    %1587 = vmatprep.subr.mxu0 0.0
    %1588 = vmatpush1.msra.mxu0 0.0
    %1589 = vmatprep.subr.mxu0 0.0
    %1590 = vmatpush1.msra.mxu0 0.0
    %1591 = vmatprep.subr.mxu0 0.0
    %1592 = vmatpush1.msra.mxu0 0.0
    %1593 = vmatprep.subr.mxu0 0.0
    %1594 = vmatpush1.msra.mxu0 0.0
    %1595 = vmatprep.subr.mxu0 0.0
    %1596 = vmatpush1.msra.mxu0 0.0
    %1597 = vmatprep.subr.mxu0 0.0
    %1598 = vmatpush1.msra.mxu0 0.0
    %1599 = vmatprep.subr.mxu0 0.0
    %1600 = vmatpush1.msra.mxu0 0.0
    %1601 = vmatprep.subr.mxu0 0.0
    %1602 = vmatpush1.msra.mxu0 0.0
    %1603 = vmatprep.subr.mxu0 0.0
    %1604 = vmatpush1.msra.mxu0 0.0
    %1605 = vmatprep.subr.mxu0 0.0
    %1606 = vmatpush1.msra.mxu0 0.0
    %1607 = vmatprep.subr.mxu0 0.0
    %1608 = vmatpush1.msra.mxu0 0.0
    %1609 = vmatprep.subr.mxu0 0.0
    %1610 = vmatpush1.msra.mxu0 %v1576
    %1611 = vmatprep.subr.mxu0 0.0
    %1612 = vmatpush1.msra.mxu0 %v1575
    %1613 = vmatprep.subr.mxu0 0.0
    %1614 = vmatpush1.msra.mxu0 %v1574
    %1615 = vmatprep.subr.mxu0 0.0
    %1616 = vmatpush1.msra.mxu0 %v1573
    %1617 = vmatprep.subr.mxu0 0.0
    %1618 = vmatpush2.msra.mxu0 0.0
    %1619 = vmatprep.subr.mxu0 0.0
    %1620 = vmatpush2.msra.mxu0 0.0
    %1621 = vmatprep.subr.mxu0 0.0
    %1622 = vmatpush2.msra.mxu0 0.0
    %1623 = vmatprep.subr.mxu0 0.0
    %1624 = vmatpush2.msra.mxu0 0.0
    %1625 = vmatprep.subr.mxu0 0.0
    %1626 = vmatpush2.msra.mxu0 0.0
    %1627 = vmatprep.subr.mxu0 0.0
    %1628 = vmatpush2.msra.mxu0 0.0
    %1629 = vmatprep.subr.mxu0 0.0
    %1630 = vmatpush2.msra.mxu0 0.0
    %1631 = vmatprep.subr.mxu0 0.0
    %1632 = vmatpush2.msra.mxu0 0.0
    %1633 = vmatprep.subr.mxu0 0.0
    %1634 = vmatpush2.msra.mxu0 0.0
    %1635 = vmatprep.subr.mxu0 0.0
    %1636 = vmatpush2.msra.mxu0 0.0
    %1637 = vmatprep.subr.mxu0 0.0
    %1638 = vmatpush2.msra.mxu0 0.0
    %1639 = vmatprep.subr.mxu0 0.0
    %1640 = vmatpush2.msra.mxu0 0.0
    %1641 = vmatprep.subr.mxu0 0.0
    %1642 = vmatpush2.msra.mxu0 0.0
    %1643 = vmatprep.subr.mxu0 0.0
    %1644 = vmatpush2.msra.mxu0 0.0
    %1645 = vmatprep.subr.mxu0 0.0
    %1646 = vmatpush2.msra.mxu0 0.0
    %1647 = vmatprep.subr.mxu0 0.0
    %1648 = vmatpush2.msra.mxu0 0.0
    %1649 = vmatprep.mubr.f32.mxu0 0.0
    %1650 = vmatmul.mubr.f32.gmra.mxu0 %v1500
    %v1651 = vpop.f32.mrf.mxu0
    %v1652 = vadd.f32 %v1583, %v1651
    %v1653 = vpop.f32.mrf.mxu0
    %1654 = vdwg.mxu0
    %s1655 = scalar_lea.vmem %s7, 192
    %v1656 = vld [vmem:[%s1655] sm:$0xff]
    %v1657 = vld [vmem:[%s1655 + $0x8] sm:$0xff]
    %v1658 = vld [vmem:[%s1655 + $0x10] sm:$0xff]
    %v1659 = vld [vmem:[%s1655 + $0x18] sm:$0xff]
    %s1660 = scalar_lea.vmem %s10, 11
    %v1661 = vld [vmem:[%s1660] sm:$0x1]
    %v1663 = vlaneseq
    %v1664 = vshrl.u32 %v1663, 7
    %v1665 = vsub.s32 0, %v1664
    %v1666 = vrot.slane %v1661, %v1665
    %1668 = vmatprep.subr.mxu0 0.0
    %1669 = vmatpush1.msra.mxu0 0.0
    %1670 = vmatprep.subr.mxu0 0.0
    %1671 = vmatpush1.msra.mxu0 0.0
    %1672 = vmatprep.subr.mxu0 0.0
    %1673 = vmatpush1.msra.mxu0 0.0
    %1674 = vmatprep.subr.mxu0 0.0
    %1675 = vmatpush1.msra.mxu0 0.0
    %1676 = vmatprep.subr.mxu0 0.0
    %1677 = vmatpush1.msra.mxu0 0.0
    %1678 = vmatprep.subr.mxu0 0.0
    %1679 = vmatpush1.msra.mxu0 0.0
    %1680 = vmatprep.subr.mxu0 0.0
    %1681 = vmatpush1.msra.mxu0 0.0
    %1682 = vmatprep.subr.mxu0 0.0
    %1683 = vmatpush1.msra.mxu0 0.0
    %1684 = vmatprep.subr.mxu0 0.0
    %1685 = vmatpush1.msra.mxu0 0.0
    %1686 = vmatprep.subr.mxu0 0.0
    %1687 = vmatpush1.msra.mxu0 0.0
    %1688 = vmatprep.subr.mxu0 0.0
    %1689 = vmatpush1.msra.mxu0 0.0
    %1690 = vmatprep.subr.mxu0 0.0
    %1691 = vmatpush1.msra.mxu0 0.0
    %1692 = vmatprep.subr.mxu0 0.0
    %1693 = vmatpush1.msra.mxu0 %v1659
    %1694 = vmatprep.subr.mxu0 0.0
    %1695 = vmatpush1.msra.mxu0 %v1658
    %1696 = vmatprep.subr.mxu0 0.0
    %1697 = vmatpush1.msra.mxu0 %v1657
    %1698 = vmatprep.subr.mxu0 0.0
    %1699 = vmatpush1.msra.mxu0 %v1656
    %1700 = vmatprep.subr.mxu0 0.0
    %1701 = vmatpush2.msra.mxu0 0.0
    %1702 = vmatprep.subr.mxu0 0.0
    %1703 = vmatpush2.msra.mxu0 0.0
    %1704 = vmatprep.subr.mxu0 0.0
    %1705 = vmatpush2.msra.mxu0 0.0
    %1706 = vmatprep.subr.mxu0 0.0
    %1707 = vmatpush2.msra.mxu0 0.0
    %1708 = vmatprep.subr.mxu0 0.0
    %1709 = vmatpush2.msra.mxu0 0.0
    %1710 = vmatprep.subr.mxu0 0.0
    %1711 = vmatpush2.msra.mxu0 0.0
    %1712 = vmatprep.subr.mxu0 0.0
    %1713 = vmatpush2.msra.mxu0 0.0
    %1714 = vmatprep.subr.mxu0 0.0
    %1715 = vmatpush2.msra.mxu0 0.0
    %1716 = vmatprep.subr.mxu0 0.0
    %1717 = vmatpush2.msra.mxu0 0.0
    %1718 = vmatprep.subr.mxu0 0.0
    %1719 = vmatpush2.msra.mxu0 0.0
    %1720 = vmatprep.subr.mxu0 0.0
    %1721 = vmatpush2.msra.mxu0 0.0
    %1722 = vmatprep.subr.mxu0 0.0
    %1723 = vmatpush2.msra.mxu0 0.0
    %1724 = vmatprep.subr.mxu0 0.0
    %1725 = vmatpush2.msra.mxu0 0.0
    %1726 = vmatprep.subr.mxu0 0.0
    %1727 = vmatpush2.msra.mxu0 0.0
    %1728 = vmatprep.subr.mxu0 0.0
    %1729 = vmatpush2.msra.mxu0 0.0
    %1730 = vmatprep.subr.mxu0 0.0
    %1731 = vmatpush2.msra.mxu0 0.0
    %1732 = vmatprep.mubr.f32.mxu0 0.0
    %1733 = vmatmul.mubr.f32.gmra.mxu0 %v1500
    %v1734 = vpop.f32.mrf.mxu0
    %v1735 = vadd.f32 %v1666, %v1734
    %v1736 = vpop.f32.mrf.mxu0
    %1737 = vdwg.mxu0
    %v1739 = vsel %vm752, %v1569, 0
    %1741 = vmatprep.subr.mxu0 0.0
    %1742 = vmatpush1.msra.mxu0 0.0
    %1743 = vmatprep.subr.mxu0 0.0
    %1744 = vmatpush1.msra.mxu0 0.0
    %1745 = vmatprep.subr.mxu0 0.0
    %1746 = vmatpush1.msra.mxu0 0.0
    %1747 = vmatprep.subr.mxu0 0.0
    %1748 = vmatpush1.msra.mxu0 0.0
    %1749 = vmatprep.subr.mxu0 0.0
    %1750 = vmatpush1.msra.mxu0 0.0
    %1751 = vmatprep.subr.mxu0 0.0
    %1752 = vmatpush1.msra.mxu0 0.0
    %1753 = vmatprep.subr.mxu0 0.0
    %1754 = vmatpush1.msra.mxu0 0.0
    %1755 = vmatprep.subr.mxu0 0.0
    %1756 = vmatpush1.msra.mxu0 0.0
    %1757 = vmatprep.subr.mxu0 0.0
    %1758 = vmatpush1.msra.mxu0 0.0
    %1759 = vmatprep.subr.mxu0 0.0
    %1760 = vmatpush1.msra.mxu0 0.0
    %1761 = vmatprep.subr.mxu0 0.0
    %1762 = vmatpush1.msra.mxu0 0.0
    %1763 = vmatprep.subr.mxu0 0.0
    %1764 = vmatpush1.msra.mxu0 0.0
    %1765 = vmatprep.subr.mxu0 0.0
    %1766 = vmatpush1.msra.mxu0 0.0
    %1767 = vmatprep.subr.mxu0 0.0
    %1768 = vmatpush1.msra.mxu0 0.0
    %1769 = vmatprep.subr.mxu0 0.0
    %1770 = vmatpush1.msra.mxu0 0.0
    %1771 = vmatprep.subr.mxu0 0.0
    %1772 = vmatpush1.msra.mxu0 %v1739
    %1773 = vmatprep.subr.mxu0 0.0
    %1774 = vmatpush2.msra.mxu0 0.0
    %1775 = vmatprep.subr.mxu0 0.0
    %1776 = vmatpush2.msra.mxu0 0.0
    %1777 = vmatprep.subr.mxu0 0.0
    %1778 = vmatpush2.msra.mxu0 0.0
    %1779 = vmatprep.subr.mxu0 0.0
    %1780 = vmatpush2.msra.mxu0 0.0
    %1781 = vmatprep.subr.mxu0 0.0
    %1782 = vmatpush2.msra.mxu0 0.0
    %1783 = vmatprep.subr.mxu0 0.0
    %1784 = vmatpush2.msra.mxu0 0.0
    %1785 = vmatprep.subr.mxu0 0.0
    %1786 = vmatpush2.msra.mxu0 0.0
    %1787 = vmatprep.subr.mxu0 0.0
    %1788 = vmatpush2.msra.mxu0 0.0
    %1789 = vmatprep.subr.mxu0 0.0
    %1790 = vmatpush2.msra.mxu0 0.0
    %1791 = vmatprep.subr.mxu0 0.0
    %1792 = vmatpush2.msra.mxu0 0.0
    %1793 = vmatprep.subr.mxu0 0.0
    %1794 = vmatpush2.msra.mxu0 0.0
    %1795 = vmatprep.subr.mxu0 0.0
    %1796 = vmatpush2.msra.mxu0 0.0
    %1797 = vmatprep.subr.mxu0 0.0
    %1798 = vmatpush2.msra.mxu0 0.0
    %1799 = vmatprep.subr.mxu0 0.0
    %1800 = vmatpush2.msra.mxu0 0.0
    %1801 = vmatprep.subr.mxu0 0.0
    %1802 = vmatpush2.msra.mxu0 0.0
    %1803 = vmatprep.subr.mxu0 0.0
    %1804 = vmatpush2.msra.mxu0 0.0
    %1805 = vmatprep.mubr.f32.mxu0 0.0
    %1806 = vmatmul.mubr.f32.gmra.mxu0 %v744
    %v1807 = vpop.f32.mrf.mxu0
    %v1808 = vadd.f32 0.0, %v1807
    %v1809 = vpop.f32.mrf.mxu0
    %1810 = vmatprep.mubr.f32.mxu0 0.0
    %1811 = vmatmul.mubr.f32.gmra.mxu0 %v747
    %v1812 = vpop.f32.mrf.mxu0
    %v1813 = vadd.f32 0.0, %v1812
    %v1814 = vpop.f32.mrf.mxu0
    %1815 = vmatprep.mubr.f32.mxu0 0.0
    %1816 = vmatmul.mubr.f32.gmra.mxu0 %v750
    %v1817 = vpop.f32.mrf.mxu0
    %v1818 = vadd.f32 0.0, %v1817
    %v1819 = vpop.f32.mrf.mxu0
    %1820 = vdwg.mxu0
    %v1821 = vmul.f32 %v1808, %v481
    %v1822 = vmul.f32 %v1813, %v482
    %v1823 = vmul.f32 %v1818, %v483
    %v1825 = vsel %vm502, %v1821, 0
    %v1828 = vsel %vm502, %v1822, 0
    %v1831 = vsel %vm502, %v1823, 0
    %v1834 = vsel %vm502, %v1652, 0
    %1836 = vmatprep.subr.mxu0 0.0
    %1837 = vmatpush1.xpose.msra.mxu0 0.0
    %1838 = vmatprep.subr.mxu0 0.0
    %1839 = vmatpush1.xpose.msra.mxu0 0.0
    %1840 = vmatprep.subr.mxu0 0.0
    %1841 = vmatpush1.xpose.msra.mxu0 0.0
    %1842 = vmatprep.subr.mxu0 0.0
    %1843 = vmatpush1.xpose.msra.mxu0 0.0
    %1844 = vmatprep.subr.mxu0 0.0
    %1845 = vmatpush1.xpose.msra.mxu0 0.0
    %1846 = vmatprep.subr.mxu0 0.0
    %1847 = vmatpush1.xpose.msra.mxu0 0.0
    %1848 = vmatprep.subr.mxu0 0.0
    %1849 = vmatpush1.xpose.msra.mxu0 0.0
    %1850 = vmatprep.subr.mxu0 0.0
    %1851 = vmatpush1.xpose.msra.mxu0 0.0
    %1852 = vmatprep.subr.mxu0 0.0
    %1853 = vmatpush1.xpose.msra.mxu0 0.0
    %1854 = vmatprep.subr.mxu0 0.0
    %1855 = vmatpush1.xpose.msra.mxu0 0.0
    %1856 = vmatprep.subr.mxu0 0.0
    %1857 = vmatpush1.xpose.msra.mxu0 0.0
    %1858 = vmatprep.subr.mxu0 0.0
    %1859 = vmatpush1.xpose.msra.mxu0 0.0
    %1860 = vmatprep.subr.mxu0 0.0
    %1861 = vmatpush1.xpose.msra.mxu0 0.0
    %1862 = vmatprep.subr.mxu0 0.0
    %1863 = vmatpush1.xpose.msra.mxu0 0.0
    %1864 = vmatprep.subr.mxu0 0.0
    %1865 = vmatpush1.xpose.msra.mxu0 0.0
    %1866 = vmatprep.subr.mxu0 0.0
    %1867 = vmatpush1.xpose.msra.mxu0 %v1834
    %1868 = vmatprep.subr.mxu0 0.0
    %1869 = vmatpush2.xpose.msra.mxu0 0.0
    %1870 = vmatprep.subr.mxu0 0.0
    %1871 = vmatpush2.xpose.msra.mxu0 0.0
    %1872 = vmatprep.subr.mxu0 0.0
    %1873 = vmatpush2.xpose.msra.mxu0 0.0
    %1874 = vmatprep.subr.mxu0 0.0
    %1875 = vmatpush2.xpose.msra.mxu0 0.0
    %1876 = vmatprep.subr.mxu0 0.0
    %1877 = vmatpush2.xpose.msra.mxu0 0.0
    %1878 = vmatprep.subr.mxu0 0.0
    %1879 = vmatpush2.xpose.msra.mxu0 0.0
    %1880 = vmatprep.subr.mxu0 0.0
    %1881 = vmatpush2.xpose.msra.mxu0 0.0
    %1882 = vmatprep.subr.mxu0 0.0
    %1883 = vmatpush2.xpose.msra.mxu0 0.0
    %1884 = vmatprep.subr.mxu0 0.0
    %1885 = vmatpush2.xpose.msra.mxu0 0.0
    %1886 = vmatprep.subr.mxu0 0.0
    %1887 = vmatpush2.xpose.msra.mxu0 0.0
    %1888 = vmatprep.subr.mxu0 0.0
    %1889 = vmatpush2.xpose.msra.mxu0 0.0
    %1890 = vmatprep.subr.mxu0 0.0
    %1891 = vmatpush2.xpose.msra.mxu0 0.0
    %1892 = vmatprep.subr.mxu0 0.0
    %1893 = vmatpush2.xpose.msra.mxu0 0.0
    %1894 = vmatprep.subr.mxu0 0.0
    %1895 = vmatpush2.xpose.msra.mxu0 0.0
    %1896 = vmatprep.subr.mxu0 0.0
    %1897 = vmatpush2.xpose.msra.mxu0 0.0
    %1898 = vmatprep.subr.mxu0 0.0
    %1899 = vmatpush2.xpose.msra.mxu0 0.0
    %1900 = vmatprep.mubr.f32.mxu0 0.0
    %1901 = vmatmul.mubr.f32.gmra.mxu0 %v1825
    %v1902 = vpop.f32.mrf.mxu0
    %v1903 = vadd.f32 %v484, %v1902
    %v1904 = vpop.f32.mrf.mxu0
    %1905 = vmatprep.mubr.f32.mxu0 0.0
    %1906 = vmatmul.mubr.f32.gmra.mxu0 %v1828
    %v1907 = vpop.f32.mrf.mxu0
    %v1908 = vadd.f32 %v485, %v1907
    %v1909 = vpop.f32.mrf.mxu0
    %1910 = vmatprep.mubr.f32.mxu0 0.0
    %1911 = vmatmul.mubr.f32.gmra.mxu0 %v1831
    %v1912 = vpop.f32.mrf.mxu0
    %v1913 = vadd.f32 %v486, %v1912
    %v1914 = vpop.f32.mrf.mxu0
    %1915 = vdwg.mxu0
    %v1916 = vsel %vm742, %v1903, -inf
    %1917 = vmax.xlane.f32.xlu0 %v1916
    %v1918 = vpop.xlane.xlu0 %1917
    %v1919 = vsel %vm742, %v1908, -inf
    %1920 = vmax.xlane.f32.xlu0 %v1919
    %v1921 = vpop.xlane.xlu0 %1920
    %v1922 = vsel %vm742, %v1913, -inf
    %1923 = vmax.xlane.f32.xlu0 %v1922
    %v1924 = vpop.xlane.xlu0 %1923
    %v1925 = vsub.f32 %v1903, %v1918
    %v1926 = vsub.f32 %v1908, %v1921
    %v1927 = vsub.f32 %v1913, %v1924
    %v1928 = vmul.f32 %v1925, 1.442695
    %v1929 = vpow.pop %v1928
    %v1930 = vmul.f32 %v1926, 1.442695
    %v1931 = vpow.pop %v1930
    %v1932 = vmul.f32 %v1927, 1.442695
    %v1933 = vpow.pop %v1932
    %v1934 = vsel %vm742, %v1929, 0.0
    %1935 = vadd.xlane.f32.xlu0 %v1934
    %v1936 = vpop.xlane.xlu0 %1935
    %v1937 = vsel %vm742, %v1931, 0.0
    %1938 = vadd.xlane.f32.xlu0 %v1937
    %v1939 = vpop.xlane.xlu0 %1938
    %v1940 = vsel %vm742, %v1933, 0.0
    %1941 = vadd.xlane.f32.xlu0 %v1940
    %v1942 = vpop.xlane.xlu0 %1941
    %v1943 = vrcp.pop %v1936
    %v1944 = vrcp.pop %v1939
    %v1945 = vrcp.pop %v1942
    %v1946 = vmul.f32 %v1929, %v1943
    %v1947 = vmul.f32 %v1931, %v1944
    %v1948 = vmul.f32 %v1933, %v1945
    %v1950 = vsel %vm742, %v1946, 0
    %v1953 = vsel %vm742, %v1947, 0
    %v1956 = vsel %vm742, %v1948, 0
    %v1959 = vsel %vm752, %v1735, 0
    %1961 = vmatprep.subr.mxu0 0.0
    %1962 = vmatpush1.msra.mxu0 0.0
    %1963 = vmatprep.subr.mxu0 0.0
    %1964 = vmatpush1.msra.mxu0 0.0
    %1965 = vmatprep.subr.mxu0 0.0
    %1966 = vmatpush1.msra.mxu0 0.0
    %1967 = vmatprep.subr.mxu0 0.0
    %1968 = vmatpush1.msra.mxu0 0.0
    %1969 = vmatprep.subr.mxu0 0.0
    %1970 = vmatpush1.msra.mxu0 0.0
    %1971 = vmatprep.subr.mxu0 0.0
    %1972 = vmatpush1.msra.mxu0 0.0
    %1973 = vmatprep.subr.mxu0 0.0
    %1974 = vmatpush1.msra.mxu0 0.0
    %1975 = vmatprep.subr.mxu0 0.0
    %1976 = vmatpush1.msra.mxu0 0.0
    %1977 = vmatprep.subr.mxu0 0.0
    %1978 = vmatpush1.msra.mxu0 0.0
    %1979 = vmatprep.subr.mxu0 0.0
    %1980 = vmatpush1.msra.mxu0 0.0
    %1981 = vmatprep.subr.mxu0 0.0
    %1982 = vmatpush1.msra.mxu0 0.0
    %1983 = vmatprep.subr.mxu0 0.0
    %1984 = vmatpush1.msra.mxu0 0.0
    %1985 = vmatprep.subr.mxu0 0.0
    %1986 = vmatpush1.msra.mxu0 0.0
    %1987 = vmatprep.subr.mxu0 0.0
    %1988 = vmatpush1.msra.mxu0 0.0
    %1989 = vmatprep.subr.mxu0 0.0
    %1990 = vmatpush1.msra.mxu0 0.0
    %1991 = vmatprep.subr.mxu0 0.0
    %1992 = vmatpush1.msra.mxu0 %v1959
    %1993 = vmatprep.subr.mxu0 0.0
    %1994 = vmatpush2.msra.mxu0 0.0
    %1995 = vmatprep.subr.mxu0 0.0
    %1996 = vmatpush2.msra.mxu0 0.0
    %1997 = vmatprep.subr.mxu0 0.0
    %1998 = vmatpush2.msra.mxu0 0.0
    %1999 = vmatprep.subr.mxu0 0.0
    %2000 = vmatpush2.msra.mxu0 0.0
    %2001 = vmatprep.subr.mxu0 0.0
    %2002 = vmatpush2.msra.mxu0 0.0
    %2003 = vmatprep.subr.mxu0 0.0
    %2004 = vmatpush2.msra.mxu0 0.0
    %2005 = vmatprep.subr.mxu0 0.0
    %2006 = vmatpush2.msra.mxu0 0.0
    %2007 = vmatprep.subr.mxu0 0.0
    %2008 = vmatpush2.msra.mxu0 0.0
    %2009 = vmatprep.subr.mxu0 0.0
    %2010 = vmatpush2.msra.mxu0 0.0
    %2011 = vmatprep.subr.mxu0 0.0
    %2012 = vmatpush2.msra.mxu0 0.0
    %2013 = vmatprep.subr.mxu0 0.0
    %2014 = vmatpush2.msra.mxu0 0.0
    %2015 = vmatprep.subr.mxu0 0.0
    %2016 = vmatpush2.msra.mxu0 0.0
    %2017 = vmatprep.subr.mxu0 0.0
    %2018 = vmatpush2.msra.mxu0 0.0
    %2019 = vmatprep.subr.mxu0 0.0
    %2020 = vmatpush2.msra.mxu0 0.0
    %2021 = vmatprep.subr.mxu0 0.0
    %2022 = vmatpush2.msra.mxu0 0.0
    %2023 = vmatprep.subr.mxu0 0.0
    %2024 = vmatpush2.msra.mxu0 0.0
    %2025 = vmatprep.mubr.f32.mxu0 0.0
    %2026 = vmatmul.mubr.f32.gmra.mxu0 %v1950
    %v2027 = vpop.f32.mrf.mxu0
    %v2028 = vadd.f32 0.0, %v2027
    %v2029 = vpop.f32.mrf.mxu0
    %2030 = vmatprep.mubr.f32.mxu0 0.0
    %2031 = vmatmul.mubr.f32.gmra.mxu0 %v1953
    %v2032 = vpop.f32.mrf.mxu0
    %v2033 = vadd.f32 0.0, %v2032
    %v2034 = vpop.f32.mrf.mxu0
    %2035 = vmatprep.mubr.f32.mxu0 0.0
    %2036 = vmatmul.mubr.f32.gmra.mxu0 %v1956
    %v2037 = vpop.f32.mrf.mxu0
    %v2038 = vadd.f32 0.0, %v2037
    %v2039 = vpop.f32.mrf.mxu0
    %2040 = vdwg.mxu0
    %v2041 = vmul.f32 %v2028, %v481
    %v2042 = vmul.f32 %v2033, %v482
    %v2043 = vmul.f32 %v2038, %v483
    %2044 = vmatprep.subr.mxu0 0.0
    %2045 = vmatpush1.msra.mxu0 0.0
    %2046 = vmatprep.subr.mxu0 0.0
    %2047 = vmatpush1.msra.mxu0 0.0
    %2048 = vmatprep.subr.mxu0 0.0
    %2049 = vmatpush1.msra.mxu0 0.0
    %2050 = vmatprep.subr.mxu0 0.0
    %2051 = vmatpush1.msra.mxu0 0.0
    %2052 = vmatprep.subr.mxu0 0.0
    %2053 = vmatpush1.msra.mxu0 0.0
    %2054 = vmatprep.subr.mxu0 0.0
    %2055 = vmatpush1.msra.mxu0 0.0
    %2056 = vmatprep.subr.mxu0 0.0
    %2057 = vmatpush1.msra.mxu0 0.0
    %2058 = vmatprep.subr.mxu0 0.0
    %2059 = vmatpush1.msra.mxu0 0.0
    %2060 = vmatprep.subr.mxu0 0.0
    %2061 = vmatpush1.msra.mxu0 0.0
    %2062 = vmatprep.subr.mxu0 0.0
    %2063 = vmatpush1.msra.mxu0 0.0
    %2064 = vmatprep.subr.mxu0 0.0
    %2065 = vmatpush1.msra.mxu0 0.0
    %2066 = vmatprep.subr.mxu0 0.0
    %2067 = vmatpush1.msra.mxu0 0.0
    %2068 = vmatprep.subr.mxu0 0.0
    %2069 = vmatpush1.msra.mxu0 0.0
    %2070 = vmatprep.subr.mxu0 0.0
    %2071 = vmatpush1.msra.mxu0 %v2043
    %2072 = vmatprep.subr.mxu0 0.0
    %2073 = vmatpush1.msra.mxu0 %v2042
    %2074 = vmatprep.subr.mxu0 0.0
    %2075 = vmatpush1.msra.mxu0 %v2041
    %2076 = vmatprep.subr.mxu0 0.0
    %2077 = vmatpush2.msra.mxu0 0.0
    %2078 = vmatprep.subr.mxu0 0.0
    %2079 = vmatpush2.msra.mxu0 0.0
    %2080 = vmatprep.subr.mxu0 0.0
    %2081 = vmatpush2.msra.mxu0 0.0
    %2082 = vmatprep.subr.mxu0 0.0
    %2083 = vmatpush2.msra.mxu0 0.0
    %2084 = vmatprep.subr.mxu0 0.0
    %2085 = vmatpush2.msra.mxu0 0.0
    %2086 = vmatprep.subr.mxu0 0.0
    %2087 = vmatpush2.msra.mxu0 0.0
    %2088 = vmatprep.subr.mxu0 0.0
    %2089 = vmatpush2.msra.mxu0 0.0
    %2090 = vmatprep.subr.mxu0 0.0
    %2091 = vmatpush2.msra.mxu0 0.0
    %2092 = vmatprep.subr.mxu0 0.0
    %2093 = vmatpush2.msra.mxu0 0.0
    %2094 = vmatprep.subr.mxu0 0.0
    %2095 = vmatpush2.msra.mxu0 0.0
    %2096 = vmatprep.subr.mxu0 0.0
    %2097 = vmatpush2.msra.mxu0 0.0
    %2098 = vmatprep.subr.mxu0 0.0
    %2099 = vmatpush2.msra.mxu0 0.0
    %2100 = vmatprep.subr.mxu0 0.0
    %2101 = vmatpush2.msra.mxu0 0.0
    %2102 = vmatprep.subr.mxu0 0.0
    %2103 = vmatpush2.msra.mxu0 0.0
    %2104 = vmatprep.subr.mxu0 0.0
    %2105 = vmatpush2.msra.mxu0 0.0
    %2106 = vmatprep.subr.mxu0 0.0
    %2107 = vmatpush2.msra.mxu0 0.0
    %2108 = vmatprep.mubr.f32.mxu0 0.0
    %2109 = vmatmul.mubr.f32.gmra.mxu0 %v1061
    %v2110 = vpop.f32.mrf.mxu0
    %v2111 = vadd.f32 0.0, %v2110
    %v2112 = vpop.f32.mrf.mxu0
    %2113 = vdwg.mxu0
    %s2114 = scalar_lea.vmem %s7, 224
    %v2115 = vld [vmem:[%s2114] sm:$0xff]
    %v2116 = vld [vmem:[%s2114 + $0x8] sm:$0xff]
    %v2117 = vld [vmem:[%s2114 + $0x10] sm:$0xff]
    %v2118 = vld [vmem:[%s2114 + $0x18] sm:$0xff]
    %s2119 = scalar_lea.vmem %s10, 12
    %v2120 = vld [vmem:[%s2119] sm:$0x1]
    %v2122 = vlaneseq
    %v2123 = vshrl.u32 %v2122, 7
    %v2124 = vsub.s32 0, %v2123
    %v2125 = vrot.slane %v2120, %v2124
    %v2128 = vsel %vm502, %v2111, 0
    %2130 = vmatprep.subr.mxu0 0.0
    %2131 = vmatpush1.msra.mxu0 0.0
    %2132 = vmatprep.subr.mxu0 0.0
    %2133 = vmatpush1.msra.mxu0 0.0
    %2134 = vmatprep.subr.mxu0 0.0
    %2135 = vmatpush1.msra.mxu0 0.0
    %2136 = vmatprep.subr.mxu0 0.0
    %2137 = vmatpush1.msra.mxu0 0.0
    %2138 = vmatprep.subr.mxu0 0.0
    %2139 = vmatpush1.msra.mxu0 0.0
    %2140 = vmatprep.subr.mxu0 0.0
    %2141 = vmatpush1.msra.mxu0 0.0
    %2142 = vmatprep.subr.mxu0 0.0
    %2143 = vmatpush1.msra.mxu0 0.0
    %2144 = vmatprep.subr.mxu0 0.0
    %2145 = vmatpush1.msra.mxu0 0.0
    %2146 = vmatprep.subr.mxu0 0.0
    %2147 = vmatpush1.msra.mxu0 0.0
    %2148 = vmatprep.subr.mxu0 0.0
    %2149 = vmatpush1.msra.mxu0 0.0
    %2150 = vmatprep.subr.mxu0 0.0
    %2151 = vmatpush1.msra.mxu0 0.0
    %2152 = vmatprep.subr.mxu0 0.0
    %2153 = vmatpush1.msra.mxu0 0.0
    %2154 = vmatprep.subr.mxu0 0.0
    %2155 = vmatpush1.msra.mxu0 %v2118
    %2156 = vmatprep.subr.mxu0 0.0
    %2157 = vmatpush1.msra.mxu0 %v2117
    %2158 = vmatprep.subr.mxu0 0.0
    %2159 = vmatpush1.msra.mxu0 %v2116
    %2160 = vmatprep.subr.mxu0 0.0
    %2161 = vmatpush1.msra.mxu0 %v2115
    %2162 = vmatprep.subr.mxu0 0.0
    %2163 = vmatpush2.msra.mxu0 0.0
    %2164 = vmatprep.subr.mxu0 0.0
    %2165 = vmatpush2.msra.mxu0 0.0
    %2166 = vmatprep.subr.mxu0 0.0
    %2167 = vmatpush2.msra.mxu0 0.0
    %2168 = vmatprep.subr.mxu0 0.0
    %2169 = vmatpush2.msra.mxu0 0.0
    %2170 = vmatprep.subr.mxu0 0.0
    %2171 = vmatpush2.msra.mxu0 0.0
    %2172 = vmatprep.subr.mxu0 0.0
    %2173 = vmatpush2.msra.mxu0 0.0
    %2174 = vmatprep.subr.mxu0 0.0
    %2175 = vmatpush2.msra.mxu0 0.0
    %2176 = vmatprep.subr.mxu0 0.0
    %2177 = vmatpush2.msra.mxu0 0.0
    %2178 = vmatprep.subr.mxu0 0.0
    %2179 = vmatpush2.msra.mxu0 0.0
    %2180 = vmatprep.subr.mxu0 0.0
    %2181 = vmatpush2.msra.mxu0 0.0
    %2182 = vmatprep.subr.mxu0 0.0
    %2183 = vmatpush2.msra.mxu0 0.0
    %2184 = vmatprep.subr.mxu0 0.0
    %2185 = vmatpush2.msra.mxu0 0.0
    %2186 = vmatprep.subr.mxu0 0.0
    %2187 = vmatpush2.msra.mxu0 0.0
    %2188 = vmatprep.subr.mxu0 0.0
    %2189 = vmatpush2.msra.mxu0 0.0
    %2190 = vmatprep.subr.mxu0 0.0
    %2191 = vmatpush2.msra.mxu0 0.0
    %2192 = vmatprep.subr.mxu0 0.0
    %2193 = vmatpush2.msra.mxu0 0.0
    %2194 = vmatprep.mubr.f32.mxu0 0.0
    %2195 = vmatmul.mubr.f32.gmra.mxu0 %v2128
    %v2196 = vpop.f32.mrf.mxu0
    %v2197 = vadd.f32 %v2125, %v2196
    %v2198 = vpop.f32.mrf.mxu0
    %2199 = vdwg.mxu0
    %v2200 = vadd.f32 %v1485, %v2197
    %s2201 = scalar_lea.vmem %s10, 13
    %v2202 = vld [vmem:[%s2201] sm:$0x1]
    %s2203 = scalar_lea.vmem %s10, 14
    %v2204 = vld [vmem:[%s2203] sm:$0x1]
    %v2205 = vsel %vm1224, %v2200, 0.0
    %2206 = vadd.xlane.f32.xlu0 %v2205
    %v2207 = vpop.xlane.xlu0 %2206
    %v2208 = vmul.f32 %v2207, %v1228
    %v2209 = vsub.f32 %v2200, %v2208
    %v2210 = vmul.f32 %v2209, %v2209
    %v2211 = vsel %vm1224, %v2210, 0.0
    %2212 = vadd.xlane.f32.xlu0 %v2211
    %v2213 = vpop.xlane.xlu0 %2212
    %v2214 = vmul.f32 %v2213, %v1228
    %v2215 = vadd.f32 %v2214, 1e-05
    %v2216 = vrsqrt.pop %v2215
    %v2217 = vmul.f32 %v2209, %v2216
    %v2219 = vlaneseq
    %v2220 = vshrl.u32 %v2219, 7
    %v2221 = vsub.s32 0, %v2220
    %v2222 = vrot.slane %v2202, %v2221
    %v2224 = vmul.f32 %v2217, %v2222
    %v2226 = vlaneseq
    %v2227 = vshrl.u32 %v2226, 7
    %v2228 = vsub.s32 0, %v2227
    %v2229 = vrot.slane %v2204, %v2228
    %v2231 = vadd.f32 %v2224, %v2229
    %s2232 = scalar_lea.vmem %s8, 32
    %v2233 = vld [vmem:[%s2232] sm:$0xff]
    %v2234 = vld [vmem:[%s2232 + $0x8] sm:$0xff]
    %v2235 = vld [vmem:[%s2232 + $0x10] sm:$0xff]
    %v2236 = vld [vmem:[%s2232 + $0x18] sm:$0xff]
    %s2237 = scalar_lea.vmem [#allocation5], 1
    %v2238 = vld [vmem:[%s2237] sm:$0x1]
    %v2240 = vlaneseq
    %v2241 = vshrl.u32 %v2240, 7
    %v2242 = vsub.s32 0, %v2241
    %v2243 = vrot.slane %v2238, %v2242
    %v2246 = vsel %vm502, %v2231, 0
    %2248 = vmatprep.subr.mxu0 0.0
    %2249 = vmatpush1.msra.mxu0 0.0
    %2250 = vmatprep.subr.mxu0 0.0
    %2251 = vmatpush1.msra.mxu0 0.0
    %2252 = vmatprep.subr.mxu0 0.0
    %2253 = vmatpush1.msra.mxu0 0.0
    %2254 = vmatprep.subr.mxu0 0.0
    %2255 = vmatpush1.msra.mxu0 0.0
    %2256 = vmatprep.subr.mxu0 0.0
    %2257 = vmatpush1.msra.mxu0 0.0
    %2258 = vmatprep.subr.mxu0 0.0
    %2259 = vmatpush1.msra.mxu0 0.0
    %2260 = vmatprep.subr.mxu0 0.0
    %2261 = vmatpush1.msra.mxu0 0.0
    %2262 = vmatprep.subr.mxu0 0.0
    %2263 = vmatpush1.msra.mxu0 0.0
    %2264 = vmatprep.subr.mxu0 0.0
    %2265 = vmatpush1.msra.mxu0 0.0
    %2266 = vmatprep.subr.mxu0 0.0
    %2267 = vmatpush1.msra.mxu0 0.0
    %2268 = vmatprep.subr.mxu0 0.0
    %2269 = vmatpush1.msra.mxu0 0.0
    %2270 = vmatprep.subr.mxu0 0.0
    %2271 = vmatpush1.msra.mxu0 0.0
    %2272 = vmatprep.subr.mxu0 0.0
    %2273 = vmatpush1.msra.mxu0 %v2236
    %2274 = vmatprep.subr.mxu0 0.0
    %2275 = vmatpush1.msra.mxu0 %v2235
    %2276 = vmatprep.subr.mxu0 0.0
    %2277 = vmatpush1.msra.mxu0 %v2234
    %2278 = vmatprep.subr.mxu0 0.0
    %2279 = vmatpush1.msra.mxu0 %v2233
    %2280 = vmatprep.subr.mxu0 0.0
    %2281 = vmatpush2.msra.mxu0 0.0
    %2282 = vmatprep.subr.mxu0 0.0
    %2283 = vmatpush2.msra.mxu0 0.0
    %2284 = vmatprep.subr.mxu0 0.0
    %2285 = vmatpush2.msra.mxu0 0.0
    %2286 = vmatprep.subr.mxu0 0.0
    %2287 = vmatpush2.msra.mxu0 0.0
    %2288 = vmatprep.subr.mxu0 0.0
    %2289 = vmatpush2.msra.mxu0 0.0
    %2290 = vmatprep.subr.mxu0 0.0
    %2291 = vmatpush2.msra.mxu0 0.0
    %2292 = vmatprep.subr.mxu0 0.0
    %2293 = vmatpush2.msra.mxu0 0.0
    %2294 = vmatprep.subr.mxu0 0.0
    %2295 = vmatpush2.msra.mxu0 0.0
    %2296 = vmatprep.subr.mxu0 0.0
    %2297 = vmatpush2.msra.mxu0 0.0
    %2298 = vmatprep.subr.mxu0 0.0
    %2299 = vmatpush2.msra.mxu0 0.0
    %2300 = vmatprep.subr.mxu0 0.0
    %2301 = vmatpush2.msra.mxu0 0.0
    %2302 = vmatprep.subr.mxu0 0.0
    %2303 = vmatpush2.msra.mxu0 0.0
    %2304 = vmatprep.subr.mxu0 0.0
    %2305 = vmatpush2.msra.mxu0 0.0
    %2306 = vmatprep.subr.mxu0 0.0
    %2307 = vmatpush2.msra.mxu0 0.0
    %2308 = vmatprep.subr.mxu0 0.0
    %2309 = vmatpush2.msra.mxu0 0.0
    %2310 = vmatprep.subr.mxu0 0.0
    %2311 = vmatpush2.msra.mxu0 0.0
    %2312 = vmatprep.mubr.f32.mxu0 0.0
    %2313 = vmatmul.mubr.f32.gmra.mxu0 %v2246
    %v2314 = vpop.f32.mrf.mxu0
    %v2315 = vadd.f32 %v2243, %v2314
    %v2316 = vpop.f32.mrf.mxu0
    %2317 = vdwg.mxu0
    %v2318 = vmul.f32 %v2315, 0.5
    %v2319 = vmul.f32 %v2315, 0.70710677
    %vm2320 = vcmp.ge.f32.partialorder %v2319, 0.0
    %v2321 = vsel %vm2320, 1.0, -1.0
    %v2322 = vand.u32 2147483647, %v2319
    %v2323 = vmul.f32 %v2322, 0.3275911
    %v2324 = vadd.f32 %v2323, 1.0
    %v2325 = vrcp.pop %v2324
    %v2326 = vmul.f32 1.0, %v2325
    %v2327 = vmul.f32 %v2326, 1.0614054
    %v2328 = vadd.f32 %v2327, -1.4531521
    %v2329 = vmul.f32 %v2328, %v2326
    %v2330 = vadd.f32 %v2329, 1.4214138
    %v2331 = vmul.f32 %v2330, %v2326
    %v2332 = vadd.f32 %v2331, -0.28449672
    %v2333 = vmul.f32 %v2332, %v2326
    %v2334 = vadd.f32 %v2333, 0.2548296
    %v2335 = vmul.f32 %v2334, %v2326
    %v2336 = vsub.f32 0.0, %v2322
    %v2337 = vmul.f32 %v2336, %v2322
    %v2338 = vmul.f32 %v2337, 1.442695
    %v2339 = vpow.pop %v2338
    %v2340 = vmul.f32 %v2335, %v2339
    %v2341 = vsub.f32 1.0, %v2340
    %v2342 = vmul.f32 %v2321, %v2341
    %v2343 = vadd.f32 %v2342, 1.0
    %v2344 = vmul.f32 %v2318, %v2343
    %s2345 = scalar_lea.vmem %s9, 64
    %v2346 = vld [vmem:[%s2345] sm:$0xff]
    %v2347 = vld [vmem:[%s2345 + $0x8] sm:$0xff]
    %v2348 = vld [vmem:[%s2345 + $0x10] sm:$0xff]
    %v2349 = vld [vmem:[%s2345 + $0x18] sm:$0xff]
    %v2350 = vld [vmem:[%s2345 + $0x20] sm:$0xff]
    %v2351 = vld [vmem:[%s2345 + $0x28] sm:$0xff]
    %v2352 = vld [vmem:[%s2345 + $0x30] sm:$0xff]
    %v2353 = vld [vmem:[%s2345 + $0x38] sm:$0xff]
    %s2354 = scalar_lea.vmem %s10, 15
    %v2355 = vld [vmem:[%s2354] sm:$0x1]
    %v2357 = vlaneseq
    %v2358 = vshrl.u32 %v2357, 7
    %v2359 = vsub.s32 0, %v2358
    %v2360 = vrot.slane %v2355, %v2359
    %v2363 = vsel %vm1380, %v2344, 0
    %2365 = vmatprep.subr.mxu0 0.0
    %2366 = vmatpush1.msra.mxu0 0.0
    %2367 = vmatprep.subr.mxu0 0.0
    %2368 = vmatpush1.msra.mxu0 0.0
    %2369 = vmatprep.subr.mxu0 0.0
    %2370 = vmatpush1.msra.mxu0 0.0
    %2371 = vmatprep.subr.mxu0 0.0
    %2372 = vmatpush1.msra.mxu0 0.0
    %2373 = vmatprep.subr.mxu0 0.0
    %2374 = vmatpush1.msra.mxu0 0.0
    %2375 = vmatprep.subr.mxu0 0.0
    %2376 = vmatpush1.msra.mxu0 0.0
    %2377 = vmatprep.subr.mxu0 0.0
    %2378 = vmatpush1.msra.mxu0 0.0
    %2379 = vmatprep.subr.mxu0 0.0
    %2380 = vmatpush1.msra.mxu0 0.0
    %2381 = vmatprep.subr.mxu0 0.0
    %2382 = vmatpush1.msra.mxu0 %v2353
    %2383 = vmatprep.subr.mxu0 0.0
    %2384 = vmatpush1.msra.mxu0 %v2352
    %2385 = vmatprep.subr.mxu0 0.0
    %2386 = vmatpush1.msra.mxu0 %v2351
    %2387 = vmatprep.subr.mxu0 0.0
    %2388 = vmatpush1.msra.mxu0 %v2350
    %2389 = vmatprep.subr.mxu0 0.0
    %2390 = vmatpush1.msra.mxu0 %v2349
    %2391 = vmatprep.subr.mxu0 0.0
    %2392 = vmatpush1.msra.mxu0 %v2348
    %2393 = vmatprep.subr.mxu0 0.0
    %2394 = vmatpush1.msra.mxu0 %v2347
    %2395 = vmatprep.subr.mxu0 0.0
    %2396 = vmatpush1.msra.mxu0 %v2346
    %2397 = vmatprep.subr.mxu0 0.0
    %2398 = vmatpush2.msra.mxu0 0.0
    %2399 = vmatprep.subr.mxu0 0.0
    %2400 = vmatpush2.msra.mxu0 0.0
    %2401 = vmatprep.subr.mxu0 0.0
    %2402 = vmatpush2.msra.mxu0 0.0
    %2403 = vmatprep.subr.mxu0 0.0
    %2404 = vmatpush2.msra.mxu0 0.0
    %2405 = vmatprep.subr.mxu0 0.0
    %2406 = vmatpush2.msra.mxu0 0.0
    %2407 = vmatprep.subr.mxu0 0.0
    %2408 = vmatpush2.msra.mxu0 0.0
    %2409 = vmatprep.subr.mxu0 0.0
    %2410 = vmatpush2.msra.mxu0 0.0
    %2411 = vmatprep.subr.mxu0 0.0
    %2412 = vmatpush2.msra.mxu0 0.0
    %2413 = vmatprep.subr.mxu0 0.0
    %2414 = vmatpush2.msra.mxu0 0.0
    %2415 = vmatprep.subr.mxu0 0.0
    %2416 = vmatpush2.msra.mxu0 0.0
    %2417 = vmatprep.subr.mxu0 0.0
    %2418 = vmatpush2.msra.mxu0 0.0
    %2419 = vmatprep.subr.mxu0 0.0
    %2420 = vmatpush2.msra.mxu0 0.0
    %2421 = vmatprep.subr.mxu0 0.0
    %2422 = vmatpush2.msra.mxu0 0.0
    %2423 = vmatprep.subr.mxu0 0.0
    %2424 = vmatpush2.msra.mxu0 0.0
    %2425 = vmatprep.subr.mxu0 0.0
    %2426 = vmatpush2.msra.mxu0 0.0
    %2427 = vmatprep.subr.mxu0 0.0
    %2428 = vmatpush2.msra.mxu0 0.0
    %2429 = vmatprep.mubr.f32.mxu0 0.0
    %2430 = vmatmul.mubr.f32.gmra.mxu0 %v2363
    %v2431 = vpop.f32.mrf.mxu0
    %v2432 = vadd.f32 %v2360, %v2431
    %v2433 = vpop.f32.mrf.mxu0
    %2434 = vdwg.mxu0
    %v2435 = vadd.f32 %v2231, %v2432
    %s2436 = scalar_lea.vmem %s10, 16
    %v2437 = vld [vmem:[%s2436] sm:$0x1]
    %s2438 = scalar_lea.vmem %s10, 17
    %v2439 = vld [vmem:[%s2438] sm:$0x1]
    %v2440 = vsel %vm1224, %v2435, 0.0
    %2441 = vadd.xlane.f32.xlu0 %v2440
    %v2442 = vpop.xlane.xlu0 %2441
    %v2443 = vmul.f32 %v2442, %v1228
    %v2444 = vsub.f32 %v2435, %v2443
    %v2445 = vmul.f32 %v2444, %v2444
    %v2446 = vsel %vm1224, %v2445, 0.0
    %2447 = vadd.xlane.f32.xlu0 %v2446
    %v2448 = vpop.xlane.xlu0 %2447
    %v2449 = vmul.f32 %v2448, %v1228
    %v2450 = vadd.f32 %v2449, 1e-05
    %v2451 = vrsqrt.pop %v2450
    %v2452 = vmul.f32 %v2444, %v2451
    %v2454 = vlaneseq
    %v2455 = vshrl.u32 %v2454, 7
    %v2456 = vsub.s32 0, %v2455
    %v2457 = vrot.slane %v2437, %v2456
    %v2459 = vmul.f32 %v2452, %v2457
    %v2461 = vlaneseq
    %v2462 = vshrl.u32 %v2461, 7
    %v2463 = vsub.s32 0, %v2462
    %v2464 = vrot.slane %v2439, %v2463
    %v2466 = vadd.f32 %v2459, %v2464
    %v2467 = vld [vmem:[#allocation8] sm:$0x1]
    %s2468 = scalar_lea.vmem [#allocation8], 1
    %v2469 = vld [vmem:[%s2468] sm:$0x1]
    %v2470 = vsel %vm1224, %v2466, 0.0
    %2471 = vadd.xlane.f32.xlu0 %v2470
    %v2472 = vpop.xlane.xlu0 %2471
    %v2473 = vmul.f32 %v2472, %v1228
    %v2474 = vsub.f32 %v2466, %v2473
    %v2475 = vmul.f32 %v2474, %v2474
    %v2476 = vsel %vm1224, %v2475, 0.0
    %2477 = vadd.xlane.f32.xlu0 %v2476
    %v2478 = vpop.xlane.xlu0 %2477
    %v2479 = vmul.f32 %v2478, %v1228
    %v2480 = vadd.f32 %v2479, 1e-05
    %v2481 = vrsqrt.pop %v2480
    %v2482 = vmul.f32 %v2474, %v2481
    %v2484 = vlaneseq
    %v2485 = vshrl.u32 %v2484, 7
    %v2486 = vsub.s32 0, %v2485
    %v2487 = vrot.slane %v2467, %v2486
    %v2489 = vmul.f32 %v2482, %v2487
    %v2491 = vlaneseq
    %v2492 = vshrl.u32 %v2491, 7
    %v2493 = vsub.s32 0, %v2492
    %v2494 = vrot.slane %v2469, %v2493
    %v2496 = vadd.f32 %v2489, %v2494
    %v2497 = vmul.f32 %v2496, 0.5
    %v2498 = vmul.f32 %v2496, 0.70710677
    %vm2499 = vcmp.ge.f32.partialorder %v2498, 0.0
    %v2500 = vsel %vm2499, 1.0, -1.0
    %v2501 = vand.u32 2147483647, %v2498
    %v2502 = vmul.f32 %v2501, 0.3275911
    %v2503 = vadd.f32 %v2502, 1.0
    %v2504 = vrcp.pop %v2503
    %v2505 = vmul.f32 1.0, %v2504
    %v2506 = vmul.f32 %v2505, 1.0614054
    %v2507 = vadd.f32 %v2506, -1.4531521
    %v2508 = vmul.f32 %v2507, %v2505
    %v2509 = vadd.f32 %v2508, 1.4214138
    %v2510 = vmul.f32 %v2509, %v2505
    %v2511 = vadd.f32 %v2510, -0.28449672
    %v2512 = vmul.f32 %v2511, %v2505
    %v2513 = vadd.f32 %v2512, 0.2548296
    %v2514 = vmul.f32 %v2513, %v2505
    %v2515 = vsub.f32 0.0, %v2501
    %v2516 = vmul.f32 %v2515, %v2501
    %v2517 = vmul.f32 %v2516, 1.442695
    %v2518 = vpow.pop %v2517
    %v2519 = vmul.f32 %v2514, %v2518
    %v2520 = vsub.f32 1.0, %v2519
    %v2521 = vmul.f32 %v2500, %v2520
    %v2522 = vadd.f32 %v2521, 1.0
    %v2523 = vmul.f32 %v2497, %v2522
    %v2524 = vld [vmem:[%s17] sm:$0xff]
    %v2525 = vld [vmem:[%s17 + $0x8] sm:$0xff]
    %v2526 = vld [vmem:[%s17 + $0x10] sm:$0xff]
    %v2527 = vld [vmem:[%s17 + $0x18] sm:$0xff]
    %v2529 = vsel %vm502, %v2523, 0
    %2531 = vmatprep.subr.mxu0 0.0
    %2532 = vmatpush1.msra.mxu0 0.0
    %2533 = vmatprep.subr.mxu0 0.0
    %2534 = vmatpush1.msra.mxu0 0.0
    %2535 = vmatprep.subr.mxu0 0.0
    %2536 = vmatpush1.msra.mxu0 0.0
    %2537 = vmatprep.subr.mxu0 0.0
    %2538 = vmatpush1.msra.mxu0 0.0
    %2539 = vmatprep.subr.mxu0 0.0
    %2540 = vmatpush1.msra.mxu0 0.0
    %2541 = vmatprep.subr.mxu0 0.0
    %2542 = vmatpush1.msra.mxu0 0.0
    %2543 = vmatprep.subr.mxu0 0.0
    %2544 = vmatpush1.msra.mxu0 0.0
    %2545 = vmatprep.subr.mxu0 0.0
    %2546 = vmatpush1.msra.mxu0 0.0
    %2547 = vmatprep.subr.mxu0 0.0
    %2548 = vmatpush1.msra.mxu0 0.0
    %2549 = vmatprep.subr.mxu0 0.0
    %2550 = vmatpush1.msra.mxu0 0.0
    %2551 = vmatprep.subr.mxu0 0.0
    %2552 = vmatpush1.msra.mxu0 0.0
    %2553 = vmatprep.subr.mxu0 0.0
    %2554 = vmatpush1.msra.mxu0 0.0
    %2555 = vmatprep.subr.mxu0 0.0
    %2556 = vmatpush1.msra.mxu0 %v2527
    %2557 = vmatprep.subr.mxu0 0.0
    %2558 = vmatpush1.msra.mxu0 %v2526
    %2559 = vmatprep.subr.mxu0 0.0
    %2560 = vmatpush1.msra.mxu0 %v2525
    %2561 = vmatprep.subr.mxu0 0.0
    %2562 = vmatpush1.msra.mxu0 %v2524
    %2563 = vmatprep.subr.mxu0 0.0
    %2564 = vmatpush2.msra.mxu0 0.0
    %2565 = vmatprep.subr.mxu0 0.0
    %2566 = vmatpush2.msra.mxu0 0.0
    %2567 = vmatprep.subr.mxu0 0.0
    %2568 = vmatpush2.msra.mxu0 0.0
    %2569 = vmatprep.subr.mxu0 0.0
    %2570 = vmatpush2.msra.mxu0 0.0
    %2571 = vmatprep.subr.mxu0 0.0
    %2572 = vmatpush2.msra.mxu0 0.0
    %2573 = vmatprep.subr.mxu0 0.0
    %2574 = vmatpush2.msra.mxu0 0.0
    %2575 = vmatprep.subr.mxu0 0.0
    %2576 = vmatpush2.msra.mxu0 0.0
    %2577 = vmatprep.subr.mxu0 0.0
    %2578 = vmatpush2.msra.mxu0 0.0
    %2579 = vmatprep.subr.mxu0 0.0
    %2580 = vmatpush2.msra.mxu0 0.0
    %2581 = vmatprep.subr.mxu0 0.0
    %2582 = vmatpush2.msra.mxu0 0.0
    %2583 = vmatprep.subr.mxu0 0.0
    %2584 = vmatpush2.msra.mxu0 0.0
    %2585 = vmatprep.subr.mxu0 0.0
    %2586 = vmatpush2.msra.mxu0 0.0
    %2587 = vmatprep.subr.mxu0 0.0
    %2588 = vmatpush2.msra.mxu0 0.0
    %2589 = vmatprep.subr.mxu0 0.0
    %2590 = vmatpush2.msra.mxu0 0.0
    %2591 = vmatprep.subr.mxu0 0.0
    %2592 = vmatpush2.msra.mxu0 0.0
    %2593 = vmatprep.subr.mxu0 0.0
    %2594 = vmatpush2.msra.mxu0 0.0
    %2595 = vmatprep.mubr.f32.mxu0 0.0
    %2596 = vmatmul.mubr.f32.gmra.mxu0 %v2529
    %v2597 = vpop.f32.mrf.mxu0
    %v2598 = vadd.f32 0.0, %v2597
    %v2599 = vpop.f32.mrf.mxu0
    %2600 = vdwg.mxu0
    %v2601 = vld [vmem:[#allocation10] sm:$0x3f]
    %v2602 = vmul.f32 %v2598, %v2601
    %v2603 = vld [vmem:[%s19] sm:$0xff]
    %v2604 = vld [vmem:[%s19 + $0x8] sm:$0x7f]
    %vm2605 = vcmask 121856
    %v2607 = vsel %vm2605, %v2602, 0
    %vm2609 = vcmask 1046528
    %v2611 = vsel %vm2609, %v2604, 0
    %2613 = vmatprep.subr.mxu0 0.0
    %2614 = vmatpush1.msra.mxu0 0.0
    %2615 = vmatprep.subr.mxu0 0.0
    %2616 = vmatpush1.msra.mxu0 0.0
    %2617 = vmatprep.subr.mxu0 0.0
    %2618 = vmatpush1.msra.mxu0 0.0
    %2619 = vmatprep.subr.mxu0 0.0
    %2620 = vmatpush1.msra.mxu0 0.0
    %2621 = vmatprep.subr.mxu0 0.0
    %2622 = vmatpush1.msra.mxu0 0.0
    %2623 = vmatprep.subr.mxu0 0.0
    %2624 = vmatpush1.msra.mxu0 0.0
    %2625 = vmatprep.subr.mxu0 0.0
    %2626 = vmatpush1.msra.mxu0 0.0
    %2627 = vmatprep.subr.mxu0 0.0
    %2628 = vmatpush1.msra.mxu0 0.0
    %2629 = vmatprep.subr.mxu0 0.0
    %2630 = vmatpush1.msra.mxu0 0.0
    %2631 = vmatprep.subr.mxu0 0.0
    %2632 = vmatpush1.msra.mxu0 0.0
    %2633 = vmatprep.subr.mxu0 0.0
    %2634 = vmatpush1.msra.mxu0 0.0
    %2635 = vmatprep.subr.mxu0 0.0
    %2636 = vmatpush1.msra.mxu0 0.0
    %2637 = vmatprep.subr.mxu0 0.0
    %2638 = vmatpush1.msra.mxu0 0.0
    %2639 = vmatprep.subr.mxu0 0.0
    %2640 = vmatpush1.msra.mxu0 0.0
    %2641 = vmatprep.subr.mxu0 0.0
    %2642 = vmatpush1.msra.mxu0 %v2611
    %2643 = vmatprep.subr.mxu0 0.0
    %2644 = vmatpush1.msra.mxu0 %v2603
    %2645 = vmatprep.subr.mxu0 0.0
    %2646 = vmatpush2.msra.mxu0 0.0
    %2647 = vmatprep.subr.mxu0 0.0
    %2648 = vmatpush2.msra.mxu0 0.0
    %2649 = vmatprep.subr.mxu0 0.0
    %2650 = vmatpush2.msra.mxu0 0.0
    %2651 = vmatprep.subr.mxu0 0.0
    %2652 = vmatpush2.msra.mxu0 0.0
    %2653 = vmatprep.subr.mxu0 0.0
    %2654 = vmatpush2.msra.mxu0 0.0
    %2655 = vmatprep.subr.mxu0 0.0
    %2656 = vmatpush2.msra.mxu0 0.0
    %2657 = vmatprep.subr.mxu0 0.0
    %2658 = vmatpush2.msra.mxu0 0.0
    %2659 = vmatprep.subr.mxu0 0.0
    %2660 = vmatpush2.msra.mxu0 0.0
    %2661 = vmatprep.subr.mxu0 0.0
    %2662 = vmatpush2.msra.mxu0 0.0
    %2663 = vmatprep.subr.mxu0 0.0
    %2664 = vmatpush2.msra.mxu0 0.0
    %2665 = vmatprep.subr.mxu0 0.0
    %2666 = vmatpush2.msra.mxu0 0.0
    %2667 = vmatprep.subr.mxu0 0.0
    %2668 = vmatpush2.msra.mxu0 0.0
    %2669 = vmatprep.subr.mxu0 0.0
    %2670 = vmatpush2.msra.mxu0 0.0
    %2671 = vmatprep.subr.mxu0 0.0
    %2672 = vmatpush2.msra.mxu0 0.0
    %2673 = vmatprep.subr.mxu0 0.0
    %2674 = vmatpush2.msra.mxu0 0.0
    %2675 = vmatprep.subr.mxu0 0.0
    %2676 = vmatpush2.msra.mxu0 0.0
    %2677 = vmatprep.mubr.f32.mxu0 0.0
    %2678 = vmatmul.mubr.f32.gmra.mxu0 %v2607
    %v2679 = vpop.f32.mrf.mxu0
    %v2680 = vadd.f32 0.0, %v2679
    %v2681 = vpop.f32.mrf.mxu0
    %2682 = vdwg.mxu0
    %v2683 = vld [vmem:[#allocation11] sm:$0x3]
    %v2684 = vld [vmem:[#allocation13] sm:$0x1]
    %v2686 = vlaneseq
    %v2687 = vshrl.u32 %v2686, 7
    %v2688 = vsub.s32 0, %v2687
    %v2689 = vrot.slane %v2684, %v2688
    %v2692 = vsel %vm742, %v2683, 0
    %v2695 = vsel %vm752, %v2680, 0
    %2697 = vmatprep.subr.mxu0 0.0
    %2698 = vmatpush1.msra.mxu0 0.0
    %2699 = vmatprep.subr.mxu0 0.0
    %2700 = vmatpush1.msra.mxu0 0.0
    %2701 = vmatprep.subr.mxu0 0.0
    %2702 = vmatpush1.msra.mxu0 0.0
    %2703 = vmatprep.subr.mxu0 0.0
    %2704 = vmatpush1.msra.mxu0 0.0
    %2705 = vmatprep.subr.mxu0 0.0
    %2706 = vmatpush1.msra.mxu0 0.0
    %2707 = vmatprep.subr.mxu0 0.0
    %2708 = vmatpush1.msra.mxu0 0.0
    %2709 = vmatprep.subr.mxu0 0.0
    %2710 = vmatpush1.msra.mxu0 0.0
    %2711 = vmatprep.subr.mxu0 0.0
    %2712 = vmatpush1.msra.mxu0 0.0
    %2713 = vmatprep.subr.mxu0 0.0
    %2714 = vmatpush1.msra.mxu0 0.0
    %2715 = vmatprep.subr.mxu0 0.0
    %2716 = vmatpush1.msra.mxu0 0.0
    %2717 = vmatprep.subr.mxu0 0.0
    %2718 = vmatpush1.msra.mxu0 0.0
    %2719 = vmatprep.subr.mxu0 0.0
    %2720 = vmatpush1.msra.mxu0 0.0
    %2721 = vmatprep.subr.mxu0 0.0
    %2722 = vmatpush1.msra.mxu0 0.0
    %2723 = vmatprep.subr.mxu0 0.0
    %2724 = vmatpush1.msra.mxu0 0.0
    %2725 = vmatprep.subr.mxu0 0.0
    %2726 = vmatpush1.msra.mxu0 0.0
    %2727 = vmatprep.subr.mxu0 0.0
    %2728 = vmatpush1.msra.mxu0 %v2695
    %2729 = vmatprep.subr.mxu0 0.0
    %2730 = vmatpush2.msra.mxu0 0.0
    %2731 = vmatprep.subr.mxu0 0.0
    %2732 = vmatpush2.msra.mxu0 0.0
    %2733 = vmatprep.subr.mxu0 0.0
    %2734 = vmatpush2.msra.mxu0 0.0
    %2735 = vmatprep.subr.mxu0 0.0
    %2736 = vmatpush2.msra.mxu0 0.0
    %2737 = vmatprep.subr.mxu0 0.0
    %2738 = vmatpush2.msra.mxu0 0.0
    %2739 = vmatprep.subr.mxu0 0.0
    %2740 = vmatpush2.msra.mxu0 0.0
    %2741 = vmatprep.subr.mxu0 0.0
    %2742 = vmatpush2.msra.mxu0 0.0
    %2743 = vmatprep.subr.mxu0 0.0
    %2744 = vmatpush2.msra.mxu0 0.0
    %2745 = vmatprep.subr.mxu0 0.0
    %2746 = vmatpush2.msra.mxu0 0.0
    %2747 = vmatprep.subr.mxu0 0.0
    %2748 = vmatpush2.msra.mxu0 0.0
    %2749 = vmatprep.subr.mxu0 0.0
    %2750 = vmatpush2.msra.mxu0 0.0
    %2751 = vmatprep.subr.mxu0 0.0
    %2752 = vmatpush2.msra.mxu0 0.0
    %2753 = vmatprep.subr.mxu0 0.0
    %2754 = vmatpush2.msra.mxu0 0.0
    %2755 = vmatprep.subr.mxu0 0.0
    %2756 = vmatpush2.msra.mxu0 0.0
    %2757 = vmatprep.subr.mxu0 0.0
    %2758 = vmatpush2.msra.mxu0 0.0
    %2759 = vmatprep.subr.mxu0 0.0
    %2760 = vmatpush2.msra.mxu0 0.0
    %2761 = vmatprep.mubr.f32.mxu0 0.0
    %2762 = vmatmul.mubr.f32.gmra.mxu0 %v2692
    %v2763 = vpop.f32.mrf.mxu0
    %v2764 = vadd.f32 %v2689, %v2763
    %v2765 = vpop.f32.mrf.mxu0
    %2766 = vdwg.mxu0
    %vm2767 = vcmask 33792
    %2768 = vst.msk [vmem:[#allocation14] sm:$0x3] %vm2767, %v2764
    // Predicated region
    $region118: #{conformer_forward.1} parent=1 // pred_check
      _
    $region119: #{conformer_forward.1} parent=1 // pred_check_branch
      %2770 = sbr.rel (0) target = $region121
    $region120: #{conformer_forward.1} parent=1 // pred_region
      %s2772 = ssub.s32 32, 32
      %2773 = vsyncadd [#allocation4], %s2772
      %s2775 = sshll.u32 [#allocation14], 4
      %s2776 = int_to_ptr.vmem [resolvable:$true] %s2775
      %2778 = dma.vmem_to_hbm [thread:$0]  %s2776, 32, %s22, [#allocation4]
    $region121: #{conformer_forward.1} parent=1 // pred_fallthru
      _
    // Predicated region
    $region122: #{conformer_forward.1} parent=1 // pred_check
      _
    $region123: #{conformer_forward.1} parent=1 // pred_check_branch
      %2780 = sbr.rel (0) target = $region125
    $region124: #{conformer_forward.1} parent=1 // pred_region
      %2781 = dma.done [#allocation4], 32
    $region125: #{conformer_forward.1} parent=1 // pred_fallthru
      _
    %2782 = vsyncpa [#allocation3], 1
    %2783 = vsyncpa [#allocation6], 1
    %2784 = vsyncpa [#allocation9], 1
    %2785 = vsyncpa [#allocation12], 1
    %2786 = vsyncpa [#allocation4], 1

</llo_original>
